<compile_context>
chip_gen: v6e
topology: v6e:2x2x1
jax: 0.10.0
libtpu: 0.0.40
codegen_flags: <defaults>
</compile_context>

<pallas_src>
import jax
import jax.numpy as jnp
from jax.experimental import pallas as pl
from jax.experimental.pallas import tpu as pltpu


def _round_up(x, m):
    return ((x + m - 1) // m) * m


# ---------------------------------------------------------------------------
# Fused Input_Encoder kernel.
#   words:  (TILE_N, W)      int32   flattened (batch-major) word ids
#   ulens:  (TILE_N, 1)      int32   per-utterance lengths
#   clens:  (TILE_B, 1)      int32   per-context lengths (TILE_N = TILE_B*(U+1))
#   emb:    (V_pad, E_pad)   bf16    embedding table (VMEM resident)
#   uw/ub:  (E_pad, H_pad) bf16 / (1, H_pad) f32   U_Encoder projection
#   dw/db:  (H_pad, H_pad) bf16 / (1, H_pad) f32   D_Encoder projection
#   out:    (TILE_B, H_pad)  f32     context embeddings
# ---------------------------------------------------------------------------
def _input_encoder_kernel(words_ref, ulen_ref, clen_ref,
                          emb_ref, uw_ref, ub_ref, dw_ref, db_ref, o_ref):
    words = words_ref[...]                              # (TN, W) int32
    ulens = ulen_ref[...]                               # (TN, 1) int32
    clens = clen_ref[...]                               # (TB, 1) int32

    tn, w_len = words.shape
    tb = clens.shape[0]
    u1 = tn // tb                                       # utterances per context
    v_pad = emb_ref.shape[0]

    # ---------------- U_Encoder: masked mean over words + linear + tanh ----
    pos = jax.lax.broadcasted_iota(jnp.int32, (tn, w_len), 1)
    inv_ulen = pl.reciprocal(jnp.maximum(ulens, 1).astype(jnp.float32),
                             approx=True)               # (TN, 1)
    # mask and 1/len folded into one pooling weight
    wweight = jnp.where(pos < ulens, inv_ulen, 0.0)     # (TN, W) f32

    # Fused embedding gather: masked word-count histogram @ table on the MXU.
    vocab_iota = jax.lax.broadcasted_iota(jnp.int32, (tn, v_pad), 1)
    counts = jnp.zeros((tn, v_pad), jnp.float32)
    for wi in range(w_len):                             # W is small and static
        counts = counts + jnp.where(vocab_iota == words[:, wi:wi + 1],
                                    wweight[:, wi:wi + 1], 0.0)

    pooled = jnp.dot(counts.astype(jnp.bfloat16), emb_ref[...],
                     preferred_element_type=jnp.float32)        # (TN, E_pad)
    uemb = jnp.tanh(jnp.dot(pooled.astype(jnp.bfloat16), uw_ref[...],
                            preferred_element_type=jnp.float32)
                    + ub_ref[...])                               # (TN, H_pad)
    # masked_scatter_ into zeros: zero utterance rows with length == 0
    uemb = jnp.where(ulens > 0, uemb, 0.0)

    # ------------- D_Encoder: masked mean over utterances + linear + tanh --
    # Selection matrix S[b, n] = 1/clen[b] iff row n is one of context b's
    # first clen[b] utterance rows; pooling becomes a small MXU matmul
    # (avoids in-kernel reshapes / strided slices).
    row_b = jax.lax.broadcasted_iota(jnp.int32, (tb, tn), 0)
    col_n = jax.lax.broadcasted_iota(jnp.int32, (tb, tn), 1)
    lo = row_b * u1
    inv_clen = pl.reciprocal(jnp.maximum(clens, 1).astype(jnp.float32),
                             approx=True)               # (TB, 1)
    sel = jnp.where((col_n >= lo) & (col_n < lo + clens), inv_clen, 0.0)

    cpooled = jnp.dot(sel.astype(jnp.bfloat16), uemb.astype(jnp.bfloat16),
                      preferred_element_type=jnp.float32)       # (TB, H_pad)
    cemb = jnp.tanh(jnp.dot(cpooled.astype(jnp.bfloat16), dw_ref[...],
                            preferred_element_type=jnp.float32)
                    + db_ref[...])                               # (TB, H_pad)
    # masked_scatter_ into zeros: zero context rows with length == 0
    o_ref[...] = jnp.where(clens > 0, cemb, 0.0)


# ---------------------------------------------------------------------------
# Input_Encoder.forward
# ---------------------------------------------------------------------------
def input_encoder_forward(params, contexts, context_utterance_lengths,
                          context_lengths, queries, query_lengths,
                          *, tile_rows=256):
    B, U, W = contexts.shape
    U1 = U + 1

    # -- combined_contexts: insert queries[i] at row context_lengths[i] ------
    j = jnp.arange(U1)[None, :]                              # (1, U+1)
    idx = context_lengths[:, None]                           # (B, 1)
    src = jnp.clip(jnp.where(j < idx, j, j - 1), 0, U - 1)   # (B, U+1)
    from_ctx = jnp.take_along_axis(contexts, src[:, :, None], axis=1)
    combined = jnp.where((j == idx)[:, :, None], queries[:, None, :], from_ctx)

    # combined lengths: query length appended at the END, exactly as the
    # PyTorch reference's torch.cat((context_utterance_lengths, query_lengths))
    comb_utt_lens = jnp.concatenate(
        [context_utterance_lengths, query_lengths[:, None]], axis=1)  # (B, U+1)
    comb_ctx_lens = context_lengths + 1                               # (B,)

    # -- pad model dims to lane-dense 128 multiples --------------------------
    V, E = params["emb"].shape
    H = params["u_w"].shape[1]
    V_pad = _round_up(V, 128)
    E_pad = _round_up(E, 128)
    H_pad = _round_up(H, 128)

    f32, bf16 = jnp.float32, jnp.bfloat16
    emb_p = jnp.zeros((V_pad, E_pad), bf16).at[:V, :E].set(params["emb"].astype(bf16))
    u_w_p = jnp.zeros((E_pad, H_pad), bf16).at[:E, :H].set(params["u_w"].astype(bf16))
    u_b_p = jnp.zeros((1, H_pad), f32).at[:, :H].set(params["u_b"].astype(f32))
    d_w_p = jnp.zeros((H_pad, H_pad), bf16).at[:H, :H].set(params["d_w"].astype(bf16))
    d_b_p = jnp.zeros((1, H_pad), f32).at[:, :H].set(params["d_b"].astype(f32))

    # -- pad batch so each grid step holds whole contexts --------------------
    tile_b = max(8, _round_up(pl.cdiv(tile_rows, U1), 8))    # contexts per step
    B_pad = _round_up(B, tile_b)
    pad_b = B_pad - B
    tile_n = tile_b * U1                                     # utterance rows per step

    words_p = jnp.pad(combined, ((0, pad_b), (0, 0), (0, 0))) \
                 .reshape(B_pad * U1, W).astype(jnp.int32)
    ulens_p = jnp.pad(comb_utt_lens, ((0, pad_b), (0, 0))) \
                 .reshape(B_pad * U1, 1).astype(jnp.int32)
    clens_p = jnp.pad(comb_ctx_lens, ((0, pad_b),)) \
                 .reshape(B_pad, 1).astype(jnp.int32)

    out_p = pl.pallas_call(
        _input_encoder_kernel,
        out_shape=jax.ShapeDtypeStruct((B_pad, H_pad), jnp.float32),
        grid=(B_pad // tile_b,),
        in_specs=[
            pl.BlockSpec((tile_n, W), lambda i: (i, 0)),        # word ids
            pl.BlockSpec((tile_n, 1), lambda i: (i, 0)),        # utterance lens
            pl.BlockSpec((tile_b, 1), lambda i: (i, 0)),        # context lens
            pl.BlockSpec((V_pad, E_pad), lambda i: (0, 0)),     # emb table (resident)
            pl.BlockSpec((E_pad, H_pad), lambda i: (0, 0)),     # u_w (resident)
            pl.BlockSpec((1, H_pad), lambda i: (0, 0)),         # u_b (resident)
            pl.BlockSpec((H_pad, H_pad), lambda i: (0, 0)),     # d_w (resident)
            pl.BlockSpec((1, H_pad), lambda i: (0, 0)),         # d_b (resident)
        ],
        out_specs=pl.BlockSpec((tile_b, H_pad), lambda i: (i, 0)),
        compiler_params=pltpu.CompilerParams(
            dimension_semantics=("parallel",),
            vmem_limit_bytes=32 * 1024 * 1024,
        ),
    )(words_p, ulens_p, clens_p, emb_p, u_w_p, u_b_p, d_w_p, d_b_p)

    return out_p[:B, :H]


# ---------------------------------------------------------------------------
if __name__ == "__main__":
    B, U, W = 2, 3, 8         # batch, utterances per context, words per utterance
    VOCAB, E, H = 50, 32, 32  # vocab size, embed dim, hidden dim

    key = jax.random.PRNGKey(0)
    k_ctx, k_q, k_emb, k_uw, k_ub, k_dw, k_db = jax.random.split(key, 7)

    contexts = jax.random.randint(k_ctx, (B, U, W), 1, VOCAB, dtype=jnp.int32)
    queries = jax.random.randint(k_q, (B, W), 1, VOCAB, dtype=jnp.int32)
    context_utterance_lengths = jnp.array([[5, 3, 0], [8, 0, 0]], dtype=jnp.int32)
    context_lengths = jnp.array([2, 1], dtype=jnp.int32)
    query_lengths = jnp.array([4, 6], dtype=jnp.int32)

    params = {
        "emb": jax.random.normal(k_emb, (VOCAB, E), jnp.float32) * 0.1,
        "u_w": jax.random.normal(k_uw, (E, H), jnp.float32) * 0.1,
        "u_b": jax.random.normal(k_ub, (H,), jnp.float32) * 0.1,
        "d_w": jax.random.normal(k_dw, (H, H), jnp.float32) * 0.1,
        "d_b": jax.random.normal(k_db, (H,), jnp.float32) * 0.1,
    }

    out = input_encoder_forward(
        params, contexts, context_utterance_lengths,
        context_lengths, queries, query_lengths)
    out = jax.block_until_ready(out)
    assert out.shape == (B, H) and out.dtype == jnp.float32
    assert bool(jnp.all(jnp.isfinite(out)))
    print("KERNEL_OK")
</pallas_src>

<mosaic_0001>
module attributes {stable_mosaic.version = 11 : i64} {
  func.func @_input_encoder_kernel(%arg0: i32, %arg1: memref<256x8xi32, #tpu.memory_space<vmem>>, %arg2: memref<256x1xi32, #tpu.memory_space<vmem>>, %arg3: memref<64x1xi32, #tpu.memory_space<vmem>>, %arg4: memref<128x128xbf16, #tpu.memory_space<vmem>>, %arg5: memref<128x128xbf16, #tpu.memory_space<vmem>>, %arg6: memref<1x128xf32, #tpu.memory_space<vmem>>, %arg7: memref<128x128xbf16, #tpu.memory_space<vmem>>, %arg8: memref<1x128xf32, #tpu.memory_space<vmem>>, %arg9: memref<64x128xf32, #tpu.memory_space<vmem>>) attributes {dimension_semantics = [#tpu.dimension_semantics<parallel>], iteration_bounds = array<i64: 1>, scalar_prefetch = 0 : i64, scratch_operands = 0 : i64, tpu.core_type = #tpu.core_type<tc>, window_params = [{transform_indices = @transform_0, window_bounds = array<i64: 256, 8>}, {transform_indices = @transform_1, window_bounds = array<i64: 256, 1>}, {transform_indices = @transform_2, window_bounds = array<i64: 64, 1>}, {pipeline_mode = #tpu.pipeline_mode<synchronous>, transform_indices = @transform_3, window_bounds = array<i64: 128, 128>}, {pipeline_mode = #tpu.pipeline_mode<synchronous>, transform_indices = @transform_4, window_bounds = array<i64: 128, 128>}, {pipeline_mode = #tpu.pipeline_mode<synchronous>, transform_indices = @transform_5, window_bounds = array<i64: 1, 128>}, {pipeline_mode = #tpu.pipeline_mode<synchronous>, transform_indices = @transform_6, window_bounds = array<i64: 128, 128>}, {pipeline_mode = #tpu.pipeline_mode<synchronous>, transform_indices = @transform_7, window_bounds = array<i64: 1, 128>}, {transform_indices = @transform_8, window_bounds = array<i64: 64, 128>}]} {
    %c0 = arith.constant 0 : index
    %c0_0 = arith.constant 0 : index
    %0 = vector.load %arg1[%c0, %c0_0] : memref<256x8xi32, #tpu.memory_space<vmem>>, vector<256x8xi32>
    %c0_1 = arith.constant 0 : index
    %c0_2 = arith.constant 0 : index
    %1 = vector.load %arg2[%c0_1, %c0_2] : memref<256x1xi32, #tpu.memory_space<vmem>>, vector<256x1xi32>
    %c0_3 = arith.constant 0 : index
    %c0_4 = arith.constant 0 : index
    %2 = vector.load %arg3[%c0_3, %c0_4] : memref<64x1xi32, #tpu.memory_space<vmem>>, vector<64x1xi32>
    %3 = tpu.iota {dimensions = array<i32: 1>} : vector<256x8xi32>
    %c1_i32 = arith.constant 1 : i32
    %4 = vector.broadcast %c1_i32 : i32 to vector<256x1xi32>
    %5 = arith.maxsi %1, %4 : vector<256x1xi32>
    %6 = arith.sitofp %5 : vector<256x1xi32> to vector<256x1xf32>
    %7 = tpu.reciprocal %6 {approx = true} : vector<256x1xf32> -> vector<256x1xf32>
    %8 = vector.broadcast %1 : vector<256x1xi32> to vector<256x8xi32>
    %9 = arith.cmpi slt, %3, %8 : vector<256x8xi32>
    %cst = arith.constant 0.000000e+00 : f32
    %10 = vector.shape_cast %7 : vector<256x1xf32> to vector<256x1xf32>
    %11 = vector.broadcast %10 : vector<256x1xf32> to vector<256x8xf32>
    %12 = vector.broadcast %cst : f32 to vector<256x8xf32>
    %13 = arith.select %9, %11, %12 : vector<256x8xi1>, vector<256x8xf32>
    %14 = tpu.iota {dimensions = array<i32: 1>} : vector<256x128xi32>
    %cst_5 = arith.constant 0.000000e+00 : f32
    %15 = vector.broadcast %cst_5 : f32 to vector<256x128xf32>
    %16 = vector.extract_strided_slice %0 {offsets = [0, 0], sizes = [256, 1], strides = [1, 1]} : vector<256x8xi32> to vector<256x1xi32>
    %17 = vector.broadcast %16 : vector<256x1xi32> to vector<256x128xi32>
    %18 = arith.cmpi eq, %14, %17 : vector<256x128xi32>
    %19 = vector.extract_strided_slice %13 {offsets = [0, 0], sizes = [256, 1], strides = [1, 1]} : vector<256x8xf32> to vector<256x1xf32>
    %cst_6 = arith.constant 0.000000e+00 : f32
    %20 = vector.shape_cast %19 : vector<256x1xf32> to vector<256x1xf32>
    %21 = vector.broadcast %20 : vector<256x1xf32> to vector<256x128xf32>
    %22 = vector.broadcast %cst_6 : f32 to vector<256x128xf32>
    %23 = arith.select %18, %21, %22 : vector<256x128xi1>, vector<256x128xf32>
    %24 = arith.addf %15, %23 : vector<256x128xf32>
    %25 = vector.extract_strided_slice %0 {offsets = [0, 1], sizes = [256, 1], strides = [1, 1]} : vector<256x8xi32> to vector<256x1xi32>
    %26 = vector.broadcast %25 : vector<256x1xi32> to vector<256x128xi32>
    %27 = arith.cmpi eq, %14, %26 : vector<256x128xi32>
    %28 = vector.extract_strided_slice %13 {offsets = [0, 1], sizes = [256, 1], strides = [1, 1]} : vector<256x8xf32> to vector<256x1xf32>
    %cst_7 = arith.constant 0.000000e+00 : f32
    %29 = vector.shape_cast %28 : vector<256x1xf32> to vector<256x1xf32>
    %30 = vector.broadcast %29 : vector<256x1xf32> to vector<256x128xf32>
    %31 = vector.broadcast %cst_7 : f32 to vector<256x128xf32>
    %32 = arith.select %27, %30, %31 : vector<256x128xi1>, vector<256x128xf32>
    %33 = arith.addf %24, %32 : vector<256x128xf32>
    %34 = vector.extract_strided_slice %0 {offsets = [0, 2], sizes = [256, 1], strides = [1, 1]} : vector<256x8xi32> to vector<256x1xi32>
    %35 = vector.broadcast %34 : vector<256x1xi32> to vector<256x128xi32>
    %36 = arith.cmpi eq, %14, %35 : vector<256x128xi32>
    %37 = vector.extract_strided_slice %13 {offsets = [0, 2], sizes = [256, 1], strides = [1, 1]} : vector<256x8xf32> to vector<256x1xf32>
    %cst_8 = arith.constant 0.000000e+00 : f32
    %38 = vector.shape_cast %37 : vector<256x1xf32> to vector<256x1xf32>
    %39 = vector.broadcast %38 : vector<256x1xf32> to vector<256x128xf32>
    %40 = vector.broadcast %cst_8 : f32 to vector<256x128xf32>
    %41 = arith.select %36, %39, %40 : vector<256x128xi1>, vector<256x128xf32>
    %42 = arith.addf %33, %41 : vector<256x128xf32>
    %43 = vector.extract_strided_slice %0 {offsets = [0, 3], sizes = [256, 1], strides = [1, 1]} : vector<256x8xi32> to vector<256x1xi32>
    %44 = vector.broadcast %43 : vector<256x1xi32> to vector<256x128xi32>
    %45 = arith.cmpi eq, %14, %44 : vector<256x128xi32>
    %46 = vector.extract_strided_slice %13 {offsets = [0, 3], sizes = [256, 1], strides = [1, 1]} : vector<256x8xf32> to vector<256x1xf32>
    %cst_9 = arith.constant 0.000000e+00 : f32
    %47 = vector.shape_cast %46 : vector<256x1xf32> to vector<256x1xf32>
    %48 = vector.broadcast %47 : vector<256x1xf32> to vector<256x128xf32>
    %49 = vector.broadcast %cst_9 : f32 to vector<256x128xf32>
    %50 = arith.select %45, %48, %49 : vector<256x128xi1>, vector<256x128xf32>
    %51 = arith.addf %42, %50 : vector<256x128xf32>
    %52 = vector.extract_strided_slice %0 {offsets = [0, 4], sizes = [256, 1], strides = [1, 1]} : vector<256x8xi32> to vector<256x1xi32>
    %53 = vector.broadcast %52 : vector<256x1xi32> to vector<256x128xi32>
    %54 = arith.cmpi eq, %14, %53 : vector<256x128xi32>
    %55 = vector.extract_strided_slice %13 {offsets = [0, 4], sizes = [256, 1], strides = [1, 1]} : vector<256x8xf32> to vector<256x1xf32>
    %cst_10 = arith.constant 0.000000e+00 : f32
    %56 = vector.shape_cast %55 : vector<256x1xf32> to vector<256x1xf32>
    %57 = vector.broadcast %56 : vector<256x1xf32> to vector<256x128xf32>
    %58 = vector.broadcast %cst_10 : f32 to vector<256x128xf32>
    %59 = arith.select %54, %57, %58 : vector<256x128xi1>, vector<256x128xf32>
    %60 = arith.addf %51, %59 : vector<256x128xf32>
    %61 = vector.extract_strided_slice %0 {offsets = [0, 5], sizes = [256, 1], strides = [1, 1]} : vector<256x8xi32> to vector<256x1xi32>
    %62 = vector.broadcast %61 : vector<256x1xi32> to vector<256x128xi32>
    %63 = arith.cmpi eq, %14, %62 : vector<256x128xi32>
    %64 = vector.extract_strided_slice %13 {offsets = [0, 5], sizes = [256, 1], strides = [1, 1]} : vector<256x8xf32> to vector<256x1xf32>
    %cst_11 = arith.constant 0.000000e+00 : f32
    %65 = vector.shape_cast %64 : vector<256x1xf32> to vector<256x1xf32>
    %66 = vector.broadcast %65 : vector<256x1xf32> to vector<256x128xf32>
    %67 = vector.broadcast %cst_11 : f32 to vector<256x128xf32>
    %68 = arith.select %63, %66, %67 : vector<256x128xi1>, vector<256x128xf32>
    %69 = arith.addf %60, %68 : vector<256x128xf32>
    %70 = vector.extract_strided_slice %0 {offsets = [0, 6], sizes = [256, 1], strides = [1, 1]} : vector<256x8xi32> to vector<256x1xi32>
    %71 = vector.broadcast %70 : vector<256x1xi32> to vector<256x128xi32>
    %72 = arith.cmpi eq, %14, %71 : vector<256x128xi32>
    %73 = vector.extract_strided_slice %13 {offsets = [0, 6], sizes = [256, 1], strides = [1, 1]} : vector<256x8xf32> to vector<256x1xf32>
    %cst_12 = arith.constant 0.000000e+00 : f32
    %74 = vector.shape_cast %73 : vector<256x1xf32> to vector<256x1xf32>
    %75 = vector.broadcast %74 : vector<256x1xf32> to vector<256x128xf32>
    %76 = vector.broadcast %cst_12 : f32 to vector<256x128xf32>
    %77 = arith.select %72, %75, %76 : vector<256x128xi1>, vector<256x128xf32>
    %78 = arith.addf %69, %77 : vector<256x128xf32>
    %79 = vector.extract_strided_slice %0 {offsets = [0, 7], sizes = [256, 1], strides = [1, 1]} : vector<256x8xi32> to vector<256x1xi32>
    %80 = vector.broadcast %79 : vector<256x1xi32> to vector<256x128xi32>
    %81 = arith.cmpi eq, %14, %80 : vector<256x128xi32>
    %82 = vector.extract_strided_slice %13 {offsets = [0, 7], sizes = [256, 1], strides = [1, 1]} : vector<256x8xf32> to vector<256x1xf32>
    %cst_13 = arith.constant 0.000000e+00 : f32
    %83 = vector.shape_cast %82 : vector<256x1xf32> to vector<256x1xf32>
    %84 = vector.broadcast %83 : vector<256x1xf32> to vector<256x128xf32>
    %85 = vector.broadcast %cst_13 : f32 to vector<256x128xf32>
    %86 = arith.select %81, %84, %85 : vector<256x128xi1>, vector<256x128xf32>
    %87 = arith.addf %78, %86 : vector<256x128xf32>
    %88 = arith.truncf %87 : vector<256x128xf32> to vector<256x128xbf16>
    %c0_14 = arith.constant 0 : index
    %c0_15 = arith.constant 0 : index
    %89 = vector.load %arg4[%c0_14, %c0_15] : memref<128x128xbf16, #tpu.memory_space<vmem>>, vector<128x128xbf16>
    %cst_16 = arith.constant dense<0.000000e+00> : vector<256x128xf32>
    %90 = tpu.matmul %88, %89, %cst_16 {dimension_numbers = #tpu.dot_dimension_numbers<[1], [0], [0], [1], [0, 0, 1, 1], [], []>} : vector<256x128xbf16>, vector<128x128xbf16>, vector<256x128xf32> -> vector<256x128xf32>
    %91 = arith.truncf %90 : vector<256x128xf32> to vector<256x128xbf16>
    %c0_17 = arith.constant 0 : index
    %c0_18 = arith.constant 0 : index
    %92 = vector.load %arg5[%c0_17, %c0_18] : memref<128x128xbf16, #tpu.memory_space<vmem>>, vector<128x128xbf16>
    %cst_19 = arith.constant dense<0.000000e+00> : vector<256x128xf32>
    %93 = tpu.matmul %91, %92, %cst_19 {dimension_numbers = #tpu.dot_dimension_numbers<[1], [0], [0], [1], [0, 0, 1, 1], [], []>} : vector<256x128xbf16>, vector<128x128xbf16>, vector<256x128xf32> -> vector<256x128xf32>
    %c0_20 = arith.constant 0 : index
    %c0_21 = arith.constant 0 : index
    %94 = vector.load %arg6[%c0_20, %c0_21] : memref<1x128xf32, #tpu.memory_space<vmem>>, vector<1x128xf32>
    %95 = vector.broadcast %94 : vector<1x128xf32> to vector<256x128xf32>
    %96 = arith.addf %93, %95 : vector<256x128xf32>
    %97 = math.tanh %96 : vector<256x128xf32>
    %c0_i32 = arith.constant 0 : i32
    %98 = vector.broadcast %c0_i32 : i32 to vector<256x1xi32>
    %99 = arith.cmpi sgt, %1, %98 : vector<256x1xi32>
    %cst_22 = arith.constant 0.000000e+00 : f32
    %100 = vector.shape_cast %99 : vector<256x1xi1> to vector<256x1xi1>
    %101 = vector.broadcast %100 : vector<256x1xi1> to vector<256x128xi1>
    %102 = vector.broadcast %cst_22 : f32 to vector<256x128xf32>
    %103 = arith.select %101, %97, %102 : vector<256x128xi1>, vector<256x128xf32>
    %104 = tpu.iota {dimensions = array<i32: 0>} : vector<64x256xi32>
    %105 = tpu.iota {dimensions = array<i32: 1>} : vector<64x256xi32>
    %c4_i32 = arith.constant 4 : i32
    %106 = vector.broadcast %c4_i32 : i32 to vector<64x256xi32>
    %107 = arith.muli %104, %106 : vector<64x256xi32>
    %c1_i32_23 = arith.constant 1 : i32
    %108 = vector.broadcast %c1_i32_23 : i32 to vector<64x1xi32>
    %109 = arith.maxsi %2, %108 : vector<64x1xi32>
    %110 = arith.sitofp %109 : vector<64x1xi32> to vector<64x1xf32>
    %111 = tpu.reciprocal %110 {approx = true} : vector<64x1xf32> -> vector<64x1xf32>
    %112 = arith.cmpi sge, %105, %107 : vector<64x256xi32>
    %113 = vector.broadcast %2 : vector<64x1xi32> to vector<64x256xi32>
    %114 = arith.addi %107, %113 : vector<64x256xi32>
    %115 = arith.cmpi slt, %105, %114 : vector<64x256xi32>
    %116 = arith.andi %112, %115 : vector<64x256xi1>
    %cst_24 = arith.constant 0.000000e+00 : f32
    %117 = vector.shape_cast %111 : vector<64x1xf32> to vector<64x1xf32>
    %118 = vector.broadcast %117 : vector<64x1xf32> to vector<64x256xf32>
    %119 = vector.broadcast %cst_24 : f32 to vector<64x256xf32>
    %120 = arith.select %116, %118, %119 : vector<64x256xi1>, vector<64x256xf32>
    %121 = arith.truncf %120 : vector<64x256xf32> to vector<64x256xbf16>
    %122 = arith.truncf %103 : vector<256x128xf32> to vector<256x128xbf16>
    %cst_25 = arith.constant dense<0.000000e+00> : vector<64x128xf32>
    %123 = tpu.matmul %121, %122, %cst_25 {dimension_numbers = #tpu.dot_dimension_numbers<[1], [0], [0], [1], [0, 0, 1, 1], [], []>} : vector<64x256xbf16>, vector<256x128xbf16>, vector<64x128xf32> -> vector<64x128xf32>
    %124 = arith.truncf %123 : vector<64x128xf32> to vector<64x128xbf16>
    %c0_26 = arith.constant 0 : index
    %c0_27 = arith.constant 0 : index
    %125 = vector.load %arg7[%c0_26, %c0_27] : memref<128x128xbf16, #tpu.memory_space<vmem>>, vector<128x128xbf16>
    %cst_28 = arith.constant dense<0.000000e+00> : vector<64x128xf32>
    %126 = tpu.matmul %124, %125, %cst_28 {dimension_numbers = #tpu.dot_dimension_numbers<[1], [0], [0], [1], [0, 0, 1, 1], [], []>} : vector<64x128xbf16>, vector<128x128xbf16>, vector<64x128xf32> -> vector<64x128xf32>
    %c0_29 = arith.constant 0 : index
    %c0_30 = arith.constant 0 : index
    %127 = vector.load %arg8[%c0_29, %c0_30] : memref<1x128xf32, #tpu.memory_space<vmem>>, vector<1x128xf32>
    %128 = vector.broadcast %127 : vector<1x128xf32> to vector<64x128xf32>
    %129 = arith.addf %126, %128 : vector<64x128xf32>
    %130 = math.tanh %129 : vector<64x128xf32>
    %c0_i32_31 = arith.constant 0 : i32
    %131 = vector.broadcast %c0_i32_31 : i32 to vector<64x1xi32>
    %132 = arith.cmpi sgt, %2, %131 : vector<64x1xi32>
    %cst_32 = arith.constant 0.000000e+00 : f32
    %133 = vector.shape_cast %132 : vector<64x1xi1> to vector<64x1xi1>
    %134 = vector.broadcast %133 : vector<64x1xi1> to vector<64x128xi1>
    %135 = vector.broadcast %cst_32 : f32 to vector<64x128xf32>
    %136 = arith.select %134, %130, %135 : vector<64x128xi1>, vector<64x128xf32>
    %c0_33 = arith.constant 0 : index
    %c0_34 = arith.constant 0 : index
    %137 = vector.load %arg9[%c0_33, %c0_34] : memref<64x128xf32, #tpu.memory_space<vmem>>, vector<64x128xf32>
    tpu.vector_store %arg9[%c0_33, %c0_34], %136 {strides = array<i32>} : memref<64x128xf32, #tpu.memory_space<vmem>>, vector<64x128xf32>,
    return
  }
  func.func @transform_0(%arg0: i32) -> (i32, i32) {
    %c0_i32 = arith.constant 0 : i32
    %c0_i32_0 = arith.constant 0 : i32
    return %arg0, %c0_i32 : i32, i32
  }
  func.func @transform_1(%arg0: i32) -> (i32, i32) {
    %c0_i32 = arith.constant 0 : i32
    %c0_i32_0 = arith.constant 0 : i32
    return %arg0, %c0_i32 : i32, i32
  }
  func.func @transform_2(%arg0: i32) -> (i32, i32) {
    %c0_i32 = arith.constant 0 : i32
    %c0_i32_0 = arith.constant 0 : i32
    return %arg0, %c0_i32 : i32, i32
  }
  func.func @transform_3(%arg0: i32) -> (i32, i32) {
    %c0_i32 = arith.constant 0 : i32
    %c0_i32_0 = arith.constant 0 : i32
    %c0_i32_1 = arith.constant 0 : i32
    return %c0_i32, %c0_i32_0 : i32, i32
  }
  func.func @transform_4(%arg0: i32) -> (i32, i32) {
    %c0_i32 = arith.constant 0 : i32
    %c0_i32_0 = arith.constant 0 : i32
    %c0_i32_1 = arith.constant 0 : i32
    return %c0_i32, %c0_i32_0 : i32, i32
  }
  func.func @transform_5(%arg0: i32) -> (i32, i32) {
    %c0_i32 = arith.constant 0 : i32
    %c0_i32_0 = arith.constant 0 : i32
    %c0_i32_1 = arith.constant 0 : i32
    return %c0_i32, %c0_i32_0 : i32, i32
  }
  func.func @transform_6(%arg0: i32) -> (i32, i32) {
    %c0_i32 = arith.constant 0 : i32
    %c0_i32_0 = arith.constant 0 : i32
    %c0_i32_1 = arith.constant 0 : i32
    return %c0_i32, %c0_i32_0 : i32, i32
  }
  func.func @transform_7(%arg0: i32) -> (i32, i32) {
    %c0_i32 = arith.constant 0 : i32
    %c0_i32_0 = arith.constant 0 : i32
    %c0_i32_1 = arith.constant 0 : i32
    return %c0_i32, %c0_i32_0 : i32, i32
  }
  func.func @transform_8(%arg0: i32) -> (i32, i32) {
    %c0_i32 = arith.constant 0 : i32
    %c0_i32_0 = arith.constant 0 : i32
    return %arg0, %c0_i32 : i32, i32
  }
}

</mosaic_0001>

<llo_original>
// kernel: tpu_custom_call.1
$region0: #{tpu_custom_call.1}
  #allocation0 [shape = 'u32[]', space=smem, size = 0x4, offset = 0x4, fixed_abs, tag = 'smem constant byte address 0x4 - core index']
  #allocation1 [shape = 'u32[144,128]{1,0:T(1,128)}', space=vmem, size = 0x12000, scoped, tag = 'internal scratch']
  %s0 = inlined_call_operand.vmem [shape: s32[256,8], index: 0, kind: input, shape index: {}]
  %s1 = inlined_call_operand.vmem [shape: s32[256,1], index: 1, kind: input, shape index: {}]
  %s2 = inlined_call_operand.vmem [shape: s32[64,1], index: 2, kind: input, shape index: {}]
  %s3 = inlined_call_operand.vmem [shape: bf16[128,128], index: 3, kind: input, shape index: {}]
  %s4 = inlined_call_operand.vmem [shape: bf16[128,128], index: 4, kind: input, shape index: {}]
  %s5 = inlined_call_operand.vmem [shape: f32[1,128], index: 5, kind: input, shape index: {}]
  %s6 = inlined_call_operand.vmem [shape: bf16[128,128], index: 6, kind: input, shape index: {}]
  %s7 = inlined_call_operand.vmem [shape: f32[1,128], index: 7, kind: input, shape index: {}]
  %s8 = inlined_call_operand.hbm [shape: f32[64,128], index: 8, kind: output, shape index: {}]
  %s9 = sld [smem:[#allocation0]]
  $region42: #{tpu_custom_call.1} parent=0
    _
  %s11 = ssub.s32 1, %s9
  %s12 = scalar_select 0, %s11, %s9
  $region1: #{tpu_custom_call.1} parent=0
    #allocation2 [shape = 'u8[32768]{0}', space=vmem, size = 0x8000, scoped, tag = 'output window, operand 0, single buffered']
    #allocation3 [shape = 's32[1]{0}', space=sflag, size = 0x4, scoped, tag = 'scoped memory for tpu_custom_call.1']
    %13 = vsyncpa [#allocation3], 0
    // Predicated region
    $region2: #{tpu_custom_call.1} parent=1 // pred_check
      _
    $region3: #{tpu_custom_call.1} parent=1 // pred_check_branch
      %15 = sbr.rel (0) target = $region5
    $region4: #{tpu_custom_call.1} parent=1 // pred_region
      _
    $region5: #{tpu_custom_call.1} parent=1 // pred_fallthru
      _
    // Predicated region
    $region6: #{tpu_custom_call.1} parent=1 // pred_check
      _
    $region7: #{tpu_custom_call.1} parent=1 // pred_check_branch
      %17 = sbr.rel (0) target = $region9
    $region8: #{tpu_custom_call.1} parent=1 // pred_region
      _
    $region9: #{tpu_custom_call.1} parent=1 // pred_fallthru
      _
    // Predicated region
    $region10: #{tpu_custom_call.1} parent=1 // pred_check
      _
    $region11: #{tpu_custom_call.1} parent=1 // pred_check_branch
      %19 = sbr.rel (0) target = $region13
    $region12: #{tpu_custom_call.1} parent=1 // pred_region
      _
    $region13: #{tpu_custom_call.1} parent=1 // pred_fallthru
      _
    // Predicated region
    $region14: #{tpu_custom_call.1} parent=1 // pred_check
      _
    $region15: #{tpu_custom_call.1} parent=1 // pred_check_branch
      %21 = sbr.rel (0) target = $region17
    $region16: #{tpu_custom_call.1} parent=1 // pred_region
      _
    $region17: #{tpu_custom_call.1} parent=1 // pred_fallthru
      _
    // Predicated region
    $region18: #{tpu_custom_call.1} parent=1 // pred_check
      _
    $region19: #{tpu_custom_call.1} parent=1 // pred_check_branch
      %23 = sbr.rel (0) target = $region21
    $region20: #{tpu_custom_call.1} parent=1 // pred_region
      _
    $region21: #{tpu_custom_call.1} parent=1 // pred_fallthru
      _
    // Predicated region
    $region22: #{tpu_custom_call.1} parent=1 // pred_check
      _
    $region23: #{tpu_custom_call.1} parent=1 // pred_check_branch
      %25 = sbr.rel (0) target = $region25
    $region24: #{tpu_custom_call.1} parent=1 // pred_region
      _
    $region25: #{tpu_custom_call.1} parent=1 // pred_fallthru
      _
    // Predicated region
    $region26: #{tpu_custom_call.1} parent=1 // pred_check
      _
    $region27: #{tpu_custom_call.1} parent=1 // pred_check_branch
      %27 = sbr.rel (0) target = $region29
    $region28: #{tpu_custom_call.1} parent=1 // pred_region
      _
    $region29: #{tpu_custom_call.1} parent=1 // pred_fallthru
      _
    // Predicated region
    $region30: #{tpu_custom_call.1} parent=1 // pred_check
      _
    $region31: #{tpu_custom_call.1} parent=1 // pred_check_branch
      %29 = sbr.rel (0) target = $region33
    $region32: #{tpu_custom_call.1} parent=1 // pred_region
      _
    $region33: #{tpu_custom_call.1} parent=1 // pred_fallthru
      _
    %v31 = vld [vmem:[%s0] sm:$0xff]
    %v32 = vld [vmem:[%s0 + $0x8] sm:$0xff]
    %v33 = vld [vmem:[%s0 + $0x10] sm:$0xff]
    %v34 = vld [vmem:[%s0 + $0x18] sm:$0xff]
    %v35 = vld [vmem:[%s0 + $0x20] sm:$0xff]
    %v36 = vld [vmem:[%s0 + $0x28] sm:$0xff]
    %v37 = vld [vmem:[%s0 + $0x30] sm:$0xff]
    %v38 = vld [vmem:[%s0 + $0x38] sm:$0xff]
    %v39 = vld [vmem:[%s0 + $0x40] sm:$0xff]
    %v40 = vld [vmem:[%s0 + $0x48] sm:$0xff]
    %v41 = vld [vmem:[%s0 + $0x50] sm:$0xff]
    %v42 = vld [vmem:[%s0 + $0x58] sm:$0xff]
    %v43 = vld [vmem:[%s0 + $0x60] sm:$0xff]
    %v44 = vld [vmem:[%s0 + $0x68] sm:$0xff]
    %v45 = vld [vmem:[%s0 + $0x70] sm:$0xff]
    %v46 = vld [vmem:[%s0 + $0x78] sm:$0xff]
    %v47 = vld [vmem:[%s0 + $0x80] sm:$0xff]
    %v48 = vld [vmem:[%s0 + $0x88] sm:$0xff]
    %v49 = vld [vmem:[%s0 + $0x90] sm:$0xff]
    %v50 = vld [vmem:[%s0 + $0x98] sm:$0xff]
    %v51 = vld [vmem:[%s0 + $0xa0] sm:$0xff]
    %v52 = vld [vmem:[%s0 + $0xa8] sm:$0xff]
    %v53 = vld [vmem:[%s0 + $0xb0] sm:$0xff]
    %v54 = vld [vmem:[%s0 + $0xb8] sm:$0xff]
    %v55 = vld [vmem:[%s0 + $0xc0] sm:$0xff]
    %v56 = vld [vmem:[%s0 + $0xc8] sm:$0xff]
    %v57 = vld [vmem:[%s0 + $0xd0] sm:$0xff]
    %v58 = vld [vmem:[%s0 + $0xd8] sm:$0xff]
    %v59 = vld [vmem:[%s0 + $0xe0] sm:$0xff]
    %v60 = vld [vmem:[%s0 + $0xe8] sm:$0xff]
    %v61 = vld [vmem:[%s0 + $0xf0] sm:$0xff]
    %v62 = vld [vmem:[%s0 + $0xf8] sm:$0xff]
    %v63 = vld [vmem:[%s1] sm:$0xff]
    %v64 = vld [vmem:[%s1 + $0x8] sm:$0xff]
    %v65 = vld [vmem:[%s1 + $0x10] sm:$0xff]
    %v66 = vld [vmem:[%s1 + $0x18] sm:$0xff]
    %v67 = vld [vmem:[%s1 + $0x20] sm:$0xff]
    %v68 = vld [vmem:[%s1 + $0x28] sm:$0xff]
    %v69 = vld [vmem:[%s1 + $0x30] sm:$0xff]
    %v70 = vld [vmem:[%s1 + $0x38] sm:$0xff]
    %v71 = vld [vmem:[%s1 + $0x40] sm:$0xff]
    %v72 = vld [vmem:[%s1 + $0x48] sm:$0xff]
    %v73 = vld [vmem:[%s1 + $0x50] sm:$0xff]
    %v74 = vld [vmem:[%s1 + $0x58] sm:$0xff]
    %v75 = vld [vmem:[%s1 + $0x60] sm:$0xff]
    %v76 = vld [vmem:[%s1 + $0x68] sm:$0xff]
    %v77 = vld [vmem:[%s1 + $0x70] sm:$0xff]
    %v78 = vld [vmem:[%s1 + $0x78] sm:$0xff]
    %v79 = vld [vmem:[%s1 + $0x80] sm:$0xff]
    %v80 = vld [vmem:[%s1 + $0x88] sm:$0xff]
    %v81 = vld [vmem:[%s1 + $0x90] sm:$0xff]
    %v82 = vld [vmem:[%s1 + $0x98] sm:$0xff]
    %v83 = vld [vmem:[%s1 + $0xa0] sm:$0xff]
    %v84 = vld [vmem:[%s1 + $0xa8] sm:$0xff]
    %v85 = vld [vmem:[%s1 + $0xb0] sm:$0xff]
    %v86 = vld [vmem:[%s1 + $0xb8] sm:$0xff]
    %v87 = vld [vmem:[%s1 + $0xc0] sm:$0xff]
    %v88 = vld [vmem:[%s1 + $0xc8] sm:$0xff]
    %v89 = vld [vmem:[%s1 + $0xd0] sm:$0xff]
    %v90 = vld [vmem:[%s1 + $0xd8] sm:$0xff]
    %v91 = vld [vmem:[%s1 + $0xe0] sm:$0xff]
    %v92 = vld [vmem:[%s1 + $0xe8] sm:$0xff]
    %v93 = vld [vmem:[%s1 + $0xf0] sm:$0xff]
    %v94 = vld [vmem:[%s1 + $0xf8] sm:$0xff]
    %v95 = vld [vmem:[%s2] sm:$0xff]
    %v96 = vld [vmem:[%s2 + $0x8] sm:$0xff]
    %v97 = vld [vmem:[%s2 + $0x10] sm:$0xff]
    %v98 = vld [vmem:[%s2 + $0x18] sm:$0xff]
    %v99 = vld [vmem:[%s2 + $0x20] sm:$0xff]
    %v100 = vld [vmem:[%s2 + $0x28] sm:$0xff]
    %v101 = vld [vmem:[%s2 + $0x30] sm:$0xff]
    %v102 = vld [vmem:[%s2 + $0x38] sm:$0xff]
    %v103 = vlaneseq
    %v104 = vand.u32 %v103, 127
    %vm105 = vcmp.gt.s32.totalorder %v63, 1
    %v106 = vsel %vm105, %v63, 1
    %vm107 = vcmp.gt.s32.totalorder %v64, 1
    %v108 = vsel %vm107, %v64, 1
    %vm109 = vcmp.gt.s32.totalorder %v65, 1
    %v110 = vsel %vm109, %v65, 1
    %vm111 = vcmp.gt.s32.totalorder %v66, 1
    %v112 = vsel %vm111, %v66, 1
    %vm113 = vcmp.gt.s32.totalorder %v67, 1
    %v114 = vsel %vm113, %v67, 1
    %vm115 = vcmp.gt.s32.totalorder %v68, 1
    %v116 = vsel %vm115, %v68, 1
    %vm117 = vcmp.gt.s32.totalorder %v69, 1
    %v118 = vsel %vm117, %v69, 1
    %vm119 = vcmp.gt.s32.totalorder %v70, 1
    %v120 = vsel %vm119, %v70, 1
    %vm121 = vcmp.gt.s32.totalorder %v71, 1
    %v122 = vsel %vm121, %v71, 1
    %vm123 = vcmp.gt.s32.totalorder %v72, 1
    %v124 = vsel %vm123, %v72, 1
    %vm125 = vcmp.gt.s32.totalorder %v73, 1
    %v126 = vsel %vm125, %v73, 1
    %vm127 = vcmp.gt.s32.totalorder %v74, 1
    %v128 = vsel %vm127, %v74, 1
    %vm129 = vcmp.gt.s32.totalorder %v75, 1
    %v130 = vsel %vm129, %v75, 1
    %vm131 = vcmp.gt.s32.totalorder %v76, 1
    %v132 = vsel %vm131, %v76, 1
    %vm133 = vcmp.gt.s32.totalorder %v77, 1
    %v134 = vsel %vm133, %v77, 1
    %vm135 = vcmp.gt.s32.totalorder %v78, 1
    %v136 = vsel %vm135, %v78, 1
    %vm137 = vcmp.gt.s32.totalorder %v79, 1
    %v138 = vsel %vm137, %v79, 1
    %vm139 = vcmp.gt.s32.totalorder %v80, 1
    %v140 = vsel %vm139, %v80, 1
    %vm141 = vcmp.gt.s32.totalorder %v81, 1
    %v142 = vsel %vm141, %v81, 1
    %vm143 = vcmp.gt.s32.totalorder %v82, 1
    %v144 = vsel %vm143, %v82, 1
    %vm145 = vcmp.gt.s32.totalorder %v83, 1
    %v146 = vsel %vm145, %v83, 1
    %vm147 = vcmp.gt.s32.totalorder %v84, 1
    %v148 = vsel %vm147, %v84, 1
    %vm149 = vcmp.gt.s32.totalorder %v85, 1
    %v150 = vsel %vm149, %v85, 1
    %vm151 = vcmp.gt.s32.totalorder %v86, 1
    %v152 = vsel %vm151, %v86, 1
    %vm153 = vcmp.gt.s32.totalorder %v87, 1
    %v154 = vsel %vm153, %v87, 1
    %vm155 = vcmp.gt.s32.totalorder %v88, 1
    %v156 = vsel %vm155, %v88, 1
    %vm157 = vcmp.gt.s32.totalorder %v89, 1
    %v158 = vsel %vm157, %v89, 1
    %vm159 = vcmp.gt.s32.totalorder %v90, 1
    %v160 = vsel %vm159, %v90, 1
    %vm161 = vcmp.gt.s32.totalorder %v91, 1
    %v162 = vsel %vm161, %v91, 1
    %vm163 = vcmp.gt.s32.totalorder %v92, 1
    %v164 = vsel %vm163, %v92, 1
    %vm165 = vcmp.gt.s32.totalorder %v93, 1
    %v166 = vsel %vm165, %v93, 1
    %vm167 = vcmp.gt.s32.totalorder %v94, 1
    %v168 = vsel %vm167, %v94, 1
    %v169 = vcvt.s32.f32 %v106
    %v170 = vcvt.s32.f32 %v108
    %v171 = vcvt.s32.f32 %v110
    %v172 = vcvt.s32.f32 %v112
    %v173 = vcvt.s32.f32 %v114
    %v174 = vcvt.s32.f32 %v116
    %v175 = vcvt.s32.f32 %v118
    %v176 = vcvt.s32.f32 %v120
    %v177 = vcvt.s32.f32 %v122
    %v178 = vcvt.s32.f32 %v124
    %v179 = vcvt.s32.f32 %v126
    %v180 = vcvt.s32.f32 %v128
    %v181 = vcvt.s32.f32 %v130
    %v182 = vcvt.s32.f32 %v132
    %v183 = vcvt.s32.f32 %v134
    %v184 = vcvt.s32.f32 %v136
    %v185 = vcvt.s32.f32 %v138
    %v186 = vcvt.s32.f32 %v140
    %v187 = vcvt.s32.f32 %v142
    %v188 = vcvt.s32.f32 %v144
    %v189 = vcvt.s32.f32 %v146
    %v190 = vcvt.s32.f32 %v148
    %v191 = vcvt.s32.f32 %v150
    %v192 = vcvt.s32.f32 %v152
    %v193 = vcvt.s32.f32 %v154
    %v194 = vcvt.s32.f32 %v156
    %v195 = vcvt.s32.f32 %v158
    %v196 = vcvt.s32.f32 %v160
    %v197 = vcvt.s32.f32 %v162
    %v198 = vcvt.s32.f32 %v164
    %v199 = vcvt.s32.f32 %v166
    %v200 = vcvt.s32.f32 %v168
    %v201 = vrcp.pop %v169
    %v202 = vrcp.pop %v170
    %v203 = vrcp.pop %v171
    %v204 = vrcp.pop %v172
    %v205 = vrcp.pop %v173
    %v206 = vrcp.pop %v174
    %v207 = vrcp.pop %v175
    %v208 = vrcp.pop %v176
    %v209 = vrcp.pop %v177
    %v210 = vrcp.pop %v178
    %v211 = vrcp.pop %v179
    %v212 = vrcp.pop %v180
    %v213 = vrcp.pop %v181
    %v214 = vrcp.pop %v182
    %v215 = vrcp.pop %v183
    %v216 = vrcp.pop %v184
    %v217 = vrcp.pop %v185
    %v218 = vrcp.pop %v186
    %v219 = vrcp.pop %v187
    %v220 = vrcp.pop %v188
    %v221 = vrcp.pop %v189
    %v222 = vrcp.pop %v190
    %v223 = vrcp.pop %v191
    %v224 = vrcp.pop %v192
    %v225 = vrcp.pop %v193
    %v226 = vrcp.pop %v194
    %v227 = vrcp.pop %v195
    %v228 = vrcp.pop %v196
    %v229 = vrcp.pop %v197
    %v230 = vrcp.pop %v198
    %v231 = vrcp.pop %v199
    %v232 = vrcp.pop %v200
    %233 = vset.pattern.permute.xlu0 0
    %234 = vperm.xlu0 %233, %v63
    %v235 = vpop.permute.xlu0 %234
    %236 = vset.pattern.permute.xlu0 0
    %237 = vperm.xlu0 %236, %v64
    %v238 = vpop.permute.xlu0 %237
    %239 = vset.pattern.permute.xlu0 0
    %240 = vperm.xlu0 %239, %v65
    %v241 = vpop.permute.xlu0 %240
    %242 = vset.pattern.permute.xlu0 0
    %243 = vperm.xlu0 %242, %v66
    %v244 = vpop.permute.xlu0 %243
    %245 = vset.pattern.permute.xlu0 0
    %246 = vperm.xlu0 %245, %v67
    %v247 = vpop.permute.xlu0 %246
    %248 = vset.pattern.permute.xlu0 0
    %249 = vperm.xlu0 %248, %v68
    %v250 = vpop.permute.xlu0 %249
    %251 = vset.pattern.permute.xlu0 0
    %252 = vperm.xlu0 %251, %v69
    %v253 = vpop.permute.xlu0 %252
    %254 = vset.pattern.permute.xlu0 0
    %255 = vperm.xlu0 %254, %v70
    %v256 = vpop.permute.xlu0 %255
    %257 = vset.pattern.permute.xlu0 0
    %258 = vperm.xlu0 %257, %v71
    %v259 = vpop.permute.xlu0 %258
    %260 = vset.pattern.permute.xlu0 0
    %261 = vperm.xlu0 %260, %v72
    %v262 = vpop.permute.xlu0 %261
    %263 = vset.pattern.permute.xlu0 0
    %264 = vperm.xlu0 %263, %v73
    %v265 = vpop.permute.xlu0 %264
    %266 = vset.pattern.permute.xlu0 0
    %267 = vperm.xlu0 %266, %v74
    %v268 = vpop.permute.xlu0 %267
    %269 = vset.pattern.permute.xlu0 0
    %270 = vperm.xlu0 %269, %v75
    %v271 = vpop.permute.xlu0 %270
    %272 = vset.pattern.permute.xlu0 0
    %273 = vperm.xlu0 %272, %v76
    %v274 = vpop.permute.xlu0 %273
    %275 = vset.pattern.permute.xlu0 0
    %276 = vperm.xlu0 %275, %v77
    %v277 = vpop.permute.xlu0 %276
    %278 = vset.pattern.permute.xlu0 0
    %279 = vperm.xlu0 %278, %v78
    %v280 = vpop.permute.xlu0 %279
    %281 = vset.pattern.permute.xlu0 0
    %282 = vperm.xlu0 %281, %v79
    %v283 = vpop.permute.xlu0 %282
    %284 = vset.pattern.permute.xlu0 0
    %285 = vperm.xlu0 %284, %v80
    %v286 = vpop.permute.xlu0 %285
    %287 = vset.pattern.permute.xlu0 0
    %288 = vperm.xlu0 %287, %v81
    %v289 = vpop.permute.xlu0 %288
    %290 = vset.pattern.permute.xlu0 0
    %291 = vperm.xlu0 %290, %v82
    %v292 = vpop.permute.xlu0 %291
    %293 = vset.pattern.permute.xlu0 0
    %294 = vperm.xlu0 %293, %v83
    %v295 = vpop.permute.xlu0 %294
    %296 = vset.pattern.permute.xlu0 0
    %297 = vperm.xlu0 %296, %v84
    %v298 = vpop.permute.xlu0 %297
    %299 = vset.pattern.permute.xlu0 0
    %300 = vperm.xlu0 %299, %v85
    %v301 = vpop.permute.xlu0 %300
    %302 = vset.pattern.permute.xlu0 0
    %303 = vperm.xlu0 %302, %v86
    %v304 = vpop.permute.xlu0 %303
    %305 = vset.pattern.permute.xlu0 0
    %306 = vperm.xlu0 %305, %v87
    %v307 = vpop.permute.xlu0 %306
    %308 = vset.pattern.permute.xlu0 0
    %309 = vperm.xlu0 %308, %v88
    %v310 = vpop.permute.xlu0 %309
    %311 = vset.pattern.permute.xlu0 0
    %312 = vperm.xlu0 %311, %v89
    %v313 = vpop.permute.xlu0 %312
    %314 = vset.pattern.permute.xlu0 0
    %315 = vperm.xlu0 %314, %v90
    %v316 = vpop.permute.xlu0 %315
    %317 = vset.pattern.permute.xlu0 0
    %318 = vperm.xlu0 %317, %v91
    %v319 = vpop.permute.xlu0 %318
    %320 = vset.pattern.permute.xlu0 0
    %321 = vperm.xlu0 %320, %v92
    %v322 = vpop.permute.xlu0 %321
    %323 = vset.pattern.permute.xlu0 0
    %324 = vperm.xlu0 %323, %v93
    %v325 = vpop.permute.xlu0 %324
    %326 = vset.pattern.permute.xlu0 0
    %327 = vperm.xlu0 %326, %v94
    %v328 = vpop.permute.xlu0 %327
    %vm329 = vcmp.lt.s32.totalorder %v104, %v235
    %vm330 = vcmp.lt.s32.totalorder %v104, %v238
    %vm331 = vcmp.lt.s32.totalorder %v104, %v241
    %vm332 = vcmp.lt.s32.totalorder %v104, %v244
    %vm333 = vcmp.lt.s32.totalorder %v104, %v247
    %vm334 = vcmp.lt.s32.totalorder %v104, %v250
    %vm335 = vcmp.lt.s32.totalorder %v104, %v253
    %vm336 = vcmp.lt.s32.totalorder %v104, %v256
    %vm337 = vcmp.lt.s32.totalorder %v104, %v259
    %vm338 = vcmp.lt.s32.totalorder %v104, %v262
    %vm339 = vcmp.lt.s32.totalorder %v104, %v265
    %vm340 = vcmp.lt.s32.totalorder %v104, %v268
    %vm341 = vcmp.lt.s32.totalorder %v104, %v271
    %vm342 = vcmp.lt.s32.totalorder %v104, %v274
    %vm343 = vcmp.lt.s32.totalorder %v104, %v277
    %vm344 = vcmp.lt.s32.totalorder %v104, %v280
    %vm345 = vcmp.lt.s32.totalorder %v104, %v283
    %vm346 = vcmp.lt.s32.totalorder %v104, %v286
    %vm347 = vcmp.lt.s32.totalorder %v104, %v289
    %vm348 = vcmp.lt.s32.totalorder %v104, %v292
    %vm349 = vcmp.lt.s32.totalorder %v104, %v295
    %vm350 = vcmp.lt.s32.totalorder %v104, %v298
    %vm351 = vcmp.lt.s32.totalorder %v104, %v301
    %vm352 = vcmp.lt.s32.totalorder %v104, %v304
    %vm353 = vcmp.lt.s32.totalorder %v104, %v307
    %vm354 = vcmp.lt.s32.totalorder %v104, %v310
    %vm355 = vcmp.lt.s32.totalorder %v104, %v313
    %vm356 = vcmp.lt.s32.totalorder %v104, %v316
    %vm357 = vcmp.lt.s32.totalorder %v104, %v319
    %vm358 = vcmp.lt.s32.totalorder %v104, %v322
    %vm359 = vcmp.lt.s32.totalorder %v104, %v325
    %vm360 = vcmp.lt.s32.totalorder %v104, %v328
    %362 = vset.pattern.permute.xlu0 0
    %363 = vperm.xlu0 %362, %v201
    %v364 = vpop.permute.xlu0 %363
    %367 = vset.pattern.permute.xlu0 0
    %368 = vperm.xlu0 %367, %v202
    %v369 = vpop.permute.xlu0 %368
    %372 = vset.pattern.permute.xlu0 0
    %373 = vperm.xlu0 %372, %v203
    %v374 = vpop.permute.xlu0 %373
    %377 = vset.pattern.permute.xlu0 0
    %378 = vperm.xlu0 %377, %v204
    %v379 = vpop.permute.xlu0 %378
    %382 = vset.pattern.permute.xlu0 0
    %383 = vperm.xlu0 %382, %v205
    %v384 = vpop.permute.xlu0 %383
    %387 = vset.pattern.permute.xlu0 0
    %388 = vperm.xlu0 %387, %v206
    %v389 = vpop.permute.xlu0 %388
    %392 = vset.pattern.permute.xlu0 0
    %393 = vperm.xlu0 %392, %v207
    %v394 = vpop.permute.xlu0 %393
    %397 = vset.pattern.permute.xlu0 0
    %398 = vperm.xlu0 %397, %v208
    %v399 = vpop.permute.xlu0 %398
    %402 = vset.pattern.permute.xlu0 0
    %403 = vperm.xlu0 %402, %v209
    %v404 = vpop.permute.xlu0 %403
    %407 = vset.pattern.permute.xlu0 0
    %408 = vperm.xlu0 %407, %v210
    %v409 = vpop.permute.xlu0 %408
    %412 = vset.pattern.permute.xlu0 0
    %413 = vperm.xlu0 %412, %v211
    %v414 = vpop.permute.xlu0 %413
    %417 = vset.pattern.permute.xlu0 0
    %418 = vperm.xlu0 %417, %v212
    %v419 = vpop.permute.xlu0 %418
    %422 = vset.pattern.permute.xlu0 0
    %423 = vperm.xlu0 %422, %v213
    %v424 = vpop.permute.xlu0 %423
    %427 = vset.pattern.permute.xlu0 0
    %428 = vperm.xlu0 %427, %v214
    %v429 = vpop.permute.xlu0 %428
    %432 = vset.pattern.permute.xlu0 0
    %433 = vperm.xlu0 %432, %v215
    %v434 = vpop.permute.xlu0 %433
    %437 = vset.pattern.permute.xlu0 0
    %438 = vperm.xlu0 %437, %v216
    %v439 = vpop.permute.xlu0 %438
    %442 = vset.pattern.permute.xlu0 0
    %443 = vperm.xlu0 %442, %v217
    %v444 = vpop.permute.xlu0 %443
    %447 = vset.pattern.permute.xlu0 0
    %448 = vperm.xlu0 %447, %v218
    %v449 = vpop.permute.xlu0 %448
    %452 = vset.pattern.permute.xlu0 0
    %453 = vperm.xlu0 %452, %v219
    %v454 = vpop.permute.xlu0 %453
    %457 = vset.pattern.permute.xlu0 0
    %458 = vperm.xlu0 %457, %v220
    %v459 = vpop.permute.xlu0 %458
    %462 = vset.pattern.permute.xlu0 0
    %463 = vperm.xlu0 %462, %v221
    %v464 = vpop.permute.xlu0 %463
    %467 = vset.pattern.permute.xlu0 0
    %468 = vperm.xlu0 %467, %v222
    %v469 = vpop.permute.xlu0 %468
    %472 = vset.pattern.permute.xlu0 0
    %473 = vperm.xlu0 %472, %v223
    %v474 = vpop.permute.xlu0 %473
    %477 = vset.pattern.permute.xlu0 0
    %478 = vperm.xlu0 %477, %v224
    %v479 = vpop.permute.xlu0 %478
    %482 = vset.pattern.permute.xlu0 0
    %483 = vperm.xlu0 %482, %v225
    %v484 = vpop.permute.xlu0 %483
    %487 = vset.pattern.permute.xlu0 0
    %488 = vperm.xlu0 %487, %v226
    %v489 = vpop.permute.xlu0 %488
    %492 = vset.pattern.permute.xlu0 0
    %493 = vperm.xlu0 %492, %v227
    %v494 = vpop.permute.xlu0 %493
    %497 = vset.pattern.permute.xlu0 0
    %498 = vperm.xlu0 %497, %v228
    %v499 = vpop.permute.xlu0 %498
    %502 = vset.pattern.permute.xlu0 0
    %503 = vperm.xlu0 %502, %v229
    %v504 = vpop.permute.xlu0 %503
    %507 = vset.pattern.permute.xlu0 0
    %508 = vperm.xlu0 %507, %v230
    %v509 = vpop.permute.xlu0 %508
    %512 = vset.pattern.permute.xlu0 0
    %513 = vperm.xlu0 %512, %v231
    %v514 = vpop.permute.xlu0 %513
    %517 = vset.pattern.permute.xlu0 0
    %518 = vperm.xlu0 %517, %v232
    %v519 = vpop.permute.xlu0 %518
    %v521 = vsel %vm329, %v364, 0.0
    %v522 = vsel %vm330, %v369, 0.0
    %v523 = vsel %vm331, %v374, 0.0
    %v524 = vsel %vm332, %v379, 0.0
    %v525 = vsel %vm333, %v384, 0.0
    %v526 = vsel %vm334, %v389, 0.0
    %v527 = vsel %vm335, %v394, 0.0
    %v528 = vsel %vm336, %v399, 0.0
    %v529 = vsel %vm337, %v404, 0.0
    %v530 = vsel %vm338, %v409, 0.0
    %v531 = vsel %vm339, %v414, 0.0
    %v532 = vsel %vm340, %v419, 0.0
    %v533 = vsel %vm341, %v424, 0.0
    %v534 = vsel %vm342, %v429, 0.0
    %v535 = vsel %vm343, %v434, 0.0
    %v536 = vsel %vm344, %v439, 0.0
    %v537 = vsel %vm345, %v444, 0.0
    %v538 = vsel %vm346, %v449, 0.0
    %v539 = vsel %vm347, %v454, 0.0
    %v540 = vsel %vm348, %v459, 0.0
    %v541 = vsel %vm349, %v464, 0.0
    %v542 = vsel %vm350, %v469, 0.0
    %v543 = vsel %vm351, %v474, 0.0
    %v544 = vsel %vm352, %v479, 0.0
    %v545 = vsel %vm353, %v484, 0.0
    %v546 = vsel %vm354, %v489, 0.0
    %v547 = vsel %vm355, %v494, 0.0
    %v548 = vsel %vm356, %v499, 0.0
    %v549 = vsel %vm357, %v504, 0.0
    %v550 = vsel %vm358, %v509, 0.0
    %v551 = vsel %vm359, %v514, 0.0
    %v552 = vsel %vm360, %v519, 0.0
    %553 = vset.pattern.permute.xlu0 0
    %554 = vperm.xlu0 %553, %v31
    %v555 = vpop.permute.xlu0 %554
    %556 = vset.pattern.permute.xlu0 0
    %557 = vperm.xlu0 %556, %v32
    %v558 = vpop.permute.xlu0 %557
    %559 = vset.pattern.permute.xlu0 0
    %560 = vperm.xlu0 %559, %v33
    %v561 = vpop.permute.xlu0 %560
    %562 = vset.pattern.permute.xlu0 0
    %563 = vperm.xlu0 %562, %v34
    %v564 = vpop.permute.xlu0 %563
    %565 = vset.pattern.permute.xlu0 0
    %566 = vperm.xlu0 %565, %v35
    %v567 = vpop.permute.xlu0 %566
    %568 = vset.pattern.permute.xlu0 0
    %569 = vperm.xlu0 %568, %v36
    %v570 = vpop.permute.xlu0 %569
    %571 = vset.pattern.permute.xlu0 0
    %572 = vperm.xlu0 %571, %v37
    %v573 = vpop.permute.xlu0 %572
    %574 = vset.pattern.permute.xlu0 0
    %575 = vperm.xlu0 %574, %v38
    %v576 = vpop.permute.xlu0 %575
    %577 = vset.pattern.permute.xlu0 0
    %578 = vperm.xlu0 %577, %v39
    %v579 = vpop.permute.xlu0 %578
    %580 = vset.pattern.permute.xlu0 0
    %581 = vperm.xlu0 %580, %v40
    %v582 = vpop.permute.xlu0 %581
    %583 = vset.pattern.permute.xlu0 0
    %584 = vperm.xlu0 %583, %v41
    %v585 = vpop.permute.xlu0 %584
    %586 = vset.pattern.permute.xlu0 0
    %587 = vperm.xlu0 %586, %v42
    %v588 = vpop.permute.xlu0 %587
    %589 = vset.pattern.permute.xlu0 0
    %590 = vperm.xlu0 %589, %v43
    %v591 = vpop.permute.xlu0 %590
    %592 = vset.pattern.permute.xlu0 0
    %593 = vperm.xlu0 %592, %v44
    %v594 = vpop.permute.xlu0 %593
    %595 = vset.pattern.permute.xlu0 0
    %596 = vperm.xlu0 %595, %v45
    %v597 = vpop.permute.xlu0 %596
    %598 = vset.pattern.permute.xlu0 0
    %599 = vperm.xlu0 %598, %v46
    %v600 = vpop.permute.xlu0 %599
    %601 = vset.pattern.permute.xlu0 0
    %602 = vperm.xlu0 %601, %v47
    %v603 = vpop.permute.xlu0 %602
    %604 = vset.pattern.permute.xlu0 0
    %605 = vperm.xlu0 %604, %v48
    %v606 = vpop.permute.xlu0 %605
    %607 = vset.pattern.permute.xlu0 0
    %608 = vperm.xlu0 %607, %v49
    %v609 = vpop.permute.xlu0 %608
    %610 = vset.pattern.permute.xlu0 0
    %611 = vperm.xlu0 %610, %v50
    %v612 = vpop.permute.xlu0 %611
    %613 = vset.pattern.permute.xlu0 0
    %614 = vperm.xlu0 %613, %v51
    %v615 = vpop.permute.xlu0 %614
    %616 = vset.pattern.permute.xlu0 0
    %617 = vperm.xlu0 %616, %v52
    %v618 = vpop.permute.xlu0 %617
    %619 = vset.pattern.permute.xlu0 0
    %620 = vperm.xlu0 %619, %v53
    %v621 = vpop.permute.xlu0 %620
    %622 = vset.pattern.permute.xlu0 0
    %623 = vperm.xlu0 %622, %v54
    %v624 = vpop.permute.xlu0 %623
    %625 = vset.pattern.permute.xlu0 0
    %626 = vperm.xlu0 %625, %v55
    %v627 = vpop.permute.xlu0 %626
    %628 = vset.pattern.permute.xlu0 0
    %629 = vperm.xlu0 %628, %v56
    %v630 = vpop.permute.xlu0 %629
    %631 = vset.pattern.permute.xlu0 0
    %632 = vperm.xlu0 %631, %v57
    %v633 = vpop.permute.xlu0 %632
    %634 = vset.pattern.permute.xlu0 0
    %635 = vperm.xlu0 %634, %v58
    %v636 = vpop.permute.xlu0 %635
    %637 = vset.pattern.permute.xlu0 0
    %638 = vperm.xlu0 %637, %v59
    %v639 = vpop.permute.xlu0 %638
    %640 = vset.pattern.permute.xlu0 0
    %641 = vperm.xlu0 %640, %v60
    %v642 = vpop.permute.xlu0 %641
    %643 = vset.pattern.permute.xlu0 0
    %644 = vperm.xlu0 %643, %v61
    %v645 = vpop.permute.xlu0 %644
    %646 = vset.pattern.permute.xlu0 0
    %647 = vperm.xlu0 %646, %v62
    %v648 = vpop.permute.xlu0 %647
    %vm649 = vcmp.eq.s32.totalorder %v104, %v555
    %vm650 = vcmp.eq.s32.totalorder %v104, %v558
    %vm651 = vcmp.eq.s32.totalorder %v104, %v561
    %vm652 = vcmp.eq.s32.totalorder %v104, %v564
    %vm653 = vcmp.eq.s32.totalorder %v104, %v567
    %vm654 = vcmp.eq.s32.totalorder %v104, %v570
    %vm655 = vcmp.eq.s32.totalorder %v104, %v573
    %vm656 = vcmp.eq.s32.totalorder %v104, %v576
    %vm657 = vcmp.eq.s32.totalorder %v104, %v579
    %vm658 = vcmp.eq.s32.totalorder %v104, %v582
    %vm659 = vcmp.eq.s32.totalorder %v104, %v585
    %vm660 = vcmp.eq.s32.totalorder %v104, %v588
    %vm661 = vcmp.eq.s32.totalorder %v104, %v591
    %vm662 = vcmp.eq.s32.totalorder %v104, %v594
    %vm663 = vcmp.eq.s32.totalorder %v104, %v597
    %vm664 = vcmp.eq.s32.totalorder %v104, %v600
    %vm665 = vcmp.eq.s32.totalorder %v104, %v603
    %vm666 = vcmp.eq.s32.totalorder %v104, %v606
    %vm667 = vcmp.eq.s32.totalorder %v104, %v609
    %vm668 = vcmp.eq.s32.totalorder %v104, %v612
    %vm669 = vcmp.eq.s32.totalorder %v104, %v615
    %vm670 = vcmp.eq.s32.totalorder %v104, %v618
    %vm671 = vcmp.eq.s32.totalorder %v104, %v621
    %vm672 = vcmp.eq.s32.totalorder %v104, %v624
    %vm673 = vcmp.eq.s32.totalorder %v104, %v627
    %vm674 = vcmp.eq.s32.totalorder %v104, %v630
    %vm675 = vcmp.eq.s32.totalorder %v104, %v633
    %vm676 = vcmp.eq.s32.totalorder %v104, %v636
    %vm677 = vcmp.eq.s32.totalorder %v104, %v639
    %vm678 = vcmp.eq.s32.totalorder %v104, %v642
    %vm679 = vcmp.eq.s32.totalorder %v104, %v645
    %vm680 = vcmp.eq.s32.totalorder %v104, %v648
    %682 = vset.pattern.permute.xlu0 0
    %683 = vperm.xlu0 %682, %v521
    %v684 = vpop.permute.xlu0 %683
    %687 = vset.pattern.permute.xlu0 0
    %688 = vperm.xlu0 %687, %v522
    %v689 = vpop.permute.xlu0 %688
    %692 = vset.pattern.permute.xlu0 0
    %693 = vperm.xlu0 %692, %v523
    %v694 = vpop.permute.xlu0 %693
    %697 = vset.pattern.permute.xlu0 0
    %698 = vperm.xlu0 %697, %v524
    %v699 = vpop.permute.xlu0 %698
    %702 = vset.pattern.permute.xlu0 0
    %703 = vperm.xlu0 %702, %v525
    %v704 = vpop.permute.xlu0 %703
    %707 = vset.pattern.permute.xlu0 0
    %708 = vperm.xlu0 %707, %v526
    %v709 = vpop.permute.xlu0 %708
    %712 = vset.pattern.permute.xlu0 0
    %713 = vperm.xlu0 %712, %v527
    %v714 = vpop.permute.xlu0 %713
    %717 = vset.pattern.permute.xlu0 0
    %718 = vperm.xlu0 %717, %v528
    %v719 = vpop.permute.xlu0 %718
    %722 = vset.pattern.permute.xlu0 0
    %723 = vperm.xlu0 %722, %v529
    %v724 = vpop.permute.xlu0 %723
    %727 = vset.pattern.permute.xlu0 0
    %728 = vperm.xlu0 %727, %v530
    %v729 = vpop.permute.xlu0 %728
    %732 = vset.pattern.permute.xlu0 0
    %733 = vperm.xlu0 %732, %v531
    %v734 = vpop.permute.xlu0 %733
    %737 = vset.pattern.permute.xlu0 0
    %738 = vperm.xlu0 %737, %v532
    %v739 = vpop.permute.xlu0 %738
    %742 = vset.pattern.permute.xlu0 0
    %743 = vperm.xlu0 %742, %v533
    %v744 = vpop.permute.xlu0 %743
    %747 = vset.pattern.permute.xlu0 0
    %748 = vperm.xlu0 %747, %v534
    %v749 = vpop.permute.xlu0 %748
    %752 = vset.pattern.permute.xlu0 0
    %753 = vperm.xlu0 %752, %v535
    %v754 = vpop.permute.xlu0 %753
    %757 = vset.pattern.permute.xlu0 0
    %758 = vperm.xlu0 %757, %v536
    %v759 = vpop.permute.xlu0 %758
    %762 = vset.pattern.permute.xlu0 0
    %763 = vperm.xlu0 %762, %v537
    %v764 = vpop.permute.xlu0 %763
    %767 = vset.pattern.permute.xlu0 0
    %768 = vperm.xlu0 %767, %v538
    %v769 = vpop.permute.xlu0 %768
    %772 = vset.pattern.permute.xlu0 0
    %773 = vperm.xlu0 %772, %v539
    %v774 = vpop.permute.xlu0 %773
    %777 = vset.pattern.permute.xlu0 0
    %778 = vperm.xlu0 %777, %v540
    %v779 = vpop.permute.xlu0 %778
    %782 = vset.pattern.permute.xlu0 0
    %783 = vperm.xlu0 %782, %v541
    %v784 = vpop.permute.xlu0 %783
    %787 = vset.pattern.permute.xlu0 0
    %788 = vperm.xlu0 %787, %v542
    %v789 = vpop.permute.xlu0 %788
    %792 = vset.pattern.permute.xlu0 0
    %793 = vperm.xlu0 %792, %v543
    %v794 = vpop.permute.xlu0 %793
    %797 = vset.pattern.permute.xlu0 0
    %798 = vperm.xlu0 %797, %v544
    %v799 = vpop.permute.xlu0 %798
    %802 = vset.pattern.permute.xlu0 0
    %803 = vperm.xlu0 %802, %v545
    %v804 = vpop.permute.xlu0 %803
    %807 = vset.pattern.permute.xlu0 0
    %808 = vperm.xlu0 %807, %v546
    %v809 = vpop.permute.xlu0 %808
    %812 = vset.pattern.permute.xlu0 0
    %813 = vperm.xlu0 %812, %v547
    %v814 = vpop.permute.xlu0 %813
    %817 = vset.pattern.permute.xlu0 0
    %818 = vperm.xlu0 %817, %v548
    %v819 = vpop.permute.xlu0 %818
    %822 = vset.pattern.permute.xlu0 0
    %823 = vperm.xlu0 %822, %v549
    %v824 = vpop.permute.xlu0 %823
    %827 = vset.pattern.permute.xlu0 0
    %828 = vperm.xlu0 %827, %v550
    %v829 = vpop.permute.xlu0 %828
    %832 = vset.pattern.permute.xlu0 0
    %833 = vperm.xlu0 %832, %v551
    %v834 = vpop.permute.xlu0 %833
    %837 = vset.pattern.permute.xlu0 0
    %838 = vperm.xlu0 %837, %v552
    %v839 = vpop.permute.xlu0 %838
    %v841 = vsel %vm649, %v684, 0.0
    %v842 = vsel %vm650, %v689, 0.0
    %v843 = vsel %vm651, %v694, 0.0
    %v844 = vsel %vm652, %v699, 0.0
    %v845 = vsel %vm653, %v704, 0.0
    %v846 = vsel %vm654, %v709, 0.0
    %v847 = vsel %vm655, %v714, 0.0
    %v848 = vsel %vm656, %v719, 0.0
    %v849 = vsel %vm657, %v724, 0.0
    %v850 = vsel %vm658, %v729, 0.0
    %v851 = vsel %vm659, %v734, 0.0
    %v852 = vsel %vm660, %v739, 0.0
    %v853 = vsel %vm661, %v744, 0.0
    %v854 = vsel %vm662, %v749, 0.0
    %v855 = vsel %vm663, %v754, 0.0
    %v856 = vsel %vm664, %v759, 0.0
    %v857 = vsel %vm665, %v764, 0.0
    %v858 = vsel %vm666, %v769, 0.0
    %v859 = vsel %vm667, %v774, 0.0
    %v860 = vsel %vm668, %v779, 0.0
    %v861 = vsel %vm669, %v784, 0.0
    %v862 = vsel %vm670, %v789, 0.0
    %v863 = vsel %vm671, %v794, 0.0
    %v864 = vsel %vm672, %v799, 0.0
    %v865 = vsel %vm673, %v804, 0.0
    %v866 = vsel %vm674, %v809, 0.0
    %v867 = vsel %vm675, %v814, 0.0
    %v868 = vsel %vm676, %v819, 0.0
    %v869 = vsel %vm677, %v824, 0.0
    %v870 = vsel %vm678, %v829, 0.0
    %v871 = vsel %vm679, %v834, 0.0
    %v872 = vsel %vm680, %v839, 0.0
    %v873 = vadd.f32 %v841, 0.0
    %v874 = vadd.f32 %v842, 0.0
    %v875 = vadd.f32 %v843, 0.0
    %v876 = vadd.f32 %v844, 0.0
    %v877 = vadd.f32 %v845, 0.0
    %v878 = vadd.f32 %v846, 0.0
    %v879 = vadd.f32 %v847, 0.0
    %v880 = vadd.f32 %v848, 0.0
    %v881 = vadd.f32 %v849, 0.0
    %v882 = vadd.f32 %v850, 0.0
    %v883 = vadd.f32 %v851, 0.0
    %v884 = vadd.f32 %v852, 0.0
    %v885 = vadd.f32 %v853, 0.0
    %v886 = vadd.f32 %v854, 0.0
    %v887 = vadd.f32 %v855, 0.0
    %v888 = vadd.f32 %v856, 0.0
    %v889 = vadd.f32 %v857, 0.0
    %v890 = vadd.f32 %v858, 0.0
    %v891 = vadd.f32 %v859, 0.0
    %v892 = vadd.f32 %v860, 0.0
    %v893 = vadd.f32 %v861, 0.0
    %v894 = vadd.f32 %v862, 0.0
    %v895 = vadd.f32 %v863, 0.0
    %v896 = vadd.f32 %v864, 0.0
    %v897 = vadd.f32 %v865, 0.0
    %v898 = vadd.f32 %v866, 0.0
    %v899 = vadd.f32 %v867, 0.0
    %v900 = vadd.f32 %v868, 0.0
    %v901 = vadd.f32 %v869, 0.0
    %v902 = vadd.f32 %v870, 0.0
    %v903 = vadd.f32 %v871, 0.0
    %v904 = vadd.f32 %v872, 0.0
    %905 = vset.pattern.permute.xlu0 1
    %906 = vperm.xlu0 %905, %v31
    %v907 = vpop.permute.xlu0 %906
    %908 = vset.pattern.permute.xlu0 1
    %909 = vperm.xlu0 %908, %v32
    %v910 = vpop.permute.xlu0 %909
    %911 = vset.pattern.permute.xlu0 1
    %912 = vperm.xlu0 %911, %v33
    %v913 = vpop.permute.xlu0 %912
    %914 = vset.pattern.permute.xlu0 1
    %915 = vperm.xlu0 %914, %v34
    %v916 = vpop.permute.xlu0 %915
    %917 = vset.pattern.permute.xlu0 1
    %918 = vperm.xlu0 %917, %v35
    %v919 = vpop.permute.xlu0 %918
    %920 = vset.pattern.permute.xlu0 1
    %921 = vperm.xlu0 %920, %v36
    %v922 = vpop.permute.xlu0 %921
    %923 = vset.pattern.permute.xlu0 1
    %924 = vperm.xlu0 %923, %v37
    %v925 = vpop.permute.xlu0 %924
    %926 = vset.pattern.permute.xlu0 1
    %927 = vperm.xlu0 %926, %v38
    %v928 = vpop.permute.xlu0 %927
    %929 = vset.pattern.permute.xlu0 1
    %930 = vperm.xlu0 %929, %v39
    %v931 = vpop.permute.xlu0 %930
    %932 = vset.pattern.permute.xlu0 1
    %933 = vperm.xlu0 %932, %v40
    %v934 = vpop.permute.xlu0 %933
    %935 = vset.pattern.permute.xlu0 1
    %936 = vperm.xlu0 %935, %v41
    %v937 = vpop.permute.xlu0 %936
    %938 = vset.pattern.permute.xlu0 1
    %939 = vperm.xlu0 %938, %v42
    %v940 = vpop.permute.xlu0 %939
    %941 = vset.pattern.permute.xlu0 1
    %942 = vperm.xlu0 %941, %v43
    %v943 = vpop.permute.xlu0 %942
    %944 = vset.pattern.permute.xlu0 1
    %945 = vperm.xlu0 %944, %v44
    %v946 = vpop.permute.xlu0 %945
    %947 = vset.pattern.permute.xlu0 1
    %948 = vperm.xlu0 %947, %v45
    %v949 = vpop.permute.xlu0 %948
    %950 = vset.pattern.permute.xlu0 1
    %951 = vperm.xlu0 %950, %v46
    %v952 = vpop.permute.xlu0 %951
    %953 = vset.pattern.permute.xlu0 1
    %954 = vperm.xlu0 %953, %v47
    %v955 = vpop.permute.xlu0 %954
    %956 = vset.pattern.permute.xlu0 1
    %957 = vperm.xlu0 %956, %v48
    %v958 = vpop.permute.xlu0 %957
    %959 = vset.pattern.permute.xlu0 1
    %960 = vperm.xlu0 %959, %v49
    %v961 = vpop.permute.xlu0 %960
    %962 = vset.pattern.permute.xlu0 1
    %963 = vperm.xlu0 %962, %v50
    %v964 = vpop.permute.xlu0 %963
    %965 = vset.pattern.permute.xlu0 1
    %966 = vperm.xlu0 %965, %v51
    %v967 = vpop.permute.xlu0 %966
    %968 = vset.pattern.permute.xlu0 1
    %969 = vperm.xlu0 %968, %v52
    %v970 = vpop.permute.xlu0 %969
    %971 = vset.pattern.permute.xlu0 1
    %972 = vperm.xlu0 %971, %v53
    %v973 = vpop.permute.xlu0 %972
    %974 = vset.pattern.permute.xlu0 1
    %975 = vperm.xlu0 %974, %v54
    %v976 = vpop.permute.xlu0 %975
    %977 = vset.pattern.permute.xlu0 1
    %978 = vperm.xlu0 %977, %v55
    %v979 = vpop.permute.xlu0 %978
    %980 = vset.pattern.permute.xlu0 1
    %981 = vperm.xlu0 %980, %v56
    %v982 = vpop.permute.xlu0 %981
    %983 = vset.pattern.permute.xlu0 1
    %984 = vperm.xlu0 %983, %v57
    %v985 = vpop.permute.xlu0 %984
    %986 = vset.pattern.permute.xlu0 1
    %987 = vperm.xlu0 %986, %v58
    %v988 = vpop.permute.xlu0 %987
    %989 = vset.pattern.permute.xlu0 1
    %990 = vperm.xlu0 %989, %v59
    %v991 = vpop.permute.xlu0 %990
    %992 = vset.pattern.permute.xlu0 1
    %993 = vperm.xlu0 %992, %v60
    %v994 = vpop.permute.xlu0 %993
    %995 = vset.pattern.permute.xlu0 1
    %996 = vperm.xlu0 %995, %v61
    %v997 = vpop.permute.xlu0 %996
    %998 = vset.pattern.permute.xlu0 1
    %999 = vperm.xlu0 %998, %v62
    %v1000 = vpop.permute.xlu0 %999
    %vm1001 = vcmp.eq.s32.totalorder %v104, %v907
    %vm1002 = vcmp.eq.s32.totalorder %v104, %v910
    %vm1003 = vcmp.eq.s32.totalorder %v104, %v913
    %vm1004 = vcmp.eq.s32.totalorder %v104, %v916
    %vm1005 = vcmp.eq.s32.totalorder %v104, %v919
    %vm1006 = vcmp.eq.s32.totalorder %v104, %v922
    %vm1007 = vcmp.eq.s32.totalorder %v104, %v925
    %vm1008 = vcmp.eq.s32.totalorder %v104, %v928
    %vm1009 = vcmp.eq.s32.totalorder %v104, %v931
    %vm1010 = vcmp.eq.s32.totalorder %v104, %v934
    %vm1011 = vcmp.eq.s32.totalorder %v104, %v937
    %vm1012 = vcmp.eq.s32.totalorder %v104, %v940
    %vm1013 = vcmp.eq.s32.totalorder %v104, %v943
    %vm1014 = vcmp.eq.s32.totalorder %v104, %v946
    %vm1015 = vcmp.eq.s32.totalorder %v104, %v949
    %vm1016 = vcmp.eq.s32.totalorder %v104, %v952
    %vm1017 = vcmp.eq.s32.totalorder %v104, %v955
    %vm1018 = vcmp.eq.s32.totalorder %v104, %v958
    %vm1019 = vcmp.eq.s32.totalorder %v104, %v961
    %vm1020 = vcmp.eq.s32.totalorder %v104, %v964
    %vm1021 = vcmp.eq.s32.totalorder %v104, %v967
    %vm1022 = vcmp.eq.s32.totalorder %v104, %v970
    %vm1023 = vcmp.eq.s32.totalorder %v104, %v973
    %vm1024 = vcmp.eq.s32.totalorder %v104, %v976
    %vm1025 = vcmp.eq.s32.totalorder %v104, %v979
    %vm1026 = vcmp.eq.s32.totalorder %v104, %v982
    %vm1027 = vcmp.eq.s32.totalorder %v104, %v985
    %vm1028 = vcmp.eq.s32.totalorder %v104, %v988
    %vm1029 = vcmp.eq.s32.totalorder %v104, %v991
    %vm1030 = vcmp.eq.s32.totalorder %v104, %v994
    %vm1031 = vcmp.eq.s32.totalorder %v104, %v997
    %vm1032 = vcmp.eq.s32.totalorder %v104, %v1000
    %1033 = vset.pattern.permute.xlu0 1
    %1034 = vperm.xlu0 %1033, %v521
    %v1035 = vpop.permute.xlu0 %1034
    %1037 = vset.pattern.permute.xlu0 1
    %1038 = vperm.xlu0 %1037, %v522
    %v1039 = vpop.permute.xlu0 %1038
    %1041 = vset.pattern.permute.xlu0 1
    %1042 = vperm.xlu0 %1041, %v523
    %v1043 = vpop.permute.xlu0 %1042
    %1045 = vset.pattern.permute.xlu0 1
    %1046 = vperm.xlu0 %1045, %v524
    %v1047 = vpop.permute.xlu0 %1046
    %1049 = vset.pattern.permute.xlu0 1
    %1050 = vperm.xlu0 %1049, %v525
    %v1051 = vpop.permute.xlu0 %1050
    %1053 = vset.pattern.permute.xlu0 1
    %1054 = vperm.xlu0 %1053, %v526
    %v1055 = vpop.permute.xlu0 %1054
    %1057 = vset.pattern.permute.xlu0 1
    %1058 = vperm.xlu0 %1057, %v527
    %v1059 = vpop.permute.xlu0 %1058
    %1061 = vset.pattern.permute.xlu0 1
    %1062 = vperm.xlu0 %1061, %v528
    %v1063 = vpop.permute.xlu0 %1062
    %1065 = vset.pattern.permute.xlu0 1
    %1066 = vperm.xlu0 %1065, %v529
    %v1067 = vpop.permute.xlu0 %1066
    %1069 = vset.pattern.permute.xlu0 1
    %1070 = vperm.xlu0 %1069, %v530
    %v1071 = vpop.permute.xlu0 %1070
    %1073 = vset.pattern.permute.xlu0 1
    %1074 = vperm.xlu0 %1073, %v531
    %v1075 = vpop.permute.xlu0 %1074
    %1077 = vset.pattern.permute.xlu0 1
    %1078 = vperm.xlu0 %1077, %v532
    %v1079 = vpop.permute.xlu0 %1078
    %1081 = vset.pattern.permute.xlu0 1
    %1082 = vperm.xlu0 %1081, %v533
    %v1083 = vpop.permute.xlu0 %1082
    %1085 = vset.pattern.permute.xlu0 1
    %1086 = vperm.xlu0 %1085, %v534
    %v1087 = vpop.permute.xlu0 %1086
    %1089 = vset.pattern.permute.xlu0 1
    %1090 = vperm.xlu0 %1089, %v535
    %v1091 = vpop.permute.xlu0 %1090
    %1093 = vset.pattern.permute.xlu0 1
    %1094 = vperm.xlu0 %1093, %v536
    %v1095 = vpop.permute.xlu0 %1094
    %1097 = vset.pattern.permute.xlu0 1
    %1098 = vperm.xlu0 %1097, %v537
    %v1099 = vpop.permute.xlu0 %1098
    %1101 = vset.pattern.permute.xlu0 1
    %1102 = vperm.xlu0 %1101, %v538
    %v1103 = vpop.permute.xlu0 %1102
    %1105 = vset.pattern.permute.xlu0 1
    %1106 = vperm.xlu0 %1105, %v539
    %v1107 = vpop.permute.xlu0 %1106
    %1109 = vset.pattern.permute.xlu0 1
    %1110 = vperm.xlu0 %1109, %v540
    %v1111 = vpop.permute.xlu0 %1110
    %1113 = vset.pattern.permute.xlu0 1
    %1114 = vperm.xlu0 %1113, %v541
    %v1115 = vpop.permute.xlu0 %1114
    %1117 = vset.pattern.permute.xlu0 1
    %1118 = vperm.xlu0 %1117, %v542
    %v1119 = vpop.permute.xlu0 %1118
    %1121 = vset.pattern.permute.xlu0 1
    %1122 = vperm.xlu0 %1121, %v543
    %v1123 = vpop.permute.xlu0 %1122
    %1125 = vset.pattern.permute.xlu0 1
    %1126 = vperm.xlu0 %1125, %v544
    %v1127 = vpop.permute.xlu0 %1126
    %1129 = vset.pattern.permute.xlu0 1
    %1130 = vperm.xlu0 %1129, %v545
    %v1131 = vpop.permute.xlu0 %1130
    %1133 = vset.pattern.permute.xlu0 1
    %1134 = vperm.xlu0 %1133, %v546
    %v1135 = vpop.permute.xlu0 %1134
    %1137 = vset.pattern.permute.xlu0 1
    %1138 = vperm.xlu0 %1137, %v547
    %v1139 = vpop.permute.xlu0 %1138
    %1141 = vset.pattern.permute.xlu0 1
    %1142 = vperm.xlu0 %1141, %v548
    %v1143 = vpop.permute.xlu0 %1142
    %1145 = vset.pattern.permute.xlu0 1
    %1146 = vperm.xlu0 %1145, %v549
    %v1147 = vpop.permute.xlu0 %1146
    %1149 = vset.pattern.permute.xlu0 1
    %1150 = vperm.xlu0 %1149, %v550
    %v1151 = vpop.permute.xlu0 %1150
    %1153 = vset.pattern.permute.xlu0 1
    %1154 = vperm.xlu0 %1153, %v551
    %v1155 = vpop.permute.xlu0 %1154
    %1157 = vset.pattern.permute.xlu0 1
    %1158 = vperm.xlu0 %1157, %v552
    %v1159 = vpop.permute.xlu0 %1158
    %v1161 = vsel %vm1001, %v1035, 0.0
    %v1162 = vsel %vm1002, %v1039, 0.0
    %v1163 = vsel %vm1003, %v1043, 0.0
    %v1164 = vsel %vm1004, %v1047, 0.0
    %v1165 = vsel %vm1005, %v1051, 0.0
    %v1166 = vsel %vm1006, %v1055, 0.0
    %v1167 = vsel %vm1007, %v1059, 0.0
    %v1168 = vsel %vm1008, %v1063, 0.0
    %v1169 = vsel %vm1009, %v1067, 0.0
    %v1170 = vsel %vm1010, %v1071, 0.0
    %v1171 = vsel %vm1011, %v1075, 0.0
    %v1172 = vsel %vm1012, %v1079, 0.0
    %v1173 = vsel %vm1013, %v1083, 0.0
    %v1174 = vsel %vm1014, %v1087, 0.0
    %v1175 = vsel %vm1015, %v1091, 0.0
    %v1176 = vsel %vm1016, %v1095, 0.0
    %v1177 = vsel %vm1017, %v1099, 0.0
    %v1178 = vsel %vm1018, %v1103, 0.0
    %v1179 = vsel %vm1019, %v1107, 0.0
    %v1180 = vsel %vm1020, %v1111, 0.0
    %v1181 = vsel %vm1021, %v1115, 0.0
    %v1182 = vsel %vm1022, %v1119, 0.0
    %v1183 = vsel %vm1023, %v1123, 0.0
    %v1184 = vsel %vm1024, %v1127, 0.0
    %v1185 = vsel %vm1025, %v1131, 0.0
    %v1186 = vsel %vm1026, %v1135, 0.0
    %v1187 = vsel %vm1027, %v1139, 0.0
    %v1188 = vsel %vm1028, %v1143, 0.0
    %v1189 = vsel %vm1029, %v1147, 0.0
    %v1190 = vsel %vm1030, %v1151, 0.0
    %v1191 = vsel %vm1031, %v1155, 0.0
    %v1192 = vsel %vm1032, %v1159, 0.0
    %v1193 = vadd.f32 %v873, %v1161
    %v1194 = vadd.f32 %v874, %v1162
    %v1195 = vadd.f32 %v875, %v1163
    %v1196 = vadd.f32 %v876, %v1164
    %v1197 = vadd.f32 %v877, %v1165
    %v1198 = vadd.f32 %v878, %v1166
    %v1199 = vadd.f32 %v879, %v1167
    %v1200 = vadd.f32 %v880, %v1168
    %v1201 = vadd.f32 %v881, %v1169
    %v1202 = vadd.f32 %v882, %v1170
    %v1203 = vadd.f32 %v883, %v1171
    %v1204 = vadd.f32 %v884, %v1172
    %v1205 = vadd.f32 %v885, %v1173
    %v1206 = vadd.f32 %v886, %v1174
    %v1207 = vadd.f32 %v887, %v1175
    %v1208 = vadd.f32 %v888, %v1176
    %v1209 = vadd.f32 %v889, %v1177
    %v1210 = vadd.f32 %v890, %v1178
    %v1211 = vadd.f32 %v891, %v1179
    %v1212 = vadd.f32 %v892, %v1180
    %v1213 = vadd.f32 %v893, %v1181
    %v1214 = vadd.f32 %v894, %v1182
    %v1215 = vadd.f32 %v895, %v1183
    %v1216 = vadd.f32 %v896, %v1184
    %v1217 = vadd.f32 %v897, %v1185
    %v1218 = vadd.f32 %v898, %v1186
    %v1219 = vadd.f32 %v899, %v1187
    %v1220 = vadd.f32 %v900, %v1188
    %v1221 = vadd.f32 %v901, %v1189
    %v1222 = vadd.f32 %v902, %v1190
    %v1223 = vadd.f32 %v903, %v1191
    %v1224 = vadd.f32 %v904, %v1192
    %1225 = vset.pattern.permute.xlu0 2
    %1226 = vperm.xlu0 %1225, %v31
    %v1227 = vpop.permute.xlu0 %1226
    %1228 = vset.pattern.permute.xlu0 2
    %1229 = vperm.xlu0 %1228, %v32
    %v1230 = vpop.permute.xlu0 %1229
    %1231 = vset.pattern.permute.xlu0 2
    %1232 = vperm.xlu0 %1231, %v33
    %v1233 = vpop.permute.xlu0 %1232
    %1234 = vset.pattern.permute.xlu0 2
    %1235 = vperm.xlu0 %1234, %v34
    %v1236 = vpop.permute.xlu0 %1235
    %1237 = vset.pattern.permute.xlu0 2
    %1238 = vperm.xlu0 %1237, %v35
    %v1239 = vpop.permute.xlu0 %1238
    %1240 = vset.pattern.permute.xlu0 2
    %1241 = vperm.xlu0 %1240, %v36
    %v1242 = vpop.permute.xlu0 %1241
    %1243 = vset.pattern.permute.xlu0 2
    %1244 = vperm.xlu0 %1243, %v37
    %v1245 = vpop.permute.xlu0 %1244
    %1246 = vset.pattern.permute.xlu0 2
    %1247 = vperm.xlu0 %1246, %v38
    %v1248 = vpop.permute.xlu0 %1247
    %1249 = vset.pattern.permute.xlu0 2
    %1250 = vperm.xlu0 %1249, %v39
    %v1251 = vpop.permute.xlu0 %1250
    %1252 = vset.pattern.permute.xlu0 2
    %1253 = vperm.xlu0 %1252, %v40
    %v1254 = vpop.permute.xlu0 %1253
    %1255 = vset.pattern.permute.xlu0 2
    %1256 = vperm.xlu0 %1255, %v41
    %v1257 = vpop.permute.xlu0 %1256
    %1258 = vset.pattern.permute.xlu0 2
    %1259 = vperm.xlu0 %1258, %v42
    %v1260 = vpop.permute.xlu0 %1259
    %1261 = vset.pattern.permute.xlu0 2
    %1262 = vperm.xlu0 %1261, %v43
    %v1263 = vpop.permute.xlu0 %1262
    %1264 = vset.pattern.permute.xlu0 2
    %1265 = vperm.xlu0 %1264, %v44
    %v1266 = vpop.permute.xlu0 %1265
    %1267 = vset.pattern.permute.xlu0 2
    %1268 = vperm.xlu0 %1267, %v45
    %v1269 = vpop.permute.xlu0 %1268
    %1270 = vset.pattern.permute.xlu0 2
    %1271 = vperm.xlu0 %1270, %v46
    %v1272 = vpop.permute.xlu0 %1271
    %1273 = vset.pattern.permute.xlu0 2
    %1274 = vperm.xlu0 %1273, %v47
    %v1275 = vpop.permute.xlu0 %1274
    %1276 = vset.pattern.permute.xlu0 2
    %1277 = vperm.xlu0 %1276, %v48
    %v1278 = vpop.permute.xlu0 %1277
    %1279 = vset.pattern.permute.xlu0 2
    %1280 = vperm.xlu0 %1279, %v49
    %v1281 = vpop.permute.xlu0 %1280
    %1282 = vset.pattern.permute.xlu0 2
    %1283 = vperm.xlu0 %1282, %v50
    %v1284 = vpop.permute.xlu0 %1283
    %1285 = vset.pattern.permute.xlu0 2
    %1286 = vperm.xlu0 %1285, %v51
    %v1287 = vpop.permute.xlu0 %1286
    %1288 = vset.pattern.permute.xlu0 2
    %1289 = vperm.xlu0 %1288, %v52
    %v1290 = vpop.permute.xlu0 %1289
    %1291 = vset.pattern.permute.xlu0 2
    %1292 = vperm.xlu0 %1291, %v53
    %v1293 = vpop.permute.xlu0 %1292
    %1294 = vset.pattern.permute.xlu0 2
    %1295 = vperm.xlu0 %1294, %v54
    %v1296 = vpop.permute.xlu0 %1295
    %1297 = vset.pattern.permute.xlu0 2
    %1298 = vperm.xlu0 %1297, %v55
    %v1299 = vpop.permute.xlu0 %1298
    %1300 = vset.pattern.permute.xlu0 2
    %1301 = vperm.xlu0 %1300, %v56
    %v1302 = vpop.permute.xlu0 %1301
    %1303 = vset.pattern.permute.xlu0 2
    %1304 = vperm.xlu0 %1303, %v57
    %v1305 = vpop.permute.xlu0 %1304
    %1306 = vset.pattern.permute.xlu0 2
    %1307 = vperm.xlu0 %1306, %v58
    %v1308 = vpop.permute.xlu0 %1307
    %1309 = vset.pattern.permute.xlu0 2
    %1310 = vperm.xlu0 %1309, %v59
    %v1311 = vpop.permute.xlu0 %1310
    %1312 = vset.pattern.permute.xlu0 2
    %1313 = vperm.xlu0 %1312, %v60
    %v1314 = vpop.permute.xlu0 %1313
    %1315 = vset.pattern.permute.xlu0 2
    %1316 = vperm.xlu0 %1315, %v61
    %v1317 = vpop.permute.xlu0 %1316
    %1318 = vset.pattern.permute.xlu0 2
    %1319 = vperm.xlu0 %1318, %v62
    %v1320 = vpop.permute.xlu0 %1319
    %vm1321 = vcmp.eq.s32.totalorder %v104, %v1227
    %vm1322 = vcmp.eq.s32.totalorder %v104, %v1230
    %vm1323 = vcmp.eq.s32.totalorder %v104, %v1233
    %vm1324 = vcmp.eq.s32.totalorder %v104, %v1236
    %vm1325 = vcmp.eq.s32.totalorder %v104, %v1239
    %vm1326 = vcmp.eq.s32.totalorder %v104, %v1242
    %vm1327 = vcmp.eq.s32.totalorder %v104, %v1245
    %vm1328 = vcmp.eq.s32.totalorder %v104, %v1248
    %vm1329 = vcmp.eq.s32.totalorder %v104, %v1251
    %vm1330 = vcmp.eq.s32.totalorder %v104, %v1254
    %vm1331 = vcmp.eq.s32.totalorder %v104, %v1257
    %vm1332 = vcmp.eq.s32.totalorder %v104, %v1260
    %vm1333 = vcmp.eq.s32.totalorder %v104, %v1263
    %vm1334 = vcmp.eq.s32.totalorder %v104, %v1266
    %vm1335 = vcmp.eq.s32.totalorder %v104, %v1269
    %vm1336 = vcmp.eq.s32.totalorder %v104, %v1272
    %vm1337 = vcmp.eq.s32.totalorder %v104, %v1275
    %vm1338 = vcmp.eq.s32.totalorder %v104, %v1278
    %vm1339 = vcmp.eq.s32.totalorder %v104, %v1281
    %vm1340 = vcmp.eq.s32.totalorder %v104, %v1284
    %vm1341 = vcmp.eq.s32.totalorder %v104, %v1287
    %vm1342 = vcmp.eq.s32.totalorder %v104, %v1290
    %vm1343 = vcmp.eq.s32.totalorder %v104, %v1293
    %vm1344 = vcmp.eq.s32.totalorder %v104, %v1296
    %vm1345 = vcmp.eq.s32.totalorder %v104, %v1299
    %vm1346 = vcmp.eq.s32.totalorder %v104, %v1302
    %vm1347 = vcmp.eq.s32.totalorder %v104, %v1305
    %vm1348 = vcmp.eq.s32.totalorder %v104, %v1308
    %vm1349 = vcmp.eq.s32.totalorder %v104, %v1311
    %vm1350 = vcmp.eq.s32.totalorder %v104, %v1314
    %vm1351 = vcmp.eq.s32.totalorder %v104, %v1317
    %vm1352 = vcmp.eq.s32.totalorder %v104, %v1320
    %1353 = vset.pattern.permute.xlu0 2
    %1354 = vperm.xlu0 %1353, %v521
    %v1355 = vpop.permute.xlu0 %1354
    %1357 = vset.pattern.permute.xlu0 2
    %1358 = vperm.xlu0 %1357, %v522
    %v1359 = vpop.permute.xlu0 %1358
    %1361 = vset.pattern.permute.xlu0 2
    %1362 = vperm.xlu0 %1361, %v523
    %v1363 = vpop.permute.xlu0 %1362
    %1365 = vset.pattern.permute.xlu0 2
    %1366 = vperm.xlu0 %1365, %v524
    %v1367 = vpop.permute.xlu0 %1366
    %1369 = vset.pattern.permute.xlu0 2
    %1370 = vperm.xlu0 %1369, %v525
    %v1371 = vpop.permute.xlu0 %1370
    %1373 = vset.pattern.permute.xlu0 2
    %1374 = vperm.xlu0 %1373, %v526
    %v1375 = vpop.permute.xlu0 %1374
    %1377 = vset.pattern.permute.xlu0 2
    %1378 = vperm.xlu0 %1377, %v527
    %v1379 = vpop.permute.xlu0 %1378
    %1381 = vset.pattern.permute.xlu0 2
    %1382 = vperm.xlu0 %1381, %v528
    %v1383 = vpop.permute.xlu0 %1382
    %1385 = vset.pattern.permute.xlu0 2
    %1386 = vperm.xlu0 %1385, %v529
    %v1387 = vpop.permute.xlu0 %1386
    %1389 = vset.pattern.permute.xlu0 2
    %1390 = vperm.xlu0 %1389, %v530
    %v1391 = vpop.permute.xlu0 %1390
    %1393 = vset.pattern.permute.xlu0 2
    %1394 = vperm.xlu0 %1393, %v531
    %v1395 = vpop.permute.xlu0 %1394
    %1397 = vset.pattern.permute.xlu0 2
    %1398 = vperm.xlu0 %1397, %v532
    %v1399 = vpop.permute.xlu0 %1398
    %1401 = vset.pattern.permute.xlu0 2
    %1402 = vperm.xlu0 %1401, %v533
    %v1403 = vpop.permute.xlu0 %1402
    %1405 = vset.pattern.permute.xlu0 2
    %1406 = vperm.xlu0 %1405, %v534
    %v1407 = vpop.permute.xlu0 %1406
    %1409 = vset.pattern.permute.xlu0 2
    %1410 = vperm.xlu0 %1409, %v535
    %v1411 = vpop.permute.xlu0 %1410
    %1413 = vset.pattern.permute.xlu0 2
    %1414 = vperm.xlu0 %1413, %v536
    %v1415 = vpop.permute.xlu0 %1414
    %1417 = vset.pattern.permute.xlu0 2
    %1418 = vperm.xlu0 %1417, %v537
    %v1419 = vpop.permute.xlu0 %1418
    %1421 = vset.pattern.permute.xlu0 2
    %1422 = vperm.xlu0 %1421, %v538
    %v1423 = vpop.permute.xlu0 %1422
    %1425 = vset.pattern.permute.xlu0 2
    %1426 = vperm.xlu0 %1425, %v539
    %v1427 = vpop.permute.xlu0 %1426
    %1429 = vset.pattern.permute.xlu0 2
    %1430 = vperm.xlu0 %1429, %v540
    %v1431 = vpop.permute.xlu0 %1430
    %1433 = vset.pattern.permute.xlu0 2
    %1434 = vperm.xlu0 %1433, %v541
    %v1435 = vpop.permute.xlu0 %1434
    %1437 = vset.pattern.permute.xlu0 2
    %1438 = vperm.xlu0 %1437, %v542
    %v1439 = vpop.permute.xlu0 %1438
    %1441 = vset.pattern.permute.xlu0 2
    %1442 = vperm.xlu0 %1441, %v543
    %v1443 = vpop.permute.xlu0 %1442
    %1445 = vset.pattern.permute.xlu0 2
    %1446 = vperm.xlu0 %1445, %v544
    %v1447 = vpop.permute.xlu0 %1446
    %1449 = vset.pattern.permute.xlu0 2
    %1450 = vperm.xlu0 %1449, %v545
    %v1451 = vpop.permute.xlu0 %1450
    %1453 = vset.pattern.permute.xlu0 2
    %1454 = vperm.xlu0 %1453, %v546
    %v1455 = vpop.permute.xlu0 %1454
    %1457 = vset.pattern.permute.xlu0 2
    %1458 = vperm.xlu0 %1457, %v547
    %v1459 = vpop.permute.xlu0 %1458
    %1461 = vset.pattern.permute.xlu0 2
    %1462 = vperm.xlu0 %1461, %v548
    %v1463 = vpop.permute.xlu0 %1462
    %1465 = vset.pattern.permute.xlu0 2
    %1466 = vperm.xlu0 %1465, %v549
    %v1467 = vpop.permute.xlu0 %1466
    %1469 = vset.pattern.permute.xlu0 2
    %1470 = vperm.xlu0 %1469, %v550
    %v1471 = vpop.permute.xlu0 %1470
    %1473 = vset.pattern.permute.xlu0 2
    %1474 = vperm.xlu0 %1473, %v551
    %v1475 = vpop.permute.xlu0 %1474
    %1477 = vset.pattern.permute.xlu0 2
    %1478 = vperm.xlu0 %1477, %v552
    %v1479 = vpop.permute.xlu0 %1478
    %v1481 = vsel %vm1321, %v1355, 0.0
    %v1482 = vsel %vm1322, %v1359, 0.0
    %v1483 = vsel %vm1323, %v1363, 0.0
    %v1484 = vsel %vm1324, %v1367, 0.0
    %v1485 = vsel %vm1325, %v1371, 0.0
    %v1486 = vsel %vm1326, %v1375, 0.0
    %v1487 = vsel %vm1327, %v1379, 0.0
    %v1488 = vsel %vm1328, %v1383, 0.0
    %v1489 = vsel %vm1329, %v1387, 0.0
    %v1490 = vsel %vm1330, %v1391, 0.0
    %v1491 = vsel %vm1331, %v1395, 0.0
    %v1492 = vsel %vm1332, %v1399, 0.0
    %v1493 = vsel %vm1333, %v1403, 0.0
    %v1494 = vsel %vm1334, %v1407, 0.0
    %v1495 = vsel %vm1335, %v1411, 0.0
    %v1496 = vsel %vm1336, %v1415, 0.0
    %v1497 = vsel %vm1337, %v1419, 0.0
    %v1498 = vsel %vm1338, %v1423, 0.0
    %v1499 = vsel %vm1339, %v1427, 0.0
    %v1500 = vsel %vm1340, %v1431, 0.0
    %v1501 = vsel %vm1341, %v1435, 0.0
    %v1502 = vsel %vm1342, %v1439, 0.0
    %v1503 = vsel %vm1343, %v1443, 0.0
    %v1504 = vsel %vm1344, %v1447, 0.0
    %v1505 = vsel %vm1345, %v1451, 0.0
    %v1506 = vsel %vm1346, %v1455, 0.0
    %v1507 = vsel %vm1347, %v1459, 0.0
    %v1508 = vsel %vm1348, %v1463, 0.0
    %v1509 = vsel %vm1349, %v1467, 0.0
    %v1510 = vsel %vm1350, %v1471, 0.0
    %v1511 = vsel %vm1351, %v1475, 0.0
    %v1512 = vsel %vm1352, %v1479, 0.0
    %v1513 = vadd.f32 %v1193, %v1481
    %v1514 = vadd.f32 %v1194, %v1482
    %v1515 = vadd.f32 %v1195, %v1483
    %v1516 = vadd.f32 %v1196, %v1484
    %v1517 = vadd.f32 %v1197, %v1485
    %v1518 = vadd.f32 %v1198, %v1486
    %v1519 = vadd.f32 %v1199, %v1487
    %v1520 = vadd.f32 %v1200, %v1488
    %v1521 = vadd.f32 %v1201, %v1489
    %v1522 = vadd.f32 %v1202, %v1490
    %v1523 = vadd.f32 %v1203, %v1491
    %v1524 = vadd.f32 %v1204, %v1492
    %v1525 = vadd.f32 %v1205, %v1493
    %v1526 = vadd.f32 %v1206, %v1494
    %v1527 = vadd.f32 %v1207, %v1495
    %v1528 = vadd.f32 %v1208, %v1496
    %v1529 = vadd.f32 %v1209, %v1497
    %v1530 = vadd.f32 %v1210, %v1498
    %v1531 = vadd.f32 %v1211, %v1499
    %v1532 = vadd.f32 %v1212, %v1500
    %v1533 = vadd.f32 %v1213, %v1501
    %v1534 = vadd.f32 %v1214, %v1502
    %v1535 = vadd.f32 %v1215, %v1503
    %v1536 = vadd.f32 %v1216, %v1504
    %v1537 = vadd.f32 %v1217, %v1505
    %v1538 = vadd.f32 %v1218, %v1506
    %v1539 = vadd.f32 %v1219, %v1507
    %v1540 = vadd.f32 %v1220, %v1508
    %v1541 = vadd.f32 %v1221, %v1509
    %v1542 = vadd.f32 %v1222, %v1510
    %v1543 = vadd.f32 %v1223, %v1511
    %v1544 = vadd.f32 %v1224, %v1512
    %1545 = vset.pattern.permute.xlu0 3
    %1546 = vperm.xlu0 %1545, %v31
    %v1547 = vpop.permute.xlu0 %1546
    %1548 = vset.pattern.permute.xlu0 3
    %1549 = vperm.xlu0 %1548, %v32
    %v1550 = vpop.permute.xlu0 %1549
    %1551 = vset.pattern.permute.xlu0 3
    %1552 = vperm.xlu0 %1551, %v33
    %v1553 = vpop.permute.xlu0 %1552
    %1554 = vset.pattern.permute.xlu0 3
    %1555 = vperm.xlu0 %1554, %v34
    %v1556 = vpop.permute.xlu0 %1555
    %1557 = vset.pattern.permute.xlu0 3
    %1558 = vperm.xlu0 %1557, %v35
    %v1559 = vpop.permute.xlu0 %1558
    %1560 = vset.pattern.permute.xlu0 3
    %1561 = vperm.xlu0 %1560, %v36
    %v1562 = vpop.permute.xlu0 %1561
    %1563 = vset.pattern.permute.xlu0 3
    %1564 = vperm.xlu0 %1563, %v37
    %v1565 = vpop.permute.xlu0 %1564
    %1566 = vset.pattern.permute.xlu0 3
    %1567 = vperm.xlu0 %1566, %v38
    %v1568 = vpop.permute.xlu0 %1567
    %1569 = vset.pattern.permute.xlu0 3
    %1570 = vperm.xlu0 %1569, %v39
    %v1571 = vpop.permute.xlu0 %1570
    %1572 = vset.pattern.permute.xlu0 3
    %1573 = vperm.xlu0 %1572, %v40
    %v1574 = vpop.permute.xlu0 %1573
    %1575 = vset.pattern.permute.xlu0 3
    %1576 = vperm.xlu0 %1575, %v41
    %v1577 = vpop.permute.xlu0 %1576
    %1578 = vset.pattern.permute.xlu0 3
    %1579 = vperm.xlu0 %1578, %v42
    %v1580 = vpop.permute.xlu0 %1579
    %1581 = vset.pattern.permute.xlu0 3
    %1582 = vperm.xlu0 %1581, %v43
    %v1583 = vpop.permute.xlu0 %1582
    %1584 = vset.pattern.permute.xlu0 3
    %1585 = vperm.xlu0 %1584, %v44
    %v1586 = vpop.permute.xlu0 %1585
    %1587 = vset.pattern.permute.xlu0 3
    %1588 = vperm.xlu0 %1587, %v45
    %v1589 = vpop.permute.xlu0 %1588
    %1590 = vset.pattern.permute.xlu0 3
    %1591 = vperm.xlu0 %1590, %v46
    %v1592 = vpop.permute.xlu0 %1591
    %1593 = vset.pattern.permute.xlu0 3
    %1594 = vperm.xlu0 %1593, %v47
    %v1595 = vpop.permute.xlu0 %1594
    %1596 = vset.pattern.permute.xlu0 3
    %1597 = vperm.xlu0 %1596, %v48
    %v1598 = vpop.permute.xlu0 %1597
    %1599 = vset.pattern.permute.xlu0 3
    %1600 = vperm.xlu0 %1599, %v49
    %v1601 = vpop.permute.xlu0 %1600
    %1602 = vset.pattern.permute.xlu0 3
    %1603 = vperm.xlu0 %1602, %v50
    %v1604 = vpop.permute.xlu0 %1603
    %1605 = vset.pattern.permute.xlu0 3
    %1606 = vperm.xlu0 %1605, %v51
    %v1607 = vpop.permute.xlu0 %1606
    %1608 = vset.pattern.permute.xlu0 3
    %1609 = vperm.xlu0 %1608, %v52
    %v1610 = vpop.permute.xlu0 %1609
    %1611 = vset.pattern.permute.xlu0 3
    %1612 = vperm.xlu0 %1611, %v53
    %v1613 = vpop.permute.xlu0 %1612
    %1614 = vset.pattern.permute.xlu0 3
    %1615 = vperm.xlu0 %1614, %v54
    %v1616 = vpop.permute.xlu0 %1615
    %1617 = vset.pattern.permute.xlu0 3
    %1618 = vperm.xlu0 %1617, %v55
    %v1619 = vpop.permute.xlu0 %1618
    %1620 = vset.pattern.permute.xlu0 3
    %1621 = vperm.xlu0 %1620, %v56
    %v1622 = vpop.permute.xlu0 %1621
    %1623 = vset.pattern.permute.xlu0 3
    %1624 = vperm.xlu0 %1623, %v57
    %v1625 = vpop.permute.xlu0 %1624
    %1626 = vset.pattern.permute.xlu0 3
    %1627 = vperm.xlu0 %1626, %v58
    %v1628 = vpop.permute.xlu0 %1627
    %1629 = vset.pattern.permute.xlu0 3
    %1630 = vperm.xlu0 %1629, %v59
    %v1631 = vpop.permute.xlu0 %1630
    %1632 = vset.pattern.permute.xlu0 3
    %1633 = vperm.xlu0 %1632, %v60
    %v1634 = vpop.permute.xlu0 %1633
    %1635 = vset.pattern.permute.xlu0 3
    %1636 = vperm.xlu0 %1635, %v61
    %v1637 = vpop.permute.xlu0 %1636
    %1638 = vset.pattern.permute.xlu0 3
    %1639 = vperm.xlu0 %1638, %v62
    %v1640 = vpop.permute.xlu0 %1639
    %vm1641 = vcmp.eq.s32.totalorder %v104, %v1547
    %vm1642 = vcmp.eq.s32.totalorder %v104, %v1550
    %vm1643 = vcmp.eq.s32.totalorder %v104, %v1553
    %vm1644 = vcmp.eq.s32.totalorder %v104, %v1556
    %vm1645 = vcmp.eq.s32.totalorder %v104, %v1559
    %vm1646 = vcmp.eq.s32.totalorder %v104, %v1562
    %vm1647 = vcmp.eq.s32.totalorder %v104, %v1565
    %vm1648 = vcmp.eq.s32.totalorder %v104, %v1568
    %vm1649 = vcmp.eq.s32.totalorder %v104, %v1571
    %vm1650 = vcmp.eq.s32.totalorder %v104, %v1574
    %vm1651 = vcmp.eq.s32.totalorder %v104, %v1577
    %vm1652 = vcmp.eq.s32.totalorder %v104, %v1580
    %vm1653 = vcmp.eq.s32.totalorder %v104, %v1583
    %vm1654 = vcmp.eq.s32.totalorder %v104, %v1586
    %vm1655 = vcmp.eq.s32.totalorder %v104, %v1589
    %vm1656 = vcmp.eq.s32.totalorder %v104, %v1592
    %vm1657 = vcmp.eq.s32.totalorder %v104, %v1595
    %vm1658 = vcmp.eq.s32.totalorder %v104, %v1598
    %vm1659 = vcmp.eq.s32.totalorder %v104, %v1601
    %vm1660 = vcmp.eq.s32.totalorder %v104, %v1604
    %vm1661 = vcmp.eq.s32.totalorder %v104, %v1607
    %vm1662 = vcmp.eq.s32.totalorder %v104, %v1610
    %vm1663 = vcmp.eq.s32.totalorder %v104, %v1613
    %vm1664 = vcmp.eq.s32.totalorder %v104, %v1616
    %vm1665 = vcmp.eq.s32.totalorder %v104, %v1619
    %vm1666 = vcmp.eq.s32.totalorder %v104, %v1622
    %vm1667 = vcmp.eq.s32.totalorder %v104, %v1625
    %vm1668 = vcmp.eq.s32.totalorder %v104, %v1628
    %vm1669 = vcmp.eq.s32.totalorder %v104, %v1631
    %vm1670 = vcmp.eq.s32.totalorder %v104, %v1634
    %vm1671 = vcmp.eq.s32.totalorder %v104, %v1637
    %vm1672 = vcmp.eq.s32.totalorder %v104, %v1640
    %1673 = vset.pattern.permute.xlu0 3
    %1674 = vperm.xlu0 %1673, %v521
    %v1675 = vpop.permute.xlu0 %1674
    %1677 = vset.pattern.permute.xlu0 3
    %1678 = vperm.xlu0 %1677, %v522
    %v1679 = vpop.permute.xlu0 %1678
    %1681 = vset.pattern.permute.xlu0 3
    %1682 = vperm.xlu0 %1681, %v523
    %v1683 = vpop.permute.xlu0 %1682
    %1685 = vset.pattern.permute.xlu0 3
    %1686 = vperm.xlu0 %1685, %v524
    %v1687 = vpop.permute.xlu0 %1686
    %1689 = vset.pattern.permute.xlu0 3
    %1690 = vperm.xlu0 %1689, %v525
    %v1691 = vpop.permute.xlu0 %1690
    %1693 = vset.pattern.permute.xlu0 3
    %1694 = vperm.xlu0 %1693, %v526
    %v1695 = vpop.permute.xlu0 %1694
    %1697 = vset.pattern.permute.xlu0 3
    %1698 = vperm.xlu0 %1697, %v527
    %v1699 = vpop.permute.xlu0 %1698
    %1701 = vset.pattern.permute.xlu0 3
    %1702 = vperm.xlu0 %1701, %v528
    %v1703 = vpop.permute.xlu0 %1702
    %1705 = vset.pattern.permute.xlu0 3
    %1706 = vperm.xlu0 %1705, %v529
    %v1707 = vpop.permute.xlu0 %1706
    %1709 = vset.pattern.permute.xlu0 3
    %1710 = vperm.xlu0 %1709, %v530
    %v1711 = vpop.permute.xlu0 %1710
    %1713 = vset.pattern.permute.xlu0 3
    %1714 = vperm.xlu0 %1713, %v531
    %v1715 = vpop.permute.xlu0 %1714
    %1717 = vset.pattern.permute.xlu0 3
    %1718 = vperm.xlu0 %1717, %v532
    %v1719 = vpop.permute.xlu0 %1718
    %1721 = vset.pattern.permute.xlu0 3
    %1722 = vperm.xlu0 %1721, %v533
    %v1723 = vpop.permute.xlu0 %1722
    %1725 = vset.pattern.permute.xlu0 3
    %1726 = vperm.xlu0 %1725, %v534
    %v1727 = vpop.permute.xlu0 %1726
    %1729 = vset.pattern.permute.xlu0 3
    %1730 = vperm.xlu0 %1729, %v535
    %v1731 = vpop.permute.xlu0 %1730
    %1733 = vset.pattern.permute.xlu0 3
    %1734 = vperm.xlu0 %1733, %v536
    %v1735 = vpop.permute.xlu0 %1734
    %1737 = vset.pattern.permute.xlu0 3
    %1738 = vperm.xlu0 %1737, %v537
    %v1739 = vpop.permute.xlu0 %1738
    %1741 = vset.pattern.permute.xlu0 3
    %1742 = vperm.xlu0 %1741, %v538
    %v1743 = vpop.permute.xlu0 %1742
    %1745 = vset.pattern.permute.xlu0 3
    %1746 = vperm.xlu0 %1745, %v539
    %v1747 = vpop.permute.xlu0 %1746
    %1749 = vset.pattern.permute.xlu0 3
    %1750 = vperm.xlu0 %1749, %v540
    %v1751 = vpop.permute.xlu0 %1750
    %1753 = vset.pattern.permute.xlu0 3
    %1754 = vperm.xlu0 %1753, %v541
    %v1755 = vpop.permute.xlu0 %1754
    %1757 = vset.pattern.permute.xlu0 3
    %1758 = vperm.xlu0 %1757, %v542
    %v1759 = vpop.permute.xlu0 %1758
    %1761 = vset.pattern.permute.xlu0 3
    %1762 = vperm.xlu0 %1761, %v543
    %v1763 = vpop.permute.xlu0 %1762
    %1765 = vset.pattern.permute.xlu0 3
    %1766 = vperm.xlu0 %1765, %v544
    %v1767 = vpop.permute.xlu0 %1766
    %1769 = vset.pattern.permute.xlu0 3
    %1770 = vperm.xlu0 %1769, %v545
    %v1771 = vpop.permute.xlu0 %1770
    %1773 = vset.pattern.permute.xlu0 3
    %1774 = vperm.xlu0 %1773, %v546
    %v1775 = vpop.permute.xlu0 %1774
    %1777 = vset.pattern.permute.xlu0 3
    %1778 = vperm.xlu0 %1777, %v547
    %v1779 = vpop.permute.xlu0 %1778
    %1781 = vset.pattern.permute.xlu0 3
    %1782 = vperm.xlu0 %1781, %v548
    %v1783 = vpop.permute.xlu0 %1782
    %1785 = vset.pattern.permute.xlu0 3
    %1786 = vperm.xlu0 %1785, %v549
    %v1787 = vpop.permute.xlu0 %1786
    %1789 = vset.pattern.permute.xlu0 3
    %1790 = vperm.xlu0 %1789, %v550
    %v1791 = vpop.permute.xlu0 %1790
    %1793 = vset.pattern.permute.xlu0 3
    %1794 = vperm.xlu0 %1793, %v551
    %v1795 = vpop.permute.xlu0 %1794
    %1797 = vset.pattern.permute.xlu0 3
    %1798 = vperm.xlu0 %1797, %v552
    %v1799 = vpop.permute.xlu0 %1798
    %v1801 = vsel %vm1641, %v1675, 0.0
    %v1802 = vsel %vm1642, %v1679, 0.0
    %v1803 = vsel %vm1643, %v1683, 0.0
    %v1804 = vsel %vm1644, %v1687, 0.0
    %v1805 = vsel %vm1645, %v1691, 0.0
    %v1806 = vsel %vm1646, %v1695, 0.0
    %v1807 = vsel %vm1647, %v1699, 0.0
    %v1808 = vsel %vm1648, %v1703, 0.0
    %v1809 = vsel %vm1649, %v1707, 0.0
    %v1810 = vsel %vm1650, %v1711, 0.0
    %v1811 = vsel %vm1651, %v1715, 0.0
    %v1812 = vsel %vm1652, %v1719, 0.0
    %v1813 = vsel %vm1653, %v1723, 0.0
    %v1814 = vsel %vm1654, %v1727, 0.0
    %v1815 = vsel %vm1655, %v1731, 0.0
    %v1816 = vsel %vm1656, %v1735, 0.0
    %v1817 = vsel %vm1657, %v1739, 0.0
    %v1818 = vsel %vm1658, %v1743, 0.0
    %v1819 = vsel %vm1659, %v1747, 0.0
    %v1820 = vsel %vm1660, %v1751, 0.0
    %v1821 = vsel %vm1661, %v1755, 0.0
    %v1822 = vsel %vm1662, %v1759, 0.0
    %v1823 = vsel %vm1663, %v1763, 0.0
    %v1824 = vsel %vm1664, %v1767, 0.0
    %v1825 = vsel %vm1665, %v1771, 0.0
    %v1826 = vsel %vm1666, %v1775, 0.0
    %v1827 = vsel %vm1667, %v1779, 0.0
    %v1828 = vsel %vm1668, %v1783, 0.0
    %v1829 = vsel %vm1669, %v1787, 0.0
    %v1830 = vsel %vm1670, %v1791, 0.0
    %v1831 = vsel %vm1671, %v1795, 0.0
    %v1832 = vsel %vm1672, %v1799, 0.0
    %v1833 = vadd.f32 %v1513, %v1801
    %v1834 = vadd.f32 %v1514, %v1802
    %v1835 = vadd.f32 %v1515, %v1803
    %v1836 = vadd.f32 %v1516, %v1804
    %v1837 = vadd.f32 %v1517, %v1805
    %v1838 = vadd.f32 %v1518, %v1806
    %v1839 = vadd.f32 %v1519, %v1807
    %v1840 = vadd.f32 %v1520, %v1808
    %v1841 = vadd.f32 %v1521, %v1809
    %v1842 = vadd.f32 %v1522, %v1810
    %v1843 = vadd.f32 %v1523, %v1811
    %v1844 = vadd.f32 %v1524, %v1812
    %v1845 = vadd.f32 %v1525, %v1813
    %v1846 = vadd.f32 %v1526, %v1814
    %v1847 = vadd.f32 %v1527, %v1815
    %v1848 = vadd.f32 %v1528, %v1816
    %v1849 = vadd.f32 %v1529, %v1817
    %v1850 = vadd.f32 %v1530, %v1818
    %v1851 = vadd.f32 %v1531, %v1819
    %v1852 = vadd.f32 %v1532, %v1820
    %v1853 = vadd.f32 %v1533, %v1821
    %v1854 = vadd.f32 %v1534, %v1822
    %v1855 = vadd.f32 %v1535, %v1823
    %v1856 = vadd.f32 %v1536, %v1824
    %v1857 = vadd.f32 %v1537, %v1825
    %v1858 = vadd.f32 %v1538, %v1826
    %v1859 = vadd.f32 %v1539, %v1827
    %v1860 = vadd.f32 %v1540, %v1828
    %v1861 = vadd.f32 %v1541, %v1829
    %v1862 = vadd.f32 %v1542, %v1830
    %v1863 = vadd.f32 %v1543, %v1831
    %v1864 = vadd.f32 %v1544, %v1832
    %1865 = vset.pattern.permute.xlu0 4
    %1866 = vperm.xlu0 %1865, %v31
    %v1867 = vpop.permute.xlu0 %1866
    %1868 = vset.pattern.permute.xlu0 4
    %1869 = vperm.xlu0 %1868, %v32
    %v1870 = vpop.permute.xlu0 %1869
    %1871 = vset.pattern.permute.xlu0 4
    %1872 = vperm.xlu0 %1871, %v33
    %v1873 = vpop.permute.xlu0 %1872
    %1874 = vset.pattern.permute.xlu0 4
    %1875 = vperm.xlu0 %1874, %v34
    %v1876 = vpop.permute.xlu0 %1875
    %1877 = vset.pattern.permute.xlu0 4
    %1878 = vperm.xlu0 %1877, %v35
    %v1879 = vpop.permute.xlu0 %1878
    %1880 = vset.pattern.permute.xlu0 4
    %1881 = vperm.xlu0 %1880, %v36
    %v1882 = vpop.permute.xlu0 %1881
    %1883 = vset.pattern.permute.xlu0 4
    %1884 = vperm.xlu0 %1883, %v37
    %v1885 = vpop.permute.xlu0 %1884
    %1886 = vset.pattern.permute.xlu0 4
    %1887 = vperm.xlu0 %1886, %v38
    %v1888 = vpop.permute.xlu0 %1887
    %1889 = vset.pattern.permute.xlu0 4
    %1890 = vperm.xlu0 %1889, %v39
    %v1891 = vpop.permute.xlu0 %1890
    %1892 = vset.pattern.permute.xlu0 4
    %1893 = vperm.xlu0 %1892, %v40
    %v1894 = vpop.permute.xlu0 %1893
    %1895 = vset.pattern.permute.xlu0 4
    %1896 = vperm.xlu0 %1895, %v41
    %v1897 = vpop.permute.xlu0 %1896
    %1898 = vset.pattern.permute.xlu0 4
    %1899 = vperm.xlu0 %1898, %v42
    %v1900 = vpop.permute.xlu0 %1899
    %1901 = vset.pattern.permute.xlu0 4
    %1902 = vperm.xlu0 %1901, %v43
    %v1903 = vpop.permute.xlu0 %1902
    %1904 = vset.pattern.permute.xlu0 4
    %1905 = vperm.xlu0 %1904, %v44
    %v1906 = vpop.permute.xlu0 %1905
    %1907 = vset.pattern.permute.xlu0 4
    %1908 = vperm.xlu0 %1907, %v45
    %v1909 = vpop.permute.xlu0 %1908
    %1910 = vset.pattern.permute.xlu0 4
    %1911 = vperm.xlu0 %1910, %v46
    %v1912 = vpop.permute.xlu0 %1911
    %1913 = vset.pattern.permute.xlu0 4
    %1914 = vperm.xlu0 %1913, %v47
    %v1915 = vpop.permute.xlu0 %1914
    %1916 = vset.pattern.permute.xlu0 4
    %1917 = vperm.xlu0 %1916, %v48
    %v1918 = vpop.permute.xlu0 %1917
    %1919 = vset.pattern.permute.xlu0 4
    %1920 = vperm.xlu0 %1919, %v49
    %v1921 = vpop.permute.xlu0 %1920
    %1922 = vset.pattern.permute.xlu0 4
    %1923 = vperm.xlu0 %1922, %v50
    %v1924 = vpop.permute.xlu0 %1923
    %1925 = vset.pattern.permute.xlu0 4
    %1926 = vperm.xlu0 %1925, %v51
    %v1927 = vpop.permute.xlu0 %1926
    %1928 = vset.pattern.permute.xlu0 4
    %1929 = vperm.xlu0 %1928, %v52
    %v1930 = vpop.permute.xlu0 %1929
    %1931 = vset.pattern.permute.xlu0 4
    %1932 = vperm.xlu0 %1931, %v53
    %v1933 = vpop.permute.xlu0 %1932
    %1934 = vset.pattern.permute.xlu0 4
    %1935 = vperm.xlu0 %1934, %v54
    %v1936 = vpop.permute.xlu0 %1935
    %1937 = vset.pattern.permute.xlu0 4
    %1938 = vperm.xlu0 %1937, %v55
    %v1939 = vpop.permute.xlu0 %1938
    %1940 = vset.pattern.permute.xlu0 4
    %1941 = vperm.xlu0 %1940, %v56
    %v1942 = vpop.permute.xlu0 %1941
    %1943 = vset.pattern.permute.xlu0 4
    %1944 = vperm.xlu0 %1943, %v57
    %v1945 = vpop.permute.xlu0 %1944
    %1946 = vset.pattern.permute.xlu0 4
    %1947 = vperm.xlu0 %1946, %v58
    %v1948 = vpop.permute.xlu0 %1947
    %1949 = vset.pattern.permute.xlu0 4
    %1950 = vperm.xlu0 %1949, %v59
    %v1951 = vpop.permute.xlu0 %1950
    %1952 = vset.pattern.permute.xlu0 4
    %1953 = vperm.xlu0 %1952, %v60
    %v1954 = vpop.permute.xlu0 %1953
    %1955 = vset.pattern.permute.xlu0 4
    %1956 = vperm.xlu0 %1955, %v61
    %v1957 = vpop.permute.xlu0 %1956
    %1958 = vset.pattern.permute.xlu0 4
    %1959 = vperm.xlu0 %1958, %v62
    %v1960 = vpop.permute.xlu0 %1959
    %vm1961 = vcmp.eq.s32.totalorder %v104, %v1867
    %vm1962 = vcmp.eq.s32.totalorder %v104, %v1870
    %vm1963 = vcmp.eq.s32.totalorder %v104, %v1873
    %vm1964 = vcmp.eq.s32.totalorder %v104, %v1876
    %vm1965 = vcmp.eq.s32.totalorder %v104, %v1879
    %vm1966 = vcmp.eq.s32.totalorder %v104, %v1882
    %vm1967 = vcmp.eq.s32.totalorder %v104, %v1885
    %vm1968 = vcmp.eq.s32.totalorder %v104, %v1888
    %vm1969 = vcmp.eq.s32.totalorder %v104, %v1891
    %vm1970 = vcmp.eq.s32.totalorder %v104, %v1894
    %vm1971 = vcmp.eq.s32.totalorder %v104, %v1897
    %vm1972 = vcmp.eq.s32.totalorder %v104, %v1900
    %vm1973 = vcmp.eq.s32.totalorder %v104, %v1903
    %vm1974 = vcmp.eq.s32.totalorder %v104, %v1906
    %vm1975 = vcmp.eq.s32.totalorder %v104, %v1909
    %vm1976 = vcmp.eq.s32.totalorder %v104, %v1912
    %vm1977 = vcmp.eq.s32.totalorder %v104, %v1915
    %vm1978 = vcmp.eq.s32.totalorder %v104, %v1918
    %vm1979 = vcmp.eq.s32.totalorder %v104, %v1921
    %vm1980 = vcmp.eq.s32.totalorder %v104, %v1924
    %vm1981 = vcmp.eq.s32.totalorder %v104, %v1927
    %vm1982 = vcmp.eq.s32.totalorder %v104, %v1930
    %vm1983 = vcmp.eq.s32.totalorder %v104, %v1933
    %vm1984 = vcmp.eq.s32.totalorder %v104, %v1936
    %vm1985 = vcmp.eq.s32.totalorder %v104, %v1939
    %vm1986 = vcmp.eq.s32.totalorder %v104, %v1942
    %vm1987 = vcmp.eq.s32.totalorder %v104, %v1945
    %vm1988 = vcmp.eq.s32.totalorder %v104, %v1948
    %vm1989 = vcmp.eq.s32.totalorder %v104, %v1951
    %vm1990 = vcmp.eq.s32.totalorder %v104, %v1954
    %vm1991 = vcmp.eq.s32.totalorder %v104, %v1957
    %vm1992 = vcmp.eq.s32.totalorder %v104, %v1960
    %1993 = vset.pattern.permute.xlu0 4
    %1994 = vperm.xlu0 %1993, %v521
    %v1995 = vpop.permute.xlu0 %1994
    %1997 = vset.pattern.permute.xlu0 4
    %1998 = vperm.xlu0 %1997, %v522
    %v1999 = vpop.permute.xlu0 %1998
    %2001 = vset.pattern.permute.xlu0 4
    %2002 = vperm.xlu0 %2001, %v523
    %v2003 = vpop.permute.xlu0 %2002
    %2005 = vset.pattern.permute.xlu0 4
    %2006 = vperm.xlu0 %2005, %v524
    %v2007 = vpop.permute.xlu0 %2006
    %2009 = vset.pattern.permute.xlu0 4
    %2010 = vperm.xlu0 %2009, %v525
    %v2011 = vpop.permute.xlu0 %2010
    %2013 = vset.pattern.permute.xlu0 4
    %2014 = vperm.xlu0 %2013, %v526
    %v2015 = vpop.permute.xlu0 %2014
    %2017 = vset.pattern.permute.xlu0 4
    %2018 = vperm.xlu0 %2017, %v527
    %v2019 = vpop.permute.xlu0 %2018
    %2021 = vset.pattern.permute.xlu0 4
    %2022 = vperm.xlu0 %2021, %v528
    %v2023 = vpop.permute.xlu0 %2022
    %2025 = vset.pattern.permute.xlu0 4
    %2026 = vperm.xlu0 %2025, %v529
    %v2027 = vpop.permute.xlu0 %2026
    %2029 = vset.pattern.permute.xlu0 4
    %2030 = vperm.xlu0 %2029, %v530
    %v2031 = vpop.permute.xlu0 %2030
    %2033 = vset.pattern.permute.xlu0 4
    %2034 = vperm.xlu0 %2033, %v531
    %v2035 = vpop.permute.xlu0 %2034
    %2037 = vset.pattern.permute.xlu0 4
    %2038 = vperm.xlu0 %2037, %v532
    %v2039 = vpop.permute.xlu0 %2038
    %2041 = vset.pattern.permute.xlu0 4
    %2042 = vperm.xlu0 %2041, %v533
    %v2043 = vpop.permute.xlu0 %2042
    %2045 = vset.pattern.permute.xlu0 4
    %2046 = vperm.xlu0 %2045, %v534
    %v2047 = vpop.permute.xlu0 %2046
    %2049 = vset.pattern.permute.xlu0 4
    %2050 = vperm.xlu0 %2049, %v535
    %v2051 = vpop.permute.xlu0 %2050
    %2053 = vset.pattern.permute.xlu0 4
    %2054 = vperm.xlu0 %2053, %v536
    %v2055 = vpop.permute.xlu0 %2054
    %2057 = vset.pattern.permute.xlu0 4
    %2058 = vperm.xlu0 %2057, %v537
    %v2059 = vpop.permute.xlu0 %2058
    %2061 = vset.pattern.permute.xlu0 4
    %2062 = vperm.xlu0 %2061, %v538
    %v2063 = vpop.permute.xlu0 %2062
    %2065 = vset.pattern.permute.xlu0 4
    %2066 = vperm.xlu0 %2065, %v539
    %v2067 = vpop.permute.xlu0 %2066
    %2069 = vset.pattern.permute.xlu0 4
    %2070 = vperm.xlu0 %2069, %v540
    %v2071 = vpop.permute.xlu0 %2070
    %2073 = vset.pattern.permute.xlu0 4
    %2074 = vperm.xlu0 %2073, %v541
    %v2075 = vpop.permute.xlu0 %2074
    %2077 = vset.pattern.permute.xlu0 4
    %2078 = vperm.xlu0 %2077, %v542
    %v2079 = vpop.permute.xlu0 %2078
    %2081 = vset.pattern.permute.xlu0 4
    %2082 = vperm.xlu0 %2081, %v543
    %v2083 = vpop.permute.xlu0 %2082
    %2085 = vset.pattern.permute.xlu0 4
    %2086 = vperm.xlu0 %2085, %v544
    %v2087 = vpop.permute.xlu0 %2086
    %2089 = vset.pattern.permute.xlu0 4
    %2090 = vperm.xlu0 %2089, %v545
    %v2091 = vpop.permute.xlu0 %2090
    %2093 = vset.pattern.permute.xlu0 4
    %2094 = vperm.xlu0 %2093, %v546
    %v2095 = vpop.permute.xlu0 %2094
    %2097 = vset.pattern.permute.xlu0 4
    %2098 = vperm.xlu0 %2097, %v547
    %v2099 = vpop.permute.xlu0 %2098
    %2101 = vset.pattern.permute.xlu0 4
    %2102 = vperm.xlu0 %2101, %v548
    %v2103 = vpop.permute.xlu0 %2102
    %2105 = vset.pattern.permute.xlu0 4
    %2106 = vperm.xlu0 %2105, %v549
    %v2107 = vpop.permute.xlu0 %2106
    %2109 = vset.pattern.permute.xlu0 4
    %2110 = vperm.xlu0 %2109, %v550
    %v2111 = vpop.permute.xlu0 %2110
    %2113 = vset.pattern.permute.xlu0 4
    %2114 = vperm.xlu0 %2113, %v551
    %v2115 = vpop.permute.xlu0 %2114
    %2117 = vset.pattern.permute.xlu0 4
    %2118 = vperm.xlu0 %2117, %v552
    %v2119 = vpop.permute.xlu0 %2118
    %v2121 = vsel %vm1961, %v1995, 0.0
    %v2122 = vsel %vm1962, %v1999, 0.0
    %v2123 = vsel %vm1963, %v2003, 0.0
    %v2124 = vsel %vm1964, %v2007, 0.0
    %v2125 = vsel %vm1965, %v2011, 0.0
    %v2126 = vsel %vm1966, %v2015, 0.0
    %v2127 = vsel %vm1967, %v2019, 0.0
    %v2128 = vsel %vm1968, %v2023, 0.0
    %v2129 = vsel %vm1969, %v2027, 0.0
    %v2130 = vsel %vm1970, %v2031, 0.0
    %v2131 = vsel %vm1971, %v2035, 0.0
    %v2132 = vsel %vm1972, %v2039, 0.0
    %v2133 = vsel %vm1973, %v2043, 0.0
    %v2134 = vsel %vm1974, %v2047, 0.0
    %v2135 = vsel %vm1975, %v2051, 0.0
    %v2136 = vsel %vm1976, %v2055, 0.0
    %v2137 = vsel %vm1977, %v2059, 0.0
    %v2138 = vsel %vm1978, %v2063, 0.0
    %v2139 = vsel %vm1979, %v2067, 0.0
    %v2140 = vsel %vm1980, %v2071, 0.0
    %v2141 = vsel %vm1981, %v2075, 0.0
    %v2142 = vsel %vm1982, %v2079, 0.0
    %v2143 = vsel %vm1983, %v2083, 0.0
    %v2144 = vsel %vm1984, %v2087, 0.0
    %v2145 = vsel %vm1985, %v2091, 0.0
    %v2146 = vsel %vm1986, %v2095, 0.0
    %v2147 = vsel %vm1987, %v2099, 0.0
    %v2148 = vsel %vm1988, %v2103, 0.0
    %v2149 = vsel %vm1989, %v2107, 0.0
    %v2150 = vsel %vm1990, %v2111, 0.0
    %v2151 = vsel %vm1991, %v2115, 0.0
    %v2152 = vsel %vm1992, %v2119, 0.0
    %v2153 = vadd.f32 %v1833, %v2121
    %v2154 = vadd.f32 %v1834, %v2122
    %v2155 = vadd.f32 %v1835, %v2123
    %v2156 = vadd.f32 %v1836, %v2124
    %v2157 = vadd.f32 %v1837, %v2125
    %v2158 = vadd.f32 %v1838, %v2126
    %v2159 = vadd.f32 %v1839, %v2127
    %v2160 = vadd.f32 %v1840, %v2128
    %v2161 = vadd.f32 %v1841, %v2129
    %v2162 = vadd.f32 %v1842, %v2130
    %v2163 = vadd.f32 %v1843, %v2131
    %v2164 = vadd.f32 %v1844, %v2132
    %v2165 = vadd.f32 %v1845, %v2133
    %v2166 = vadd.f32 %v1846, %v2134
    %v2167 = vadd.f32 %v1847, %v2135
    %v2168 = vadd.f32 %v1848, %v2136
    %v2169 = vadd.f32 %v1849, %v2137
    %v2170 = vadd.f32 %v1850, %v2138
    %v2171 = vadd.f32 %v1851, %v2139
    %v2172 = vadd.f32 %v1852, %v2140
    %v2173 = vadd.f32 %v1853, %v2141
    %v2174 = vadd.f32 %v1854, %v2142
    %v2175 = vadd.f32 %v1855, %v2143
    %v2176 = vadd.f32 %v1856, %v2144
    %v2177 = vadd.f32 %v1857, %v2145
    %v2178 = vadd.f32 %v1858, %v2146
    %v2179 = vadd.f32 %v1859, %v2147
    %v2180 = vadd.f32 %v1860, %v2148
    %v2181 = vadd.f32 %v1861, %v2149
    %v2182 = vadd.f32 %v1862, %v2150
    %v2183 = vadd.f32 %v1863, %v2151
    %v2184 = vadd.f32 %v1864, %v2152
    %2185 = vset.pattern.permute.xlu0 5
    %2186 = vperm.xlu0 %2185, %v31
    %v2187 = vpop.permute.xlu0 %2186
    %2188 = vset.pattern.permute.xlu0 5
    %2189 = vperm.xlu0 %2188, %v32
    %v2190 = vpop.permute.xlu0 %2189
    %2191 = vset.pattern.permute.xlu0 5
    %2192 = vperm.xlu0 %2191, %v33
    %v2193 = vpop.permute.xlu0 %2192
    %2194 = vset.pattern.permute.xlu0 5
    %2195 = vperm.xlu0 %2194, %v34
    %v2196 = vpop.permute.xlu0 %2195
    %2197 = vset.pattern.permute.xlu0 5
    %2198 = vperm.xlu0 %2197, %v35
    %v2199 = vpop.permute.xlu0 %2198
    %2200 = vset.pattern.permute.xlu0 5
    %2201 = vperm.xlu0 %2200, %v36
    %v2202 = vpop.permute.xlu0 %2201
    %2203 = vset.pattern.permute.xlu0 5
    %2204 = vperm.xlu0 %2203, %v37
    %v2205 = vpop.permute.xlu0 %2204
    %2206 = vset.pattern.permute.xlu0 5
    %2207 = vperm.xlu0 %2206, %v38
    %v2208 = vpop.permute.xlu0 %2207
    %2209 = vset.pattern.permute.xlu0 5
    %2210 = vperm.xlu0 %2209, %v39
    %v2211 = vpop.permute.xlu0 %2210
    %2212 = vset.pattern.permute.xlu0 5
    %2213 = vperm.xlu0 %2212, %v40
    %v2214 = vpop.permute.xlu0 %2213
    %2215 = vset.pattern.permute.xlu0 5
    %2216 = vperm.xlu0 %2215, %v41
    %v2217 = vpop.permute.xlu0 %2216
    %2218 = vset.pattern.permute.xlu0 5
    %2219 = vperm.xlu0 %2218, %v42
    %v2220 = vpop.permute.xlu0 %2219
    %2221 = vset.pattern.permute.xlu0 5
    %2222 = vperm.xlu0 %2221, %v43
    %v2223 = vpop.permute.xlu0 %2222
    %2224 = vset.pattern.permute.xlu0 5
    %2225 = vperm.xlu0 %2224, %v44
    %v2226 = vpop.permute.xlu0 %2225
    %2227 = vset.pattern.permute.xlu0 5
    %2228 = vperm.xlu0 %2227, %v45
    %v2229 = vpop.permute.xlu0 %2228
    %2230 = vset.pattern.permute.xlu0 5
    %2231 = vperm.xlu0 %2230, %v46
    %v2232 = vpop.permute.xlu0 %2231
    %2233 = vset.pattern.permute.xlu0 5
    %2234 = vperm.xlu0 %2233, %v47
    %v2235 = vpop.permute.xlu0 %2234
    %2236 = vset.pattern.permute.xlu0 5
    %2237 = vperm.xlu0 %2236, %v48
    %v2238 = vpop.permute.xlu0 %2237
    %2239 = vset.pattern.permute.xlu0 5
    %2240 = vperm.xlu0 %2239, %v49
    %v2241 = vpop.permute.xlu0 %2240
    %2242 = vset.pattern.permute.xlu0 5
    %2243 = vperm.xlu0 %2242, %v50
    %v2244 = vpop.permute.xlu0 %2243
    %2245 = vset.pattern.permute.xlu0 5
    %2246 = vperm.xlu0 %2245, %v51
    %v2247 = vpop.permute.xlu0 %2246
    %2248 = vset.pattern.permute.xlu0 5
    %2249 = vperm.xlu0 %2248, %v52
    %v2250 = vpop.permute.xlu0 %2249
    %2251 = vset.pattern.permute.xlu0 5
    %2252 = vperm.xlu0 %2251, %v53
    %v2253 = vpop.permute.xlu0 %2252
    %2254 = vset.pattern.permute.xlu0 5
    %2255 = vperm.xlu0 %2254, %v54
    %v2256 = vpop.permute.xlu0 %2255
    %2257 = vset.pattern.permute.xlu0 5
    %2258 = vperm.xlu0 %2257, %v55
    %v2259 = vpop.permute.xlu0 %2258
    %2260 = vset.pattern.permute.xlu0 5
    %2261 = vperm.xlu0 %2260, %v56
    %v2262 = vpop.permute.xlu0 %2261
    %2263 = vset.pattern.permute.xlu0 5
    %2264 = vperm.xlu0 %2263, %v57
    %v2265 = vpop.permute.xlu0 %2264
    %2266 = vset.pattern.permute.xlu0 5
    %2267 = vperm.xlu0 %2266, %v58
    %v2268 = vpop.permute.xlu0 %2267
    %2269 = vset.pattern.permute.xlu0 5
    %2270 = vperm.xlu0 %2269, %v59
    %v2271 = vpop.permute.xlu0 %2270
    %2272 = vset.pattern.permute.xlu0 5
    %2273 = vperm.xlu0 %2272, %v60
    %v2274 = vpop.permute.xlu0 %2273
    %2275 = vset.pattern.permute.xlu0 5
    %2276 = vperm.xlu0 %2275, %v61
    %v2277 = vpop.permute.xlu0 %2276
    %2278 = vset.pattern.permute.xlu0 5
    %2279 = vperm.xlu0 %2278, %v62
    %v2280 = vpop.permute.xlu0 %2279
    %vm2281 = vcmp.eq.s32.totalorder %v104, %v2187
    %vm2282 = vcmp.eq.s32.totalorder %v104, %v2190
    %vm2283 = vcmp.eq.s32.totalorder %v104, %v2193
    %vm2284 = vcmp.eq.s32.totalorder %v104, %v2196
    %vm2285 = vcmp.eq.s32.totalorder %v104, %v2199
    %vm2286 = vcmp.eq.s32.totalorder %v104, %v2202
    %vm2287 = vcmp.eq.s32.totalorder %v104, %v2205
    %vm2288 = vcmp.eq.s32.totalorder %v104, %v2208
    %vm2289 = vcmp.eq.s32.totalorder %v104, %v2211
    %vm2290 = vcmp.eq.s32.totalorder %v104, %v2214
    %vm2291 = vcmp.eq.s32.totalorder %v104, %v2217
    %vm2292 = vcmp.eq.s32.totalorder %v104, %v2220
    %vm2293 = vcmp.eq.s32.totalorder %v104, %v2223
    %vm2294 = vcmp.eq.s32.totalorder %v104, %v2226
    %vm2295 = vcmp.eq.s32.totalorder %v104, %v2229
    %vm2296 = vcmp.eq.s32.totalorder %v104, %v2232
    %vm2297 = vcmp.eq.s32.totalorder %v104, %v2235
    %vm2298 = vcmp.eq.s32.totalorder %v104, %v2238
    %vm2299 = vcmp.eq.s32.totalorder %v104, %v2241
    %vm2300 = vcmp.eq.s32.totalorder %v104, %v2244
    %vm2301 = vcmp.eq.s32.totalorder %v104, %v2247
    %vm2302 = vcmp.eq.s32.totalorder %v104, %v2250
    %vm2303 = vcmp.eq.s32.totalorder %v104, %v2253
    %vm2304 = vcmp.eq.s32.totalorder %v104, %v2256
    %vm2305 = vcmp.eq.s32.totalorder %v104, %v2259
    %vm2306 = vcmp.eq.s32.totalorder %v104, %v2262
    %vm2307 = vcmp.eq.s32.totalorder %v104, %v2265
    %vm2308 = vcmp.eq.s32.totalorder %v104, %v2268
    %vm2309 = vcmp.eq.s32.totalorder %v104, %v2271
    %vm2310 = vcmp.eq.s32.totalorder %v104, %v2274
    %vm2311 = vcmp.eq.s32.totalorder %v104, %v2277
    %vm2312 = vcmp.eq.s32.totalorder %v104, %v2280
    %2313 = vset.pattern.permute.xlu0 5
    %2314 = vperm.xlu0 %2313, %v521
    %v2315 = vpop.permute.xlu0 %2314
    %2317 = vset.pattern.permute.xlu0 5
    %2318 = vperm.xlu0 %2317, %v522
    %v2319 = vpop.permute.xlu0 %2318
    %2321 = vset.pattern.permute.xlu0 5
    %2322 = vperm.xlu0 %2321, %v523
    %v2323 = vpop.permute.xlu0 %2322
    %2325 = vset.pattern.permute.xlu0 5
    %2326 = vperm.xlu0 %2325, %v524
    %v2327 = vpop.permute.xlu0 %2326
    %2329 = vset.pattern.permute.xlu0 5
    %2330 = vperm.xlu0 %2329, %v525
    %v2331 = vpop.permute.xlu0 %2330
    %2333 = vset.pattern.permute.xlu0 5
    %2334 = vperm.xlu0 %2333, %v526
    %v2335 = vpop.permute.xlu0 %2334
    %2337 = vset.pattern.permute.xlu0 5
    %2338 = vperm.xlu0 %2337, %v527
    %v2339 = vpop.permute.xlu0 %2338
    %2341 = vset.pattern.permute.xlu0 5
    %2342 = vperm.xlu0 %2341, %v528
    %v2343 = vpop.permute.xlu0 %2342
    %2345 = vset.pattern.permute.xlu0 5
    %2346 = vperm.xlu0 %2345, %v529
    %v2347 = vpop.permute.xlu0 %2346
    %2349 = vset.pattern.permute.xlu0 5
    %2350 = vperm.xlu0 %2349, %v530
    %v2351 = vpop.permute.xlu0 %2350
    %2353 = vset.pattern.permute.xlu0 5
    %2354 = vperm.xlu0 %2353, %v531
    %v2355 = vpop.permute.xlu0 %2354
    %2357 = vset.pattern.permute.xlu0 5
    %2358 = vperm.xlu0 %2357, %v532
    %v2359 = vpop.permute.xlu0 %2358
    %2361 = vset.pattern.permute.xlu0 5
    %2362 = vperm.xlu0 %2361, %v533
    %v2363 = vpop.permute.xlu0 %2362
    %2365 = vset.pattern.permute.xlu0 5
    %2366 = vperm.xlu0 %2365, %v534
    %v2367 = vpop.permute.xlu0 %2366
    %2369 = vset.pattern.permute.xlu0 5
    %2370 = vperm.xlu0 %2369, %v535
    %v2371 = vpop.permute.xlu0 %2370
    %2373 = vset.pattern.permute.xlu0 5
    %2374 = vperm.xlu0 %2373, %v536
    %v2375 = vpop.permute.xlu0 %2374
    %2377 = vset.pattern.permute.xlu0 5
    %2378 = vperm.xlu0 %2377, %v537
    %v2379 = vpop.permute.xlu0 %2378
    %2381 = vset.pattern.permute.xlu0 5
    %2382 = vperm.xlu0 %2381, %v538
    %v2383 = vpop.permute.xlu0 %2382
    %2385 = vset.pattern.permute.xlu0 5
    %2386 = vperm.xlu0 %2385, %v539
    %v2387 = vpop.permute.xlu0 %2386
    %2389 = vset.pattern.permute.xlu0 5
    %2390 = vperm.xlu0 %2389, %v540
    %v2391 = vpop.permute.xlu0 %2390
    %2393 = vset.pattern.permute.xlu0 5
    %2394 = vperm.xlu0 %2393, %v541
    %v2395 = vpop.permute.xlu0 %2394
    %2397 = vset.pattern.permute.xlu0 5
    %2398 = vperm.xlu0 %2397, %v542
    %v2399 = vpop.permute.xlu0 %2398
    %2401 = vset.pattern.permute.xlu0 5
    %2402 = vperm.xlu0 %2401, %v543
    %v2403 = vpop.permute.xlu0 %2402
    %2405 = vset.pattern.permute.xlu0 5
    %2406 = vperm.xlu0 %2405, %v544
    %v2407 = vpop.permute.xlu0 %2406
    %2409 = vset.pattern.permute.xlu0 5
    %2410 = vperm.xlu0 %2409, %v545
    %v2411 = vpop.permute.xlu0 %2410
    %2413 = vset.pattern.permute.xlu0 5
    %2414 = vperm.xlu0 %2413, %v546
    %v2415 = vpop.permute.xlu0 %2414
    %2417 = vset.pattern.permute.xlu0 5
    %2418 = vperm.xlu0 %2417, %v547
    %v2419 = vpop.permute.xlu0 %2418
    %2421 = vset.pattern.permute.xlu0 5
    %2422 = vperm.xlu0 %2421, %v548
    %v2423 = vpop.permute.xlu0 %2422
    %2425 = vset.pattern.permute.xlu0 5
    %2426 = vperm.xlu0 %2425, %v549
    %v2427 = vpop.permute.xlu0 %2426
    %2429 = vset.pattern.permute.xlu0 5
    %2430 = vperm.xlu0 %2429, %v550
    %v2431 = vpop.permute.xlu0 %2430
    %2433 = vset.pattern.permute.xlu0 5
    %2434 = vperm.xlu0 %2433, %v551
    %v2435 = vpop.permute.xlu0 %2434
    %2437 = vset.pattern.permute.xlu0 5
    %2438 = vperm.xlu0 %2437, %v552
    %v2439 = vpop.permute.xlu0 %2438
    %v2441 = vsel %vm2281, %v2315, 0.0
    %v2442 = vsel %vm2282, %v2319, 0.0
    %v2443 = vsel %vm2283, %v2323, 0.0
    %v2444 = vsel %vm2284, %v2327, 0.0
    %v2445 = vsel %vm2285, %v2331, 0.0
    %v2446 = vsel %vm2286, %v2335, 0.0
    %v2447 = vsel %vm2287, %v2339, 0.0
    %v2448 = vsel %vm2288, %v2343, 0.0
    %v2449 = vsel %vm2289, %v2347, 0.0
    %v2450 = vsel %vm2290, %v2351, 0.0
    %v2451 = vsel %vm2291, %v2355, 0.0
    %v2452 = vsel %vm2292, %v2359, 0.0
    %v2453 = vsel %vm2293, %v2363, 0.0
    %v2454 = vsel %vm2294, %v2367, 0.0
    %v2455 = vsel %vm2295, %v2371, 0.0
    %v2456 = vsel %vm2296, %v2375, 0.0
    %v2457 = vsel %vm2297, %v2379, 0.0
    %v2458 = vsel %vm2298, %v2383, 0.0
    %v2459 = vsel %vm2299, %v2387, 0.0
    %v2460 = vsel %vm2300, %v2391, 0.0
    %v2461 = vsel %vm2301, %v2395, 0.0
    %v2462 = vsel %vm2302, %v2399, 0.0
    %v2463 = vsel %vm2303, %v2403, 0.0
    %v2464 = vsel %vm2304, %v2407, 0.0
    %v2465 = vsel %vm2305, %v2411, 0.0
    %v2466 = vsel %vm2306, %v2415, 0.0
    %v2467 = vsel %vm2307, %v2419, 0.0
    %v2468 = vsel %vm2308, %v2423, 0.0
    %v2469 = vsel %vm2309, %v2427, 0.0
    %v2470 = vsel %vm2310, %v2431, 0.0
    %v2471 = vsel %vm2311, %v2435, 0.0
    %v2472 = vsel %vm2312, %v2439, 0.0
    %v2473 = vadd.f32 %v2153, %v2441
    %v2474 = vadd.f32 %v2154, %v2442
    %v2475 = vadd.f32 %v2155, %v2443
    %v2476 = vadd.f32 %v2156, %v2444
    %v2477 = vadd.f32 %v2157, %v2445
    %v2478 = vadd.f32 %v2158, %v2446
    %v2479 = vadd.f32 %v2159, %v2447
    %v2480 = vadd.f32 %v2160, %v2448
    %v2481 = vadd.f32 %v2161, %v2449
    %v2482 = vadd.f32 %v2162, %v2450
    %v2483 = vadd.f32 %v2163, %v2451
    %v2484 = vadd.f32 %v2164, %v2452
    %v2485 = vadd.f32 %v2165, %v2453
    %v2486 = vadd.f32 %v2166, %v2454
    %v2487 = vadd.f32 %v2167, %v2455
    %v2488 = vadd.f32 %v2168, %v2456
    %v2489 = vadd.f32 %v2169, %v2457
    %v2490 = vadd.f32 %v2170, %v2458
    %v2491 = vadd.f32 %v2171, %v2459
    %v2492 = vadd.f32 %v2172, %v2460
    %v2493 = vadd.f32 %v2173, %v2461
    %v2494 = vadd.f32 %v2174, %v2462
    %v2495 = vadd.f32 %v2175, %v2463
    %v2496 = vadd.f32 %v2176, %v2464
    %v2497 = vadd.f32 %v2177, %v2465
    %v2498 = vadd.f32 %v2178, %v2466
    %v2499 = vadd.f32 %v2179, %v2467
    %v2500 = vadd.f32 %v2180, %v2468
    %v2501 = vadd.f32 %v2181, %v2469
    %v2502 = vadd.f32 %v2182, %v2470
    %v2503 = vadd.f32 %v2183, %v2471
    %v2504 = vadd.f32 %v2184, %v2472
    %2505 = vset.pattern.permute.xlu0 6
    %2506 = vperm.xlu0 %2505, %v31
    %v2507 = vpop.permute.xlu0 %2506
    %2508 = vset.pattern.permute.xlu0 6
    %2509 = vperm.xlu0 %2508, %v32
    %v2510 = vpop.permute.xlu0 %2509
    %2511 = vset.pattern.permute.xlu0 6
    %2512 = vperm.xlu0 %2511, %v33
    %v2513 = vpop.permute.xlu0 %2512
    %2514 = vset.pattern.permute.xlu0 6
    %2515 = vperm.xlu0 %2514, %v34
    %v2516 = vpop.permute.xlu0 %2515
    %2517 = vset.pattern.permute.xlu0 6
    %2518 = vperm.xlu0 %2517, %v35
    %v2519 = vpop.permute.xlu0 %2518
    %2520 = vset.pattern.permute.xlu0 6
    %2521 = vperm.xlu0 %2520, %v36
    %v2522 = vpop.permute.xlu0 %2521
    %2523 = vset.pattern.permute.xlu0 6
    %2524 = vperm.xlu0 %2523, %v37
    %v2525 = vpop.permute.xlu0 %2524
    %2526 = vset.pattern.permute.xlu0 6
    %2527 = vperm.xlu0 %2526, %v38
    %v2528 = vpop.permute.xlu0 %2527
    %2529 = vset.pattern.permute.xlu0 6
    %2530 = vperm.xlu0 %2529, %v39
    %v2531 = vpop.permute.xlu0 %2530
    %2532 = vset.pattern.permute.xlu0 6
    %2533 = vperm.xlu0 %2532, %v40
    %v2534 = vpop.permute.xlu0 %2533
    %2535 = vset.pattern.permute.xlu0 6
    %2536 = vperm.xlu0 %2535, %v41
    %v2537 = vpop.permute.xlu0 %2536
    %2538 = vset.pattern.permute.xlu0 6
    %2539 = vperm.xlu0 %2538, %v42
    %v2540 = vpop.permute.xlu0 %2539
    %2541 = vset.pattern.permute.xlu0 6
    %2542 = vperm.xlu0 %2541, %v43
    %v2543 = vpop.permute.xlu0 %2542
    %2544 = vset.pattern.permute.xlu0 6
    %2545 = vperm.xlu0 %2544, %v44
    %v2546 = vpop.permute.xlu0 %2545
    %2547 = vset.pattern.permute.xlu0 6
    %2548 = vperm.xlu0 %2547, %v45
    %v2549 = vpop.permute.xlu0 %2548
    %2550 = vset.pattern.permute.xlu0 6
    %2551 = vperm.xlu0 %2550, %v46
    %v2552 = vpop.permute.xlu0 %2551
    %2553 = vset.pattern.permute.xlu0 6
    %2554 = vperm.xlu0 %2553, %v47
    %v2555 = vpop.permute.xlu0 %2554
    %2556 = vset.pattern.permute.xlu0 6
    %2557 = vperm.xlu0 %2556, %v48
    %v2558 = vpop.permute.xlu0 %2557
    %2559 = vset.pattern.permute.xlu0 6
    %2560 = vperm.xlu0 %2559, %v49
    %v2561 = vpop.permute.xlu0 %2560
    %2562 = vset.pattern.permute.xlu0 6
    %2563 = vperm.xlu0 %2562, %v50
    %v2564 = vpop.permute.xlu0 %2563
    %2565 = vset.pattern.permute.xlu0 6
    %2566 = vperm.xlu0 %2565, %v51
    %v2567 = vpop.permute.xlu0 %2566
    %2568 = vset.pattern.permute.xlu0 6
    %2569 = vperm.xlu0 %2568, %v52
    %v2570 = vpop.permute.xlu0 %2569
    %2571 = vset.pattern.permute.xlu0 6
    %2572 = vperm.xlu0 %2571, %v53
    %v2573 = vpop.permute.xlu0 %2572
    %2574 = vset.pattern.permute.xlu0 6
    %2575 = vperm.xlu0 %2574, %v54
    %v2576 = vpop.permute.xlu0 %2575
    %2577 = vset.pattern.permute.xlu0 6
    %2578 = vperm.xlu0 %2577, %v55
    %v2579 = vpop.permute.xlu0 %2578
    %2580 = vset.pattern.permute.xlu0 6
    %2581 = vperm.xlu0 %2580, %v56
    %v2582 = vpop.permute.xlu0 %2581
    %2583 = vset.pattern.permute.xlu0 6
    %2584 = vperm.xlu0 %2583, %v57
    %v2585 = vpop.permute.xlu0 %2584
    %2586 = vset.pattern.permute.xlu0 6
    %2587 = vperm.xlu0 %2586, %v58
    %v2588 = vpop.permute.xlu0 %2587
    %2589 = vset.pattern.permute.xlu0 6
    %2590 = vperm.xlu0 %2589, %v59
    %v2591 = vpop.permute.xlu0 %2590
    %2592 = vset.pattern.permute.xlu0 6
    %2593 = vperm.xlu0 %2592, %v60
    %v2594 = vpop.permute.xlu0 %2593
    %2595 = vset.pattern.permute.xlu0 6
    %2596 = vperm.xlu0 %2595, %v61
    %v2597 = vpop.permute.xlu0 %2596
    %2598 = vset.pattern.permute.xlu0 6
    %2599 = vperm.xlu0 %2598, %v62
    %v2600 = vpop.permute.xlu0 %2599
    %vm2601 = vcmp.eq.s32.totalorder %v104, %v2507
    %vm2602 = vcmp.eq.s32.totalorder %v104, %v2510
    %vm2603 = vcmp.eq.s32.totalorder %v104, %v2513
    %vm2604 = vcmp.eq.s32.totalorder %v104, %v2516
    %vm2605 = vcmp.eq.s32.totalorder %v104, %v2519
    %vm2606 = vcmp.eq.s32.totalorder %v104, %v2522
    %vm2607 = vcmp.eq.s32.totalorder %v104, %v2525
    %vm2608 = vcmp.eq.s32.totalorder %v104, %v2528
    %vm2609 = vcmp.eq.s32.totalorder %v104, %v2531
    %vm2610 = vcmp.eq.s32.totalorder %v104, %v2534
    %vm2611 = vcmp.eq.s32.totalorder %v104, %v2537
    %vm2612 = vcmp.eq.s32.totalorder %v104, %v2540
    %vm2613 = vcmp.eq.s32.totalorder %v104, %v2543
    %vm2614 = vcmp.eq.s32.totalorder %v104, %v2546
    %vm2615 = vcmp.eq.s32.totalorder %v104, %v2549
    %vm2616 = vcmp.eq.s32.totalorder %v104, %v2552
    %vm2617 = vcmp.eq.s32.totalorder %v104, %v2555
    %vm2618 = vcmp.eq.s32.totalorder %v104, %v2558
    %vm2619 = vcmp.eq.s32.totalorder %v104, %v2561
    %vm2620 = vcmp.eq.s32.totalorder %v104, %v2564
    %vm2621 = vcmp.eq.s32.totalorder %v104, %v2567
    %vm2622 = vcmp.eq.s32.totalorder %v104, %v2570
    %vm2623 = vcmp.eq.s32.totalorder %v104, %v2573
    %vm2624 = vcmp.eq.s32.totalorder %v104, %v2576
    %vm2625 = vcmp.eq.s32.totalorder %v104, %v2579
    %vm2626 = vcmp.eq.s32.totalorder %v104, %v2582
    %vm2627 = vcmp.eq.s32.totalorder %v104, %v2585
    %vm2628 = vcmp.eq.s32.totalorder %v104, %v2588
    %vm2629 = vcmp.eq.s32.totalorder %v104, %v2591
    %vm2630 = vcmp.eq.s32.totalorder %v104, %v2594
    %vm2631 = vcmp.eq.s32.totalorder %v104, %v2597
    %vm2632 = vcmp.eq.s32.totalorder %v104, %v2600
    %2633 = vset.pattern.permute.xlu0 6
    %2634 = vperm.xlu0 %2633, %v521
    %v2635 = vpop.permute.xlu0 %2634
    %2637 = vset.pattern.permute.xlu0 6
    %2638 = vperm.xlu0 %2637, %v522
    %v2639 = vpop.permute.xlu0 %2638
    %2641 = vset.pattern.permute.xlu0 6
    %2642 = vperm.xlu0 %2641, %v523
    %v2643 = vpop.permute.xlu0 %2642
    %2645 = vset.pattern.permute.xlu0 6
    %2646 = vperm.xlu0 %2645, %v524
    %v2647 = vpop.permute.xlu0 %2646
    %2649 = vset.pattern.permute.xlu0 6
    %2650 = vperm.xlu0 %2649, %v525
    %v2651 = vpop.permute.xlu0 %2650
    %2653 = vset.pattern.permute.xlu0 6
    %2654 = vperm.xlu0 %2653, %v526
    %v2655 = vpop.permute.xlu0 %2654
    %2657 = vset.pattern.permute.xlu0 6
    %2658 = vperm.xlu0 %2657, %v527
    %v2659 = vpop.permute.xlu0 %2658
    %2661 = vset.pattern.permute.xlu0 6
    %2662 = vperm.xlu0 %2661, %v528
    %v2663 = vpop.permute.xlu0 %2662
    %2665 = vset.pattern.permute.xlu0 6
    %2666 = vperm.xlu0 %2665, %v529
    %v2667 = vpop.permute.xlu0 %2666
    %2669 = vset.pattern.permute.xlu0 6
    %2670 = vperm.xlu0 %2669, %v530
    %v2671 = vpop.permute.xlu0 %2670
    %2673 = vset.pattern.permute.xlu0 6
    %2674 = vperm.xlu0 %2673, %v531
    %v2675 = vpop.permute.xlu0 %2674
    %2677 = vset.pattern.permute.xlu0 6
    %2678 = vperm.xlu0 %2677, %v532
    %v2679 = vpop.permute.xlu0 %2678
    %2681 = vset.pattern.permute.xlu0 6
    %2682 = vperm.xlu0 %2681, %v533
    %v2683 = vpop.permute.xlu0 %2682
    %2685 = vset.pattern.permute.xlu0 6
    %2686 = vperm.xlu0 %2685, %v534
    %v2687 = vpop.permute.xlu0 %2686
    %2689 = vset.pattern.permute.xlu0 6
    %2690 = vperm.xlu0 %2689, %v535
    %v2691 = vpop.permute.xlu0 %2690
    %2693 = vset.pattern.permute.xlu0 6
    %2694 = vperm.xlu0 %2693, %v536
    %v2695 = vpop.permute.xlu0 %2694
    %2697 = vset.pattern.permute.xlu0 6
    %2698 = vperm.xlu0 %2697, %v537
    %v2699 = vpop.permute.xlu0 %2698
    %2701 = vset.pattern.permute.xlu0 6
    %2702 = vperm.xlu0 %2701, %v538
    %v2703 = vpop.permute.xlu0 %2702
    %2705 = vset.pattern.permute.xlu0 6
    %2706 = vperm.xlu0 %2705, %v539
    %v2707 = vpop.permute.xlu0 %2706
    %2709 = vset.pattern.permute.xlu0 6
    %2710 = vperm.xlu0 %2709, %v540
    %v2711 = vpop.permute.xlu0 %2710
    %2713 = vset.pattern.permute.xlu0 6
    %2714 = vperm.xlu0 %2713, %v541
    %v2715 = vpop.permute.xlu0 %2714
    %2717 = vset.pattern.permute.xlu0 6
    %2718 = vperm.xlu0 %2717, %v542
    %v2719 = vpop.permute.xlu0 %2718
    %2721 = vset.pattern.permute.xlu0 6
    %2722 = vperm.xlu0 %2721, %v543
    %v2723 = vpop.permute.xlu0 %2722
    %2725 = vset.pattern.permute.xlu0 6
    %2726 = vperm.xlu0 %2725, %v544
    %v2727 = vpop.permute.xlu0 %2726
    %2729 = vset.pattern.permute.xlu0 6
    %2730 = vperm.xlu0 %2729, %v545
    %v2731 = vpop.permute.xlu0 %2730
    %2733 = vset.pattern.permute.xlu0 6
    %2734 = vperm.xlu0 %2733, %v546
    %v2735 = vpop.permute.xlu0 %2734
    %2737 = vset.pattern.permute.xlu0 6
    %2738 = vperm.xlu0 %2737, %v547
    %v2739 = vpop.permute.xlu0 %2738
    %2741 = vset.pattern.permute.xlu0 6
    %2742 = vperm.xlu0 %2741, %v548
    %v2743 = vpop.permute.xlu0 %2742
    %2745 = vset.pattern.permute.xlu0 6
    %2746 = vperm.xlu0 %2745, %v549
    %v2747 = vpop.permute.xlu0 %2746
    %2749 = vset.pattern.permute.xlu0 6
    %2750 = vperm.xlu0 %2749, %v550
    %v2751 = vpop.permute.xlu0 %2750
    %2753 = vset.pattern.permute.xlu0 6
    %2754 = vperm.xlu0 %2753, %v551
    %v2755 = vpop.permute.xlu0 %2754
    %2757 = vset.pattern.permute.xlu0 6
    %2758 = vperm.xlu0 %2757, %v552
    %v2759 = vpop.permute.xlu0 %2758
    %v2761 = vsel %vm2601, %v2635, 0.0
    %v2762 = vsel %vm2602, %v2639, 0.0
    %v2763 = vsel %vm2603, %v2643, 0.0
    %v2764 = vsel %vm2604, %v2647, 0.0
    %v2765 = vsel %vm2605, %v2651, 0.0
    %v2766 = vsel %vm2606, %v2655, 0.0
    %v2767 = vsel %vm2607, %v2659, 0.0
    %v2768 = vsel %vm2608, %v2663, 0.0
    %v2769 = vsel %vm2609, %v2667, 0.0
    %v2770 = vsel %vm2610, %v2671, 0.0
    %v2771 = vsel %vm2611, %v2675, 0.0
    %v2772 = vsel %vm2612, %v2679, 0.0
    %v2773 = vsel %vm2613, %v2683, 0.0
    %v2774 = vsel %vm2614, %v2687, 0.0
    %v2775 = vsel %vm2615, %v2691, 0.0
    %v2776 = vsel %vm2616, %v2695, 0.0
    %v2777 = vsel %vm2617, %v2699, 0.0
    %v2778 = vsel %vm2618, %v2703, 0.0
    %v2779 = vsel %vm2619, %v2707, 0.0
    %v2780 = vsel %vm2620, %v2711, 0.0
    %v2781 = vsel %vm2621, %v2715, 0.0
    %v2782 = vsel %vm2622, %v2719, 0.0
    %v2783 = vsel %vm2623, %v2723, 0.0
    %v2784 = vsel %vm2624, %v2727, 0.0
    %v2785 = vsel %vm2625, %v2731, 0.0
    %v2786 = vsel %vm2626, %v2735, 0.0
    %v2787 = vsel %vm2627, %v2739, 0.0
    %v2788 = vsel %vm2628, %v2743, 0.0
    %v2789 = vsel %vm2629, %v2747, 0.0
    %v2790 = vsel %vm2630, %v2751, 0.0
    %v2791 = vsel %vm2631, %v2755, 0.0
    %v2792 = vsel %vm2632, %v2759, 0.0
    %v2793 = vadd.f32 %v2473, %v2761
    %v2794 = vadd.f32 %v2474, %v2762
    %v2795 = vadd.f32 %v2475, %v2763
    %v2796 = vadd.f32 %v2476, %v2764
    %v2797 = vadd.f32 %v2477, %v2765
    %v2798 = vadd.f32 %v2478, %v2766
    %v2799 = vadd.f32 %v2479, %v2767
    %v2800 = vadd.f32 %v2480, %v2768
    %v2801 = vadd.f32 %v2481, %v2769
    %v2802 = vadd.f32 %v2482, %v2770
    %v2803 = vadd.f32 %v2483, %v2771
    %v2804 = vadd.f32 %v2484, %v2772
    %v2805 = vadd.f32 %v2485, %v2773
    %v2806 = vadd.f32 %v2486, %v2774
    %v2807 = vadd.f32 %v2487, %v2775
    %v2808 = vadd.f32 %v2488, %v2776
    %v2809 = vadd.f32 %v2489, %v2777
    %v2810 = vadd.f32 %v2490, %v2778
    %v2811 = vadd.f32 %v2491, %v2779
    %v2812 = vadd.f32 %v2492, %v2780
    %v2813 = vadd.f32 %v2493, %v2781
    %v2814 = vadd.f32 %v2494, %v2782
    %v2815 = vadd.f32 %v2495, %v2783
    %v2816 = vadd.f32 %v2496, %v2784
    %v2817 = vadd.f32 %v2497, %v2785
    %v2818 = vadd.f32 %v2498, %v2786
    %v2819 = vadd.f32 %v2499, %v2787
    %v2820 = vadd.f32 %v2500, %v2788
    %v2821 = vadd.f32 %v2501, %v2789
    %v2822 = vadd.f32 %v2502, %v2790
    %v2823 = vadd.f32 %v2503, %v2791
    %v2824 = vadd.f32 %v2504, %v2792
    %2825 = vset.pattern.permute.xlu0 7
    %2826 = vperm.xlu0 %2825, %v31
    %v2827 = vpop.permute.xlu0 %2826
    %2828 = vset.pattern.permute.xlu0 7
    %2829 = vperm.xlu0 %2828, %v32
    %v2830 = vpop.permute.xlu0 %2829
    %2831 = vset.pattern.permute.xlu0 7
    %2832 = vperm.xlu0 %2831, %v33
    %v2833 = vpop.permute.xlu0 %2832
    %2834 = vset.pattern.permute.xlu0 7
    %2835 = vperm.xlu0 %2834, %v34
    %v2836 = vpop.permute.xlu0 %2835
    %2837 = vset.pattern.permute.xlu0 7
    %2838 = vperm.xlu0 %2837, %v35
    %v2839 = vpop.permute.xlu0 %2838
    %2840 = vset.pattern.permute.xlu0 7
    %2841 = vperm.xlu0 %2840, %v36
    %v2842 = vpop.permute.xlu0 %2841
    %2843 = vset.pattern.permute.xlu0 7
    %2844 = vperm.xlu0 %2843, %v37
    %v2845 = vpop.permute.xlu0 %2844
    %2846 = vset.pattern.permute.xlu0 7
    %2847 = vperm.xlu0 %2846, %v38
    %v2848 = vpop.permute.xlu0 %2847
    %2849 = vset.pattern.permute.xlu0 7
    %2850 = vperm.xlu0 %2849, %v39
    %v2851 = vpop.permute.xlu0 %2850
    %2852 = vset.pattern.permute.xlu0 7
    %2853 = vperm.xlu0 %2852, %v40
    %v2854 = vpop.permute.xlu0 %2853
    %2855 = vset.pattern.permute.xlu0 7
    %2856 = vperm.xlu0 %2855, %v41
    %v2857 = vpop.permute.xlu0 %2856
    %2858 = vset.pattern.permute.xlu0 7
    %2859 = vperm.xlu0 %2858, %v42
    %v2860 = vpop.permute.xlu0 %2859
    %2861 = vset.pattern.permute.xlu0 7
    %2862 = vperm.xlu0 %2861, %v43
    %v2863 = vpop.permute.xlu0 %2862
    %2864 = vset.pattern.permute.xlu0 7
    %2865 = vperm.xlu0 %2864, %v44
    %v2866 = vpop.permute.xlu0 %2865
    %2867 = vset.pattern.permute.xlu0 7
    %2868 = vperm.xlu0 %2867, %v45
    %v2869 = vpop.permute.xlu0 %2868
    %2870 = vset.pattern.permute.xlu0 7
    %2871 = vperm.xlu0 %2870, %v46
    %v2872 = vpop.permute.xlu0 %2871
    %2873 = vset.pattern.permute.xlu0 7
    %2874 = vperm.xlu0 %2873, %v47
    %v2875 = vpop.permute.xlu0 %2874
    %2876 = vset.pattern.permute.xlu0 7
    %2877 = vperm.xlu0 %2876, %v48
    %v2878 = vpop.permute.xlu0 %2877
    %2879 = vset.pattern.permute.xlu0 7
    %2880 = vperm.xlu0 %2879, %v49
    %v2881 = vpop.permute.xlu0 %2880
    %2882 = vset.pattern.permute.xlu0 7
    %2883 = vperm.xlu0 %2882, %v50
    %v2884 = vpop.permute.xlu0 %2883
    %2885 = vset.pattern.permute.xlu0 7
    %2886 = vperm.xlu0 %2885, %v51
    %v2887 = vpop.permute.xlu0 %2886
    %2888 = vset.pattern.permute.xlu0 7
    %2889 = vperm.xlu0 %2888, %v52
    %v2890 = vpop.permute.xlu0 %2889
    %2891 = vset.pattern.permute.xlu0 7
    %2892 = vperm.xlu0 %2891, %v53
    %v2893 = vpop.permute.xlu0 %2892
    %2894 = vset.pattern.permute.xlu0 7
    %2895 = vperm.xlu0 %2894, %v54
    %v2896 = vpop.permute.xlu0 %2895
    %2897 = vset.pattern.permute.xlu0 7
    %2898 = vperm.xlu0 %2897, %v55
    %v2899 = vpop.permute.xlu0 %2898
    %2900 = vset.pattern.permute.xlu0 7
    %2901 = vperm.xlu0 %2900, %v56
    %v2902 = vpop.permute.xlu0 %2901
    %2903 = vset.pattern.permute.xlu0 7
    %2904 = vperm.xlu0 %2903, %v57
    %v2905 = vpop.permute.xlu0 %2904
    %2906 = vset.pattern.permute.xlu0 7
    %2907 = vperm.xlu0 %2906, %v58
    %v2908 = vpop.permute.xlu0 %2907
    %2909 = vset.pattern.permute.xlu0 7
    %2910 = vperm.xlu0 %2909, %v59
    %v2911 = vpop.permute.xlu0 %2910
    %2912 = vset.pattern.permute.xlu0 7
    %2913 = vperm.xlu0 %2912, %v60
    %v2914 = vpop.permute.xlu0 %2913
    %2915 = vset.pattern.permute.xlu0 7
    %2916 = vperm.xlu0 %2915, %v61
    %v2917 = vpop.permute.xlu0 %2916
    %2918 = vset.pattern.permute.xlu0 7
    %2919 = vperm.xlu0 %2918, %v62
    %v2920 = vpop.permute.xlu0 %2919
    %vm2921 = vcmp.eq.s32.totalorder %v104, %v2827
    %vm2922 = vcmp.eq.s32.totalorder %v104, %v2830
    %vm2923 = vcmp.eq.s32.totalorder %v104, %v2833
    %vm2924 = vcmp.eq.s32.totalorder %v104, %v2836
    %vm2925 = vcmp.eq.s32.totalorder %v104, %v2839
    %vm2926 = vcmp.eq.s32.totalorder %v104, %v2842
    %vm2927 = vcmp.eq.s32.totalorder %v104, %v2845
    %vm2928 = vcmp.eq.s32.totalorder %v104, %v2848
    %vm2929 = vcmp.eq.s32.totalorder %v104, %v2851
    %vm2930 = vcmp.eq.s32.totalorder %v104, %v2854
    %vm2931 = vcmp.eq.s32.totalorder %v104, %v2857
    %vm2932 = vcmp.eq.s32.totalorder %v104, %v2860
    %vm2933 = vcmp.eq.s32.totalorder %v104, %v2863
    %vm2934 = vcmp.eq.s32.totalorder %v104, %v2866
    %vm2935 = vcmp.eq.s32.totalorder %v104, %v2869
    %vm2936 = vcmp.eq.s32.totalorder %v104, %v2872
    %vm2937 = vcmp.eq.s32.totalorder %v104, %v2875
    %vm2938 = vcmp.eq.s32.totalorder %v104, %v2878
    %vm2939 = vcmp.eq.s32.totalorder %v104, %v2881
    %vm2940 = vcmp.eq.s32.totalorder %v104, %v2884
    %vm2941 = vcmp.eq.s32.totalorder %v104, %v2887
    %vm2942 = vcmp.eq.s32.totalorder %v104, %v2890
    %vm2943 = vcmp.eq.s32.totalorder %v104, %v2893
    %vm2944 = vcmp.eq.s32.totalorder %v104, %v2896
    %vm2945 = vcmp.eq.s32.totalorder %v104, %v2899
    %vm2946 = vcmp.eq.s32.totalorder %v104, %v2902
    %vm2947 = vcmp.eq.s32.totalorder %v104, %v2905
    %vm2948 = vcmp.eq.s32.totalorder %v104, %v2908
    %vm2949 = vcmp.eq.s32.totalorder %v104, %v2911
    %vm2950 = vcmp.eq.s32.totalorder %v104, %v2914
    %vm2951 = vcmp.eq.s32.totalorder %v104, %v2917
    %vm2952 = vcmp.eq.s32.totalorder %v104, %v2920
    %2953 = vset.pattern.permute.xlu0 7
    %2954 = vperm.xlu0 %2953, %v521
    %v2955 = vpop.permute.xlu0 %2954
    %2957 = vset.pattern.permute.xlu0 7
    %2958 = vperm.xlu0 %2957, %v522
    %v2959 = vpop.permute.xlu0 %2958
    %2961 = vset.pattern.permute.xlu0 7
    %2962 = vperm.xlu0 %2961, %v523
    %v2963 = vpop.permute.xlu0 %2962
    %2965 = vset.pattern.permute.xlu0 7
    %2966 = vperm.xlu0 %2965, %v524
    %v2967 = vpop.permute.xlu0 %2966
    %2969 = vset.pattern.permute.xlu0 7
    %2970 = vperm.xlu0 %2969, %v525
    %v2971 = vpop.permute.xlu0 %2970
    %2973 = vset.pattern.permute.xlu0 7
    %2974 = vperm.xlu0 %2973, %v526
    %v2975 = vpop.permute.xlu0 %2974
    %2977 = vset.pattern.permute.xlu0 7
    %2978 = vperm.xlu0 %2977, %v527
    %v2979 = vpop.permute.xlu0 %2978
    %2981 = vset.pattern.permute.xlu0 7
    %2982 = vperm.xlu0 %2981, %v528
    %v2983 = vpop.permute.xlu0 %2982
    %2985 = vset.pattern.permute.xlu0 7
    %2986 = vperm.xlu0 %2985, %v529
    %v2987 = vpop.permute.xlu0 %2986
    %2989 = vset.pattern.permute.xlu0 7
    %2990 = vperm.xlu0 %2989, %v530
    %v2991 = vpop.permute.xlu0 %2990
    %2993 = vset.pattern.permute.xlu0 7
    %2994 = vperm.xlu0 %2993, %v531
    %v2995 = vpop.permute.xlu0 %2994
    %2997 = vset.pattern.permute.xlu0 7
    %2998 = vperm.xlu0 %2997, %v532
    %v2999 = vpop.permute.xlu0 %2998
    %3001 = vset.pattern.permute.xlu0 7
    %3002 = vperm.xlu0 %3001, %v533
    %v3003 = vpop.permute.xlu0 %3002
    %3005 = vset.pattern.permute.xlu0 7
    %3006 = vperm.xlu0 %3005, %v534
    %v3007 = vpop.permute.xlu0 %3006
    %3009 = vset.pattern.permute.xlu0 7
    %3010 = vperm.xlu0 %3009, %v535
    %v3011 = vpop.permute.xlu0 %3010
    %3013 = vset.pattern.permute.xlu0 7
    %3014 = vperm.xlu0 %3013, %v536
    %v3015 = vpop.permute.xlu0 %3014
    %3017 = vset.pattern.permute.xlu0 7
    %3018 = vperm.xlu0 %3017, %v537
    %v3019 = vpop.permute.xlu0 %3018
    %3021 = vset.pattern.permute.xlu0 7
    %3022 = vperm.xlu0 %3021, %v538
    %v3023 = vpop.permute.xlu0 %3022
    %3025 = vset.pattern.permute.xlu0 7
    %3026 = vperm.xlu0 %3025, %v539
    %v3027 = vpop.permute.xlu0 %3026
    %3029 = vset.pattern.permute.xlu0 7
    %3030 = vperm.xlu0 %3029, %v540
    %v3031 = vpop.permute.xlu0 %3030
    %3033 = vset.pattern.permute.xlu0 7
    %3034 = vperm.xlu0 %3033, %v541
    %v3035 = vpop.permute.xlu0 %3034
    %3037 = vset.pattern.permute.xlu0 7
    %3038 = vperm.xlu0 %3037, %v542
    %v3039 = vpop.permute.xlu0 %3038
    %3041 = vset.pattern.permute.xlu0 7
    %3042 = vperm.xlu0 %3041, %v543
    %v3043 = vpop.permute.xlu0 %3042
    %3045 = vset.pattern.permute.xlu0 7
    %3046 = vperm.xlu0 %3045, %v544
    %v3047 = vpop.permute.xlu0 %3046
    %3049 = vset.pattern.permute.xlu0 7
    %3050 = vperm.xlu0 %3049, %v545
    %v3051 = vpop.permute.xlu0 %3050
    %3053 = vset.pattern.permute.xlu0 7
    %3054 = vperm.xlu0 %3053, %v546
    %v3055 = vpop.permute.xlu0 %3054
    %3057 = vset.pattern.permute.xlu0 7
    %3058 = vperm.xlu0 %3057, %v547
    %v3059 = vpop.permute.xlu0 %3058
    %3061 = vset.pattern.permute.xlu0 7
    %3062 = vperm.xlu0 %3061, %v548
    %v3063 = vpop.permute.xlu0 %3062
    %3065 = vset.pattern.permute.xlu0 7
    %3066 = vperm.xlu0 %3065, %v549
    %v3067 = vpop.permute.xlu0 %3066
    %3069 = vset.pattern.permute.xlu0 7
    %3070 = vperm.xlu0 %3069, %v550
    %v3071 = vpop.permute.xlu0 %3070
    %3073 = vset.pattern.permute.xlu0 7
    %3074 = vperm.xlu0 %3073, %v551
    %v3075 = vpop.permute.xlu0 %3074
    %3077 = vset.pattern.permute.xlu0 7
    %3078 = vperm.xlu0 %3077, %v552
    %v3079 = vpop.permute.xlu0 %3078
    %v3081 = vsel %vm2921, %v2955, 0.0
    %v3082 = vsel %vm2922, %v2959, 0.0
    %v3083 = vsel %vm2923, %v2963, 0.0
    %v3084 = vsel %vm2924, %v2967, 0.0
    %v3085 = vsel %vm2925, %v2971, 0.0
    %v3086 = vsel %vm2926, %v2975, 0.0
    %v3087 = vsel %vm2927, %v2979, 0.0
    %v3088 = vsel %vm2928, %v2983, 0.0
    %v3089 = vsel %vm2929, %v2987, 0.0
    %v3090 = vsel %vm2930, %v2991, 0.0
    %v3091 = vsel %vm2931, %v2995, 0.0
    %v3092 = vsel %vm2932, %v2999, 0.0
    %v3093 = vsel %vm2933, %v3003, 0.0
    %v3094 = vsel %vm2934, %v3007, 0.0
    %v3095 = vsel %vm2935, %v3011, 0.0
    %v3096 = vsel %vm2936, %v3015, 0.0
    %v3097 = vsel %vm2937, %v3019, 0.0
    %v3098 = vsel %vm2938, %v3023, 0.0
    %v3099 = vsel %vm2939, %v3027, 0.0
    %v3100 = vsel %vm2940, %v3031, 0.0
    %v3101 = vsel %vm2941, %v3035, 0.0
    %v3102 = vsel %vm2942, %v3039, 0.0
    %v3103 = vsel %vm2943, %v3043, 0.0
    %v3104 = vsel %vm2944, %v3047, 0.0
    %v3105 = vsel %vm2945, %v3051, 0.0
    %v3106 = vsel %vm2946, %v3055, 0.0
    %v3107 = vsel %vm2947, %v3059, 0.0
    %v3108 = vsel %vm2948, %v3063, 0.0
    %v3109 = vsel %vm2949, %v3067, 0.0
    %v3110 = vsel %vm2950, %v3071, 0.0
    %v3111 = vsel %vm2951, %v3075, 0.0
    %v3112 = vsel %vm2952, %v3079, 0.0
    %v3113 = vadd.f32 %v2793, %v3081
    %v3114 = vadd.f32 %v2794, %v3082
    %v3115 = vadd.f32 %v2795, %v3083
    %v3116 = vadd.f32 %v2796, %v3084
    %v3117 = vadd.f32 %v2797, %v3085
    %v3118 = vadd.f32 %v2798, %v3086
    %v3119 = vadd.f32 %v2799, %v3087
    %v3120 = vadd.f32 %v2800, %v3088
    %v3121 = vadd.f32 %v2801, %v3089
    %v3122 = vadd.f32 %v2802, %v3090
    %v3123 = vadd.f32 %v2803, %v3091
    %v3124 = vadd.f32 %v2804, %v3092
    %v3125 = vadd.f32 %v2805, %v3093
    %v3126 = vadd.f32 %v2806, %v3094
    %v3127 = vadd.f32 %v2807, %v3095
    %v3128 = vadd.f32 %v2808, %v3096
    %v3129 = vadd.f32 %v2809, %v3097
    %v3130 = vadd.f32 %v2810, %v3098
    %v3131 = vadd.f32 %v2811, %v3099
    %v3132 = vadd.f32 %v2812, %v3100
    %v3133 = vadd.f32 %v2813, %v3101
    %v3134 = vadd.f32 %v2814, %v3102
    %v3135 = vadd.f32 %v2815, %v3103
    %v3136 = vadd.f32 %v2816, %v3104
    %v3137 = vadd.f32 %v2817, %v3105
    %v3138 = vadd.f32 %v2818, %v3106
    %v3139 = vadd.f32 %v2819, %v3107
    %v3140 = vadd.f32 %v2820, %v3108
    %v3141 = vadd.f32 %v2821, %v3109
    %v3142 = vadd.f32 %v2822, %v3110
    %v3143 = vadd.f32 %v2823, %v3111
    %v3144 = vadd.f32 %v2824, %v3112
    %v3145 = vpack.c.bf16 %v3114, %v3113
    %v3146 = vpack.c.bf16 %v3116, %v3115
    %v3147 = vpack.c.bf16 %v3118, %v3117
    %v3148 = vpack.c.bf16 %v3120, %v3119
    %v3149 = vpack.c.bf16 %v3122, %v3121
    %v3150 = vpack.c.bf16 %v3124, %v3123
    %v3151 = vpack.c.bf16 %v3126, %v3125
    %v3152 = vpack.c.bf16 %v3128, %v3127
    %v3153 = vpack.c.bf16 %v3130, %v3129
    %v3154 = vpack.c.bf16 %v3132, %v3131
    %v3155 = vpack.c.bf16 %v3134, %v3133
    %v3156 = vpack.c.bf16 %v3136, %v3135
    %v3157 = vpack.c.bf16 %v3138, %v3137
    %v3158 = vpack.c.bf16 %v3140, %v3139
    %v3159 = vpack.c.bf16 %v3142, %v3141
    %v3160 = vpack.c.bf16 %v3144, %v3143
    %v3161 = vld [vmem:[%s3] sm:$0xf]
    %v3162 = vld [vmem:[%s3 + $0x4] sm:$0xf]
    %v3163 = vld [vmem:[%s3 + $0x8] sm:$0xf]
    %v3164 = vld [vmem:[%s3 + $0xc] sm:$0xf]
    %v3165 = vld [vmem:[%s3 + $0x10] sm:$0xf]
    %v3166 = vld [vmem:[%s3 + $0x14] sm:$0xf]
    %v3167 = vld [vmem:[%s3 + $0x18] sm:$0xf]
    %v3168 = vld [vmem:[%s3 + $0x1c] sm:$0xf]
    %v3169 = vld [vmem:[%s3 + $0x20] sm:$0xf]
    %v3170 = vld [vmem:[%s3 + $0x24] sm:$0xf]
    %v3171 = vld [vmem:[%s3 + $0x28] sm:$0xf]
    %v3172 = vld [vmem:[%s3 + $0x2c] sm:$0xf]
    %v3173 = vld [vmem:[%s3 + $0x30] sm:$0xf]
    %v3174 = vld [vmem:[%s3 + $0x34] sm:$0xf]
    %v3175 = vld [vmem:[%s3 + $0x38] sm:$0xf]
    %v3176 = vld [vmem:[%s3 + $0x3c] sm:$0xf]
    %v3193 = vunpack.c.l.b16 %v3161
    %v3194 = vunpack.c.l.b16 %v3162
    %v3195 = vunpack.c.l.b16 %v3163
    %v3196 = vunpack.c.l.b16 %v3164
    %v3197 = vunpack.c.l.b16 %v3165
    %v3198 = vunpack.c.l.b16 %v3166
    %v3199 = vunpack.c.l.b16 %v3167
    %v3200 = vunpack.c.l.b16 %v3168
    %v3201 = vunpack.c.l.b16 %v3169
    %v3202 = vunpack.c.l.b16 %v3170
    %v3203 = vunpack.c.l.b16 %v3171
    %v3204 = vunpack.c.l.b16 %v3172
    %v3205 = vunpack.c.l.b16 %v3173
    %v3206 = vunpack.c.l.b16 %v3174
    %v3207 = vunpack.c.l.b16 %v3175
    %v3208 = vunpack.c.l.b16 %v3176
    %v3209 = vpack.c.b16 %v3194, %v3193
    %v3210 = vpack.c.b16 %v3196, %v3195
    %v3211 = vpack.c.b16 %v3198, %v3197
    %v3212 = vpack.c.b16 %v3200, %v3199
    %v3213 = vpack.c.b16 %v3202, %v3201
    %v3214 = vpack.c.b16 %v3204, %v3203
    %v3215 = vpack.c.b16 %v3206, %v3205
    %v3216 = vpack.c.b16 %v3208, %v3207
    %3225 = vmatprep.subr.bf16.mxu0 0
    %3226 = vmatpush1.bf16.msra.mxu0 %v3216
    %3227 = vmatprep.subr.bf16.mxu0 0
    %3228 = vmatpush1.bf16.msra.mxu0 %v3215
    %3229 = vmatprep.subr.bf16.mxu0 0
    %3230 = vmatpush1.bf16.msra.mxu0 %v3214
    %3231 = vmatprep.subr.bf16.mxu0 0
    %3232 = vmatpush1.bf16.msra.mxu0 %v3213
    %3233 = vmatprep.subr.bf16.mxu0 0
    %3234 = vmatpush1.bf16.msra.mxu0 %v3212
    %3235 = vmatprep.subr.bf16.mxu0 0
    %3236 = vmatpush1.bf16.msra.mxu0 %v3211
    %3237 = vmatprep.subr.bf16.mxu0 0
    %3238 = vmatpush1.bf16.msra.mxu0 %v3210
    %3239 = vmatprep.subr.bf16.mxu0 0
    %3240 = vmatpush1.bf16.msra.mxu0 %v3209
    %3241 = vmatprep.subr.bf16.mxu0 0
    %3242 = vmatpush2.bf16.msra.mxu0 0
    %3243 = vmatprep.subr.bf16.mxu0 0
    %3244 = vmatpush2.bf16.msra.mxu0 0
    %3245 = vmatprep.subr.bf16.mxu0 0
    %3246 = vmatpush2.bf16.msra.mxu0 0
    %3247 = vmatprep.subr.bf16.mxu0 0
    %3248 = vmatpush2.bf16.msra.mxu0 0
    %3249 = vmatprep.subr.bf16.mxu0 0
    %3250 = vmatpush2.bf16.msra.mxu0 0
    %3251 = vmatprep.subr.bf16.mxu0 0
    %3252 = vmatpush2.bf16.msra.mxu0 0
    %3253 = vmatprep.subr.bf16.mxu0 0
    %3254 = vmatpush2.bf16.msra.mxu0 0
    %3255 = vmatprep.subr.bf16.mxu0 0
    %3256 = vmatpush2.bf16.msra.mxu0 0
    %3257 = vmatprep.mubr.bf16.mxu0 0
    %3258 = vmatmul.mubr.bf16.gmra.mxu0 %v3145
    %v3259 = vpop.f32.mrf.mxu0
    %v3260 = vadd.f32 0.0, %v3259
    %v3261 = vpop.f32.mrf.mxu0
    %v3262 = vpop.f32.mrf.mxu0
    %v3263 = vadd.f32 0.0, %v3262
    %v3264 = vpop.f32.mrf.mxu0
    %3265 = vmatprep.mubr.bf16.mxu0 0
    %3266 = vmatmul.mubr.bf16.gmra.mxu0 %v3146
    %v3267 = vpop.f32.mrf.mxu0
    %v3268 = vadd.f32 0.0, %v3267
    %v3269 = vpop.f32.mrf.mxu0
    %v3270 = vpop.f32.mrf.mxu0
    %v3271 = vadd.f32 0.0, %v3270
    %v3272 = vpop.f32.mrf.mxu0
    %3273 = vmatprep.mubr.bf16.mxu0 0
    %3274 = vmatmul.mubr.bf16.gmra.mxu0 %v3147
    %v3275 = vpop.f32.mrf.mxu0
    %v3276 = vadd.f32 0.0, %v3275
    %v3277 = vpop.f32.mrf.mxu0
    %v3278 = vpop.f32.mrf.mxu0
    %v3279 = vadd.f32 0.0, %v3278
    %v3280 = vpop.f32.mrf.mxu0
    %3281 = vmatprep.mubr.bf16.mxu0 0
    %3282 = vmatmul.mubr.bf16.gmra.mxu0 %v3148
    %v3283 = vpop.f32.mrf.mxu0
    %v3284 = vadd.f32 0.0, %v3283
    %v3285 = vpop.f32.mrf.mxu0
    %v3286 = vpop.f32.mrf.mxu0
    %v3287 = vadd.f32 0.0, %v3286
    %v3288 = vpop.f32.mrf.mxu0
    %3289 = vmatprep.mubr.bf16.mxu0 0
    %3290 = vmatmul.mubr.bf16.gmra.mxu0 %v3149
    %v3291 = vpop.f32.mrf.mxu0
    %v3292 = vadd.f32 0.0, %v3291
    %v3293 = vpop.f32.mrf.mxu0
    %v3294 = vpop.f32.mrf.mxu0
    %v3295 = vadd.f32 0.0, %v3294
    %v3296 = vpop.f32.mrf.mxu0
    %3297 = vmatprep.mubr.bf16.mxu0 0
    %3298 = vmatmul.mubr.bf16.gmra.mxu0 %v3150
    %v3299 = vpop.f32.mrf.mxu0
    %v3300 = vadd.f32 0.0, %v3299
    %v3301 = vpop.f32.mrf.mxu0
    %v3302 = vpop.f32.mrf.mxu0
    %v3303 = vadd.f32 0.0, %v3302
    %v3304 = vpop.f32.mrf.mxu0
    %3305 = vmatprep.mubr.bf16.mxu0 0
    %3306 = vmatmul.mubr.bf16.gmra.mxu0 %v3151
    %v3307 = vpop.f32.mrf.mxu0
    %v3308 = vadd.f32 0.0, %v3307
    %v3309 = vpop.f32.mrf.mxu0
    %v3310 = vpop.f32.mrf.mxu0
    %v3311 = vadd.f32 0.0, %v3310
    %v3312 = vpop.f32.mrf.mxu0
    %3313 = vmatprep.mubr.bf16.mxu0 0
    %3314 = vmatmul.mubr.bf16.gmra.mxu0 %v3152
    %v3315 = vpop.f32.mrf.mxu0
    %v3316 = vadd.f32 0.0, %v3315
    %v3317 = vpop.f32.mrf.mxu0
    %v3318 = vpop.f32.mrf.mxu0
    %v3319 = vadd.f32 0.0, %v3318
    %v3320 = vpop.f32.mrf.mxu0
    %3321 = vmatprep.mubr.bf16.mxu0 0
    %3322 = vmatmul.mubr.bf16.gmra.mxu0 %v3153
    %v3323 = vpop.f32.mrf.mxu0
    %v3324 = vadd.f32 0.0, %v3323
    %v3325 = vpop.f32.mrf.mxu0
    %v3326 = vpop.f32.mrf.mxu0
    %v3327 = vadd.f32 0.0, %v3326
    %v3328 = vpop.f32.mrf.mxu0
    %3329 = vmatprep.mubr.bf16.mxu0 0
    %3330 = vmatmul.mubr.bf16.gmra.mxu0 %v3154
    %v3331 = vpop.f32.mrf.mxu0
    %v3332 = vadd.f32 0.0, %v3331
    %v3333 = vpop.f32.mrf.mxu0
    %v3334 = vpop.f32.mrf.mxu0
    %v3335 = vadd.f32 0.0, %v3334
    %v3336 = vpop.f32.mrf.mxu0
    %3337 = vmatprep.mubr.bf16.mxu0 0
    %3338 = vmatmul.mubr.bf16.gmra.mxu0 %v3155
    %v3339 = vpop.f32.mrf.mxu0
    %v3340 = vadd.f32 0.0, %v3339
    %v3341 = vpop.f32.mrf.mxu0
    %v3342 = vpop.f32.mrf.mxu0
    %v3343 = vadd.f32 0.0, %v3342
    %v3344 = vpop.f32.mrf.mxu0
    %3345 = vmatprep.mubr.bf16.mxu0 0
    %3346 = vmatmul.mubr.bf16.gmra.mxu0 %v3156
    %v3347 = vpop.f32.mrf.mxu0
    %v3348 = vadd.f32 0.0, %v3347
    %v3349 = vpop.f32.mrf.mxu0
    %v3350 = vpop.f32.mrf.mxu0
    %v3351 = vadd.f32 0.0, %v3350
    %v3352 = vpop.f32.mrf.mxu0
    %3353 = vmatprep.mubr.bf16.mxu0 0
    %3354 = vmatmul.mubr.bf16.gmra.mxu0 %v3157
    %v3355 = vpop.f32.mrf.mxu0
    %v3356 = vadd.f32 0.0, %v3355
    %v3357 = vpop.f32.mrf.mxu0
    %v3358 = vpop.f32.mrf.mxu0
    %v3359 = vadd.f32 0.0, %v3358
    %v3360 = vpop.f32.mrf.mxu0
    %3361 = vmatprep.mubr.bf16.mxu0 0
    %3362 = vmatmul.mubr.bf16.gmra.mxu0 %v3158
    %v3363 = vpop.f32.mrf.mxu0
    %v3364 = vadd.f32 0.0, %v3363
    %v3365 = vpop.f32.mrf.mxu0
    %v3366 = vpop.f32.mrf.mxu0
    %v3367 = vadd.f32 0.0, %v3366
    %v3368 = vpop.f32.mrf.mxu0
    %3369 = vmatprep.mubr.bf16.mxu0 0
    %3370 = vmatmul.mubr.bf16.gmra.mxu0 %v3159
    %v3371 = vpop.f32.mrf.mxu0
    %v3372 = vadd.f32 0.0, %v3371
    %v3373 = vpop.f32.mrf.mxu0
    %v3374 = vpop.f32.mrf.mxu0
    %v3375 = vadd.f32 0.0, %v3374
    %v3376 = vpop.f32.mrf.mxu0
    %3377 = vmatprep.mubr.bf16.mxu0 0
    %3378 = vmatmul.mubr.bf16.gmra.mxu0 %v3160
    %v3379 = vpop.f32.mrf.mxu0
    %v3380 = vadd.f32 0.0, %v3379
    %v3381 = vpop.f32.mrf.mxu0
    %v3382 = vpop.f32.mrf.mxu0
    %v3383 = vadd.f32 0.0, %v3382
    %v3384 = vpop.f32.mrf.mxu0
    %3385 = vdwg.mxu0
    %v3386 = vpack.c.bf16 %v3263, %v3260
    %v3387 = vpack.c.bf16 %v3271, %v3268
    %v3388 = vpack.c.bf16 %v3279, %v3276
    %v3389 = vpack.c.bf16 %v3287, %v3284
    %v3390 = vpack.c.bf16 %v3295, %v3292
    %v3391 = vpack.c.bf16 %v3303, %v3300
    %v3392 = vpack.c.bf16 %v3311, %v3308
    %v3393 = vpack.c.bf16 %v3319, %v3316
    %v3394 = vpack.c.bf16 %v3327, %v3324
    %v3395 = vpack.c.bf16 %v3335, %v3332
    %v3396 = vpack.c.bf16 %v3343, %v3340
    %v3397 = vpack.c.bf16 %v3351, %v3348
    %v3398 = vpack.c.bf16 %v3359, %v3356
    %v3399 = vpack.c.bf16 %v3367, %v3364
    %v3400 = vpack.c.bf16 %v3375, %v3372
    %v3401 = vpack.c.bf16 %v3383, %v3380
    %v3402 = vld [vmem:[%s4] sm:$0xf]
    %v3403 = vld [vmem:[%s4 + $0x4] sm:$0xf]
    %v3404 = vld [vmem:[%s4 + $0x8] sm:$0xf]
    %v3405 = vld [vmem:[%s4 + $0xc] sm:$0xf]
    %v3406 = vld [vmem:[%s4 + $0x10] sm:$0xf]
    %v3407 = vld [vmem:[%s4 + $0x14] sm:$0xf]
    %v3408 = vld [vmem:[%s4 + $0x18] sm:$0xf]
    %v3409 = vld [vmem:[%s4 + $0x1c] sm:$0xf]
    %v3410 = vld [vmem:[%s4 + $0x20] sm:$0xf]
    %v3411 = vld [vmem:[%s4 + $0x24] sm:$0xf]
    %v3412 = vld [vmem:[%s4 + $0x28] sm:$0xf]
    %v3413 = vld [vmem:[%s4 + $0x2c] sm:$0xf]
    %v3414 = vld [vmem:[%s4 + $0x30] sm:$0xf]
    %v3415 = vld [vmem:[%s4 + $0x34] sm:$0xf]
    %v3416 = vld [vmem:[%s4 + $0x38] sm:$0xf]
    %v3417 = vld [vmem:[%s4 + $0x3c] sm:$0xf]
    %v3418 = vld [vmem:[%s5] sm:$0x1]
    %v3420 = vlaneseq
    %v3421 = vshrl.u32 %v3420, 7
    %v3422 = vsub.s32 0, %v3421
    %v3423 = vrot.slane %v3418, %v3422
    %v3441 = vunpack.c.l.b16 %v3402
    %v3442 = vunpack.c.l.b16 %v3403
    %v3443 = vunpack.c.l.b16 %v3404
    %v3444 = vunpack.c.l.b16 %v3405
    %v3445 = vunpack.c.l.b16 %v3406
    %v3446 = vunpack.c.l.b16 %v3407
    %v3447 = vunpack.c.l.b16 %v3408
    %v3448 = vunpack.c.l.b16 %v3409
    %v3449 = vunpack.c.l.b16 %v3410
    %v3450 = vunpack.c.l.b16 %v3411
    %v3451 = vunpack.c.l.b16 %v3412
    %v3452 = vunpack.c.l.b16 %v3413
    %v3453 = vunpack.c.l.b16 %v3414
    %v3454 = vunpack.c.l.b16 %v3415
    %v3455 = vunpack.c.l.b16 %v3416
    %v3456 = vunpack.c.l.b16 %v3417
    %v3457 = vpack.c.b16 %v3442, %v3441
    %v3458 = vpack.c.b16 %v3444, %v3443
    %v3459 = vpack.c.b16 %v3446, %v3445
    %v3460 = vpack.c.b16 %v3448, %v3447
    %v3461 = vpack.c.b16 %v3450, %v3449
    %v3462 = vpack.c.b16 %v3452, %v3451
    %v3463 = vpack.c.b16 %v3454, %v3453
    %v3464 = vpack.c.b16 %v3456, %v3455
    %3473 = vmatprep.subr.bf16.mxu0 0
    %3474 = vmatpush1.bf16.msra.mxu0 %v3464
    %3475 = vmatprep.subr.bf16.mxu0 0
    %3476 = vmatpush1.bf16.msra.mxu0 %v3463
    %3477 = vmatprep.subr.bf16.mxu0 0
    %3478 = vmatpush1.bf16.msra.mxu0 %v3462
    %3479 = vmatprep.subr.bf16.mxu0 0
    %3480 = vmatpush1.bf16.msra.mxu0 %v3461
    %3481 = vmatprep.subr.bf16.mxu0 0
    %3482 = vmatpush1.bf16.msra.mxu0 %v3460
    %3483 = vmatprep.subr.bf16.mxu0 0
    %3484 = vmatpush1.bf16.msra.mxu0 %v3459
    %3485 = vmatprep.subr.bf16.mxu0 0
    %3486 = vmatpush1.bf16.msra.mxu0 %v3458
    %3487 = vmatprep.subr.bf16.mxu0 0
    %3488 = vmatpush1.bf16.msra.mxu0 %v3457
    %3489 = vmatprep.subr.bf16.mxu0 0
    %3490 = vmatpush2.bf16.msra.mxu0 0
    %3491 = vmatprep.subr.bf16.mxu0 0
    %3492 = vmatpush2.bf16.msra.mxu0 0
    %3493 = vmatprep.subr.bf16.mxu0 0
    %3494 = vmatpush2.bf16.msra.mxu0 0
    %3495 = vmatprep.subr.bf16.mxu0 0
    %3496 = vmatpush2.bf16.msra.mxu0 0
    %3497 = vmatprep.subr.bf16.mxu0 0
    %3498 = vmatpush2.bf16.msra.mxu0 0
    %3499 = vmatprep.subr.bf16.mxu0 0
    %3500 = vmatpush2.bf16.msra.mxu0 0
    %3501 = vmatprep.subr.bf16.mxu0 0
    %3502 = vmatpush2.bf16.msra.mxu0 0
    %3503 = vmatprep.subr.bf16.mxu0 0
    %3504 = vmatpush2.bf16.msra.mxu0 0
    %3505 = vmatprep.mubr.bf16.mxu0 0
    %3506 = vmatmul.mubr.bf16.gmra.mxu0 %v3386
    %v3507 = vpop.f32.mrf.mxu0
    %v3508 = vadd.f32 %v3423, %v3507
    %v3509 = vpop.f32.mrf.mxu0
    %v3510 = vpop.f32.mrf.mxu0
    %v3511 = vadd.f32 %v3423, %v3510
    %v3512 = vpop.f32.mrf.mxu0
    %3513 = vmatprep.mubr.bf16.mxu0 0
    %3514 = vmatmul.mubr.bf16.gmra.mxu0 %v3387
    %v3515 = vpop.f32.mrf.mxu0
    %v3516 = vadd.f32 %v3423, %v3515
    %v3517 = vpop.f32.mrf.mxu0
    %v3518 = vpop.f32.mrf.mxu0
    %v3519 = vadd.f32 %v3423, %v3518
    %v3520 = vpop.f32.mrf.mxu0
    %3521 = vmatprep.mubr.bf16.mxu0 0
    %3522 = vmatmul.mubr.bf16.gmra.mxu0 %v3388
    %v3523 = vpop.f32.mrf.mxu0
    %v3524 = vadd.f32 %v3423, %v3523
    %v3525 = vpop.f32.mrf.mxu0
    %v3526 = vpop.f32.mrf.mxu0
    %v3527 = vadd.f32 %v3423, %v3526
    %v3528 = vpop.f32.mrf.mxu0
    %3529 = vmatprep.mubr.bf16.mxu0 0
    %3530 = vmatmul.mubr.bf16.gmra.mxu0 %v3389
    %v3531 = vpop.f32.mrf.mxu0
    %v3532 = vadd.f32 %v3423, %v3531
    %v3533 = vpop.f32.mrf.mxu0
    %v3534 = vpop.f32.mrf.mxu0
    %v3535 = vadd.f32 %v3423, %v3534
    %v3536 = vpop.f32.mrf.mxu0
    %3537 = vmatprep.mubr.bf16.mxu0 0
    %3538 = vmatmul.mubr.bf16.gmra.mxu0 %v3390
    %v3539 = vpop.f32.mrf.mxu0
    %v3540 = vadd.f32 %v3423, %v3539
    %v3541 = vpop.f32.mrf.mxu0
    %v3542 = vpop.f32.mrf.mxu0
    %v3543 = vadd.f32 %v3423, %v3542
    %v3544 = vpop.f32.mrf.mxu0
    %3545 = vmatprep.mubr.bf16.mxu0 0
    %3546 = vmatmul.mubr.bf16.gmra.mxu0 %v3391
    %v3547 = vpop.f32.mrf.mxu0
    %v3548 = vadd.f32 %v3423, %v3547
    %v3549 = vpop.f32.mrf.mxu0
    %v3550 = vpop.f32.mrf.mxu0
    %v3551 = vadd.f32 %v3423, %v3550
    %v3552 = vpop.f32.mrf.mxu0
    %3553 = vmatprep.mubr.bf16.mxu0 0
    %3554 = vmatmul.mubr.bf16.gmra.mxu0 %v3392
    %v3555 = vpop.f32.mrf.mxu0
    %v3556 = vadd.f32 %v3423, %v3555
    %v3557 = vpop.f32.mrf.mxu0
    %v3558 = vpop.f32.mrf.mxu0
    %v3559 = vadd.f32 %v3423, %v3558
    %v3560 = vpop.f32.mrf.mxu0
    %3561 = vmatprep.mubr.bf16.mxu0 0
    %3562 = vmatmul.mubr.bf16.gmra.mxu0 %v3393
    %v3563 = vpop.f32.mrf.mxu0
    %v3564 = vadd.f32 %v3423, %v3563
    %v3565 = vpop.f32.mrf.mxu0
    %v3566 = vpop.f32.mrf.mxu0
    %v3567 = vadd.f32 %v3423, %v3566
    %v3568 = vpop.f32.mrf.mxu0
    %3569 = vmatprep.mubr.bf16.mxu0 0
    %3570 = vmatmul.mubr.bf16.gmra.mxu0 %v3394
    %v3571 = vpop.f32.mrf.mxu0
    %v3572 = vadd.f32 %v3423, %v3571
    %v3573 = vpop.f32.mrf.mxu0
    %v3574 = vpop.f32.mrf.mxu0
    %v3575 = vadd.f32 %v3423, %v3574
    %v3576 = vpop.f32.mrf.mxu0
    %3577 = vmatprep.mubr.bf16.mxu0 0
    %3578 = vmatmul.mubr.bf16.gmra.mxu0 %v3395
    %v3579 = vpop.f32.mrf.mxu0
    %v3580 = vadd.f32 %v3423, %v3579
    %v3581 = vpop.f32.mrf.mxu0
    %v3582 = vpop.f32.mrf.mxu0
    %v3583 = vadd.f32 %v3423, %v3582
    %v3584 = vpop.f32.mrf.mxu0
    %3585 = vmatprep.mubr.bf16.mxu0 0
    %3586 = vmatmul.mubr.bf16.gmra.mxu0 %v3396
    %v3587 = vpop.f32.mrf.mxu0
    %v3588 = vadd.f32 %v3423, %v3587
    %v3589 = vpop.f32.mrf.mxu0
    %v3590 = vpop.f32.mrf.mxu0
    %v3591 = vadd.f32 %v3423, %v3590
    %v3592 = vpop.f32.mrf.mxu0
    %3593 = vmatprep.mubr.bf16.mxu0 0
    %3594 = vmatmul.mubr.bf16.gmra.mxu0 %v3397
    %v3595 = vpop.f32.mrf.mxu0
    %v3596 = vadd.f32 %v3423, %v3595
    %v3597 = vpop.f32.mrf.mxu0
    %v3598 = vpop.f32.mrf.mxu0
    %v3599 = vadd.f32 %v3423, %v3598
    %v3600 = vpop.f32.mrf.mxu0
    %3601 = vmatprep.mubr.bf16.mxu0 0
    %3602 = vmatmul.mubr.bf16.gmra.mxu0 %v3398
    %v3603 = vpop.f32.mrf.mxu0
    %v3604 = vadd.f32 %v3423, %v3603
    %v3605 = vpop.f32.mrf.mxu0
    %v3606 = vpop.f32.mrf.mxu0
    %v3607 = vadd.f32 %v3423, %v3606
    %v3608 = vpop.f32.mrf.mxu0
    %3609 = vmatprep.mubr.bf16.mxu0 0
    %3610 = vmatmul.mubr.bf16.gmra.mxu0 %v3399
    %v3611 = vpop.f32.mrf.mxu0
    %v3612 = vadd.f32 %v3423, %v3611
    %v3613 = vpop.f32.mrf.mxu0
    %v3614 = vpop.f32.mrf.mxu0
    %v3615 = vadd.f32 %v3423, %v3614
    %v3616 = vpop.f32.mrf.mxu0
    %3617 = vmatprep.mubr.bf16.mxu0 0
    %3618 = vmatmul.mubr.bf16.gmra.mxu0 %v3400
    %v3619 = vpop.f32.mrf.mxu0
    %v3620 = vadd.f32 %v3423, %v3619
    %v3621 = vpop.f32.mrf.mxu0
    %v3622 = vpop.f32.mrf.mxu0
    %v3623 = vadd.f32 %v3423, %v3622
    %v3624 = vpop.f32.mrf.mxu0
    %3625 = vmatprep.mubr.bf16.mxu0 0
    %3626 = vmatmul.mubr.bf16.gmra.mxu0 %v3401
    %v3627 = vpop.f32.mrf.mxu0
    %v3628 = vadd.f32 %v3423, %v3627
    %v3629 = vpop.f32.mrf.mxu0
    %v3630 = vpop.f32.mrf.mxu0
    %v3631 = vadd.f32 %v3423, %v3630
    %v3632 = vpop.f32.mrf.mxu0
    %3633 = vdwg.mxu0
    %v3634 = vtanh.pop %v3508
    %v3635 = vtanh.pop %v3511
    %v3636 = vtanh.pop %v3516
    %v3637 = vtanh.pop %v3519
    %v3638 = vtanh.pop %v3524
    %v3639 = vtanh.pop %v3527
    %v3640 = vtanh.pop %v3532
    %v3641 = vtanh.pop %v3535
    %v3642 = vtanh.pop %v3540
    %v3643 = vtanh.pop %v3543
    %v3644 = vtanh.pop %v3548
    %v3645 = vtanh.pop %v3551
    %v3646 = vtanh.pop %v3556
    %v3647 = vtanh.pop %v3559
    %v3648 = vtanh.pop %v3564
    %v3649 = vtanh.pop %v3567
    %v3650 = vtanh.pop %v3572
    %v3651 = vtanh.pop %v3575
    %v3652 = vtanh.pop %v3580
    %v3653 = vtanh.pop %v3583
    %v3654 = vtanh.pop %v3588
    %v3655 = vtanh.pop %v3591
    %v3656 = vtanh.pop %v3596
    %v3657 = vtanh.pop %v3599
    %v3658 = vtanh.pop %v3604
    %v3659 = vtanh.pop %v3607
    %v3660 = vtanh.pop %v3612
    %v3661 = vtanh.pop %v3615
    %v3662 = vtanh.pop %v3620
    %v3663 = vtanh.pop %v3623
    %v3664 = vtanh.pop %v3628
    %v3665 = vtanh.pop %v3631
    %vm3666 = vcmp.gt.s32.totalorder %v63, 0
    %vm3667 = vcmp.gt.s32.totalorder %v64, 0
    %vm3668 = vcmp.gt.s32.totalorder %v65, 0
    %vm3669 = vcmp.gt.s32.totalorder %v66, 0
    %vm3670 = vcmp.gt.s32.totalorder %v67, 0
    %vm3671 = vcmp.gt.s32.totalorder %v68, 0
    %vm3672 = vcmp.gt.s32.totalorder %v69, 0
    %vm3673 = vcmp.gt.s32.totalorder %v70, 0
    %vm3674 = vcmp.gt.s32.totalorder %v71, 0
    %vm3675 = vcmp.gt.s32.totalorder %v72, 0
    %vm3676 = vcmp.gt.s32.totalorder %v73, 0
    %vm3677 = vcmp.gt.s32.totalorder %v74, 0
    %vm3678 = vcmp.gt.s32.totalorder %v75, 0
    %vm3679 = vcmp.gt.s32.totalorder %v76, 0
    %vm3680 = vcmp.gt.s32.totalorder %v77, 0
    %vm3681 = vcmp.gt.s32.totalorder %v78, 0
    %vm3682 = vcmp.gt.s32.totalorder %v79, 0
    %vm3683 = vcmp.gt.s32.totalorder %v80, 0
    %vm3684 = vcmp.gt.s32.totalorder %v81, 0
    %vm3685 = vcmp.gt.s32.totalorder %v82, 0
    %vm3686 = vcmp.gt.s32.totalorder %v83, 0
    %vm3687 = vcmp.gt.s32.totalorder %v84, 0
    %vm3688 = vcmp.gt.s32.totalorder %v85, 0
    %vm3689 = vcmp.gt.s32.totalorder %v86, 0
    %vm3690 = vcmp.gt.s32.totalorder %v87, 0
    %vm3691 = vcmp.gt.s32.totalorder %v88, 0
    %vm3692 = vcmp.gt.s32.totalorder %v89, 0
    %vm3693 = vcmp.gt.s32.totalorder %v90, 0
    %vm3694 = vcmp.gt.s32.totalorder %v91, 0
    %vm3695 = vcmp.gt.s32.totalorder %v92, 0
    %vm3696 = vcmp.gt.s32.totalorder %v93, 0
    %vm3697 = vcmp.gt.s32.totalorder %v94, 0
    %v3698 = vsel %vm3666, 1, 0
    %v3699 = vsel %vm3667, 1, 0
    %v3700 = vsel %vm3668, 1, 0
    %v3701 = vsel %vm3669, 1, 0
    %v3702 = vsel %vm3670, 1, 0
    %v3703 = vsel %vm3671, 1, 0
    %v3704 = vsel %vm3672, 1, 0
    %v3705 = vsel %vm3673, 1, 0
    %v3706 = vsel %vm3674, 1, 0
    %v3707 = vsel %vm3675, 1, 0
    %v3708 = vsel %vm3676, 1, 0
    %v3709 = vsel %vm3677, 1, 0
    %v3710 = vsel %vm3678, 1, 0
    %v3711 = vsel %vm3679, 1, 0
    %v3712 = vsel %vm3680, 1, 0
    %v3713 = vsel %vm3681, 1, 0
    %v3714 = vsel %vm3682, 1, 0
    %v3715 = vsel %vm3683, 1, 0
    %v3716 = vsel %vm3684, 1, 0
    %v3717 = vsel %vm3685, 1, 0
    %v3718 = vsel %vm3686, 1, 0
    %v3719 = vsel %vm3687, 1, 0
    %v3720 = vsel %vm3688, 1, 0
    %v3721 = vsel %vm3689, 1, 0
    %v3722 = vsel %vm3690, 1, 0
    %v3723 = vsel %vm3691, 1, 0
    %v3724 = vsel %vm3692, 1, 0
    %v3725 = vsel %vm3693, 1, 0
    %v3726 = vsel %vm3694, 1, 0
    %v3727 = vsel %vm3695, 1, 0
    %v3728 = vsel %vm3696, 1, 0
    %v3729 = vsel %vm3697, 1, 0
    %3730 = vset.pattern.permute.xlu0 0
    %3731 = vperm.xlu0 %3730, %v3698
    %v3732 = vpop.permute.xlu0 %3731
    %3733 = vset.pattern.permute.xlu0 0
    %3734 = vperm.xlu0 %3733, %v3699
    %v3735 = vpop.permute.xlu0 %3734
    %3736 = vset.pattern.permute.xlu0 0
    %3737 = vperm.xlu0 %3736, %v3700
    %v3738 = vpop.permute.xlu0 %3737
    %3739 = vset.pattern.permute.xlu0 0
    %3740 = vperm.xlu0 %3739, %v3701
    %v3741 = vpop.permute.xlu0 %3740
    %3742 = vset.pattern.permute.xlu0 0
    %3743 = vperm.xlu0 %3742, %v3702
    %v3744 = vpop.permute.xlu0 %3743
    %3745 = vset.pattern.permute.xlu0 0
    %3746 = vperm.xlu0 %3745, %v3703
    %v3747 = vpop.permute.xlu0 %3746
    %3748 = vset.pattern.permute.xlu0 0
    %3749 = vperm.xlu0 %3748, %v3704
    %v3750 = vpop.permute.xlu0 %3749
    %3751 = vset.pattern.permute.xlu0 0
    %3752 = vperm.xlu0 %3751, %v3705
    %v3753 = vpop.permute.xlu0 %3752
    %3754 = vset.pattern.permute.xlu0 0
    %3755 = vperm.xlu0 %3754, %v3706
    %v3756 = vpop.permute.xlu0 %3755
    %3757 = vset.pattern.permute.xlu0 0
    %3758 = vperm.xlu0 %3757, %v3707
    %v3759 = vpop.permute.xlu0 %3758
    %3760 = vset.pattern.permute.xlu0 0
    %3761 = vperm.xlu0 %3760, %v3708
    %v3762 = vpop.permute.xlu0 %3761
    %3763 = vset.pattern.permute.xlu0 0
    %3764 = vperm.xlu0 %3763, %v3709
    %v3765 = vpop.permute.xlu0 %3764
    %3766 = vset.pattern.permute.xlu0 0
    %3767 = vperm.xlu0 %3766, %v3710
    %v3768 = vpop.permute.xlu0 %3767
    %3769 = vset.pattern.permute.xlu0 0
    %3770 = vperm.xlu0 %3769, %v3711
    %v3771 = vpop.permute.xlu0 %3770
    %3772 = vset.pattern.permute.xlu0 0
    %3773 = vperm.xlu0 %3772, %v3712
    %v3774 = vpop.permute.xlu0 %3773
    %3775 = vset.pattern.permute.xlu0 0
    %3776 = vperm.xlu0 %3775, %v3713
    %v3777 = vpop.permute.xlu0 %3776
    %3778 = vset.pattern.permute.xlu0 0
    %3779 = vperm.xlu0 %3778, %v3714
    %v3780 = vpop.permute.xlu0 %3779
    %3781 = vset.pattern.permute.xlu0 0
    %3782 = vperm.xlu0 %3781, %v3715
    %v3783 = vpop.permute.xlu0 %3782
    %3784 = vset.pattern.permute.xlu0 0
    %3785 = vperm.xlu0 %3784, %v3716
    %v3786 = vpop.permute.xlu0 %3785
    %3787 = vset.pattern.permute.xlu0 0
    %3788 = vperm.xlu0 %3787, %v3717
    %v3789 = vpop.permute.xlu0 %3788
    %3790 = vset.pattern.permute.xlu0 0
    %3791 = vperm.xlu0 %3790, %v3718
    %v3792 = vpop.permute.xlu0 %3791
    %3793 = vset.pattern.permute.xlu0 0
    %3794 = vperm.xlu0 %3793, %v3719
    %v3795 = vpop.permute.xlu0 %3794
    %3796 = vset.pattern.permute.xlu0 0
    %3797 = vperm.xlu0 %3796, %v3720
    %v3798 = vpop.permute.xlu0 %3797
    %3799 = vset.pattern.permute.xlu0 0
    %3800 = vperm.xlu0 %3799, %v3721
    %v3801 = vpop.permute.xlu0 %3800
    %3802 = vset.pattern.permute.xlu0 0
    %3803 = vperm.xlu0 %3802, %v3722
    %v3804 = vpop.permute.xlu0 %3803
    %3805 = vset.pattern.permute.xlu0 0
    %3806 = vperm.xlu0 %3805, %v3723
    %v3807 = vpop.permute.xlu0 %3806
    %3808 = vset.pattern.permute.xlu0 0
    %3809 = vperm.xlu0 %3808, %v3724
    %v3810 = vpop.permute.xlu0 %3809
    %3811 = vset.pattern.permute.xlu0 0
    %3812 = vperm.xlu0 %3811, %v3725
    %v3813 = vpop.permute.xlu0 %3812
    %3814 = vset.pattern.permute.xlu0 0
    %3815 = vperm.xlu0 %3814, %v3726
    %v3816 = vpop.permute.xlu0 %3815
    %3817 = vset.pattern.permute.xlu0 0
    %3818 = vperm.xlu0 %3817, %v3727
    %v3819 = vpop.permute.xlu0 %3818
    %3820 = vset.pattern.permute.xlu0 0
    %3821 = vperm.xlu0 %3820, %v3728
    %v3822 = vpop.permute.xlu0 %3821
    %3823 = vset.pattern.permute.xlu0 0
    %3824 = vperm.xlu0 %3823, %v3729
    %v3825 = vpop.permute.xlu0 %3824
    %vm3826 = vcmp.eq.s32.totalorder %v3732, 1
    %vm3827 = vcmp.eq.s32.totalorder %v3735, 1
    %vm3828 = vcmp.eq.s32.totalorder %v3738, 1
    %vm3829 = vcmp.eq.s32.totalorder %v3741, 1
    %vm3830 = vcmp.eq.s32.totalorder %v3744, 1
    %vm3831 = vcmp.eq.s32.totalorder %v3747, 1
    %vm3832 = vcmp.eq.s32.totalorder %v3750, 1
    %vm3833 = vcmp.eq.s32.totalorder %v3753, 1
    %vm3834 = vcmp.eq.s32.totalorder %v3756, 1
    %vm3835 = vcmp.eq.s32.totalorder %v3759, 1
    %vm3836 = vcmp.eq.s32.totalorder %v3762, 1
    %vm3837 = vcmp.eq.s32.totalorder %v3765, 1
    %vm3838 = vcmp.eq.s32.totalorder %v3768, 1
    %vm3839 = vcmp.eq.s32.totalorder %v3771, 1
    %vm3840 = vcmp.eq.s32.totalorder %v3774, 1
    %vm3841 = vcmp.eq.s32.totalorder %v3777, 1
    %vm3842 = vcmp.eq.s32.totalorder %v3780, 1
    %vm3843 = vcmp.eq.s32.totalorder %v3783, 1
    %vm3844 = vcmp.eq.s32.totalorder %v3786, 1
    %vm3845 = vcmp.eq.s32.totalorder %v3789, 1
    %vm3846 = vcmp.eq.s32.totalorder %v3792, 1
    %vm3847 = vcmp.eq.s32.totalorder %v3795, 1
    %vm3848 = vcmp.eq.s32.totalorder %v3798, 1
    %vm3849 = vcmp.eq.s32.totalorder %v3801, 1
    %vm3850 = vcmp.eq.s32.totalorder %v3804, 1
    %vm3851 = vcmp.eq.s32.totalorder %v3807, 1
    %vm3852 = vcmp.eq.s32.totalorder %v3810, 1
    %vm3853 = vcmp.eq.s32.totalorder %v3813, 1
    %vm3854 = vcmp.eq.s32.totalorder %v3816, 1
    %vm3855 = vcmp.eq.s32.totalorder %v3819, 1
    %vm3856 = vcmp.eq.s32.totalorder %v3822, 1
    %vm3857 = vcmp.eq.s32.totalorder %v3825, 1
    %v3858 = vsel %vm3826, %v3634, 0.0
    %v3859 = vsel %vm3827, %v3635, 0.0
    %v3860 = vsel %vm3828, %v3636, 0.0
    %v3861 = vsel %vm3829, %v3637, 0.0
    %v3862 = vsel %vm3830, %v3638, 0.0
    %v3863 = vsel %vm3831, %v3639, 0.0
    %v3864 = vsel %vm3832, %v3640, 0.0
    %v3865 = vsel %vm3833, %v3641, 0.0
    %v3866 = vsel %vm3834, %v3642, 0.0
    %v3867 = vsel %vm3835, %v3643, 0.0
    %v3868 = vsel %vm3836, %v3644, 0.0
    %v3869 = vsel %vm3837, %v3645, 0.0
    %v3870 = vsel %vm3838, %v3646, 0.0
    %v3871 = vsel %vm3839, %v3647, 0.0
    %v3872 = vsel %vm3840, %v3648, 0.0
    %v3873 = vsel %vm3841, %v3649, 0.0
    %v3874 = vsel %vm3842, %v3650, 0.0
    %v3875 = vsel %vm3843, %v3651, 0.0
    %v3876 = vsel %vm3844, %v3652, 0.0
    %v3877 = vsel %vm3845, %v3653, 0.0
    %v3878 = vsel %vm3846, %v3654, 0.0
    %v3879 = vsel %vm3847, %v3655, 0.0
    %v3880 = vsel %vm3848, %v3656, 0.0
    %v3881 = vsel %vm3849, %v3657, 0.0
    %v3882 = vsel %vm3850, %v3658, 0.0
    %v3883 = vsel %vm3851, %v3659, 0.0
    %v3884 = vsel %vm3852, %v3660, 0.0
    %v3885 = vsel %vm3853, %v3661, 0.0
    %v3886 = vsel %vm3854, %v3662, 0.0
    %v3887 = vsel %vm3855, %v3663, 0.0
    %v3888 = vsel %vm3856, %v3664, 0.0
    %v3889 = vsel %vm3857, %v3665, 0.0
    %v3890 = vlaneseq
    %v3891 = vshrl.u32 %v3890, 7
    %v3892 = vadd.s32 %v3891, 8
    %v3893 = vadd.s32 %v3891, 16
    %v3894 = vadd.s32 %v3891, 24
    %v3895 = vadd.s32 %v3891, 32
    %v3896 = vadd.s32 %v3891, 40
    %v3897 = vadd.s32 %v3891, 48
    %v3898 = vadd.s32 %v3891, 56
    %v3899 = vadd.s32 %v104, 128
    %v3900 = vmul.u32 %v3891, 4
    %v3901 = vmul.u32 %v3892, 4
    %v3902 = vmul.u32 %v3893, 4
    %v3903 = vmul.u32 %v3894, 4
    %v3904 = vmul.u32 %v3895, 4
    %v3905 = vmul.u32 %v3896, 4
    %v3906 = vmul.u32 %v3897, 4
    %v3907 = vmul.u32 %v3898, 4
    %vm3908 = vcmp.gt.s32.totalorder %v95, 1
    %v3909 = vsel %vm3908, %v95, 1
    %vm3910 = vcmp.gt.s32.totalorder %v96, 1
    %v3911 = vsel %vm3910, %v96, 1
    %vm3912 = vcmp.gt.s32.totalorder %v97, 1
    %v3913 = vsel %vm3912, %v97, 1
    %vm3914 = vcmp.gt.s32.totalorder %v98, 1
    %v3915 = vsel %vm3914, %v98, 1
    %vm3916 = vcmp.gt.s32.totalorder %v99, 1
    %v3917 = vsel %vm3916, %v99, 1
    %vm3918 = vcmp.gt.s32.totalorder %v100, 1
    %v3919 = vsel %vm3918, %v100, 1
    %vm3920 = vcmp.gt.s32.totalorder %v101, 1
    %v3921 = vsel %vm3920, %v101, 1
    %vm3922 = vcmp.gt.s32.totalorder %v102, 1
    %v3923 = vsel %vm3922, %v102, 1
    %v3924 = vcvt.s32.f32 %v3909
    %v3925 = vcvt.s32.f32 %v3911
    %v3926 = vcvt.s32.f32 %v3913
    %v3927 = vcvt.s32.f32 %v3915
    %v3928 = vcvt.s32.f32 %v3917
    %v3929 = vcvt.s32.f32 %v3919
    %v3930 = vcvt.s32.f32 %v3921
    %v3931 = vcvt.s32.f32 %v3923
    %v3932 = vrcp.pop %v3924
    %v3933 = vrcp.pop %v3925
    %v3934 = vrcp.pop %v3926
    %v3935 = vrcp.pop %v3927
    %v3936 = vrcp.pop %v3928
    %v3937 = vrcp.pop %v3929
    %v3938 = vrcp.pop %v3930
    %v3939 = vrcp.pop %v3931
    %vm3940 = vcmp.ge.s32.totalorder %v104, %v3900
    %vm3941 = vcmp.ge.s32.totalorder %v3899, %v3900
    %vm3942 = vcmp.ge.s32.totalorder %v104, %v3901
    %vm3943 = vcmp.ge.s32.totalorder %v3899, %v3901
    %vm3944 = vcmp.ge.s32.totalorder %v104, %v3902
    %vm3945 = vcmp.ge.s32.totalorder %v3899, %v3902
    %vm3946 = vcmp.ge.s32.totalorder %v104, %v3903
    %vm3947 = vcmp.ge.s32.totalorder %v3899, %v3903
    %vm3948 = vcmp.ge.s32.totalorder %v104, %v3904
    %vm3949 = vcmp.ge.s32.totalorder %v3899, %v3904
    %vm3950 = vcmp.ge.s32.totalorder %v104, %v3905
    %vm3951 = vcmp.ge.s32.totalorder %v3899, %v3905
    %vm3952 = vcmp.ge.s32.totalorder %v104, %v3906
    %vm3953 = vcmp.ge.s32.totalorder %v3899, %v3906
    %vm3954 = vcmp.ge.s32.totalorder %v104, %v3907
    %vm3955 = vcmp.ge.s32.totalorder %v3899, %v3907
    %3956 = vset.pattern.permute.xlu0 0
    %3957 = vperm.xlu0 %3956, %v95
    %v3958 = vpop.permute.xlu0 %3957
    %3959 = vset.pattern.permute.xlu0 0
    %3960 = vperm.xlu0 %3959, %v96
    %v3961 = vpop.permute.xlu0 %3960
    %3962 = vset.pattern.permute.xlu0 0
    %3963 = vperm.xlu0 %3962, %v97
    %v3964 = vpop.permute.xlu0 %3963
    %3965 = vset.pattern.permute.xlu0 0
    %3966 = vperm.xlu0 %3965, %v98
    %v3967 = vpop.permute.xlu0 %3966
    %3968 = vset.pattern.permute.xlu0 0
    %3969 = vperm.xlu0 %3968, %v99
    %v3970 = vpop.permute.xlu0 %3969
    %3971 = vset.pattern.permute.xlu0 0
    %3972 = vperm.xlu0 %3971, %v100
    %v3973 = vpop.permute.xlu0 %3972
    %3974 = vset.pattern.permute.xlu0 0
    %3975 = vperm.xlu0 %3974, %v101
    %v3976 = vpop.permute.xlu0 %3975
    %3977 = vset.pattern.permute.xlu0 0
    %3978 = vperm.xlu0 %3977, %v102
    %v3979 = vpop.permute.xlu0 %3978
    %v3980 = vadd.s32 %v3900, %v3958
    %v3981 = vadd.s32 %v3901, %v3961
    %v3982 = vadd.s32 %v3902, %v3964
    %v3983 = vadd.s32 %v3903, %v3967
    %v3984 = vadd.s32 %v3904, %v3970
    %v3985 = vadd.s32 %v3905, %v3973
    %v3986 = vadd.s32 %v3906, %v3976
    %v3987 = vadd.s32 %v3907, %v3979
    %vm3988 = vcmp.lt.s32.totalorder %v104, %v3980
    %vm3989 = vcmp.lt.s32.totalorder %v3899, %v3980
    %vm3990 = vcmp.lt.s32.totalorder %v104, %v3981
    %vm3991 = vcmp.lt.s32.totalorder %v3899, %v3981
    %vm3992 = vcmp.lt.s32.totalorder %v104, %v3982
    %vm3993 = vcmp.lt.s32.totalorder %v3899, %v3982
    %vm3994 = vcmp.lt.s32.totalorder %v104, %v3983
    %vm3995 = vcmp.lt.s32.totalorder %v3899, %v3983
    %vm3996 = vcmp.lt.s32.totalorder %v104, %v3984
    %vm3997 = vcmp.lt.s32.totalorder %v3899, %v3984
    %vm3998 = vcmp.lt.s32.totalorder %v104, %v3985
    %vm3999 = vcmp.lt.s32.totalorder %v3899, %v3985
    %vm4000 = vcmp.lt.s32.totalorder %v104, %v3986
    %vm4001 = vcmp.lt.s32.totalorder %v3899, %v3986
    %vm4002 = vcmp.lt.s32.totalorder %v104, %v3987
    %vm4003 = vcmp.lt.s32.totalorder %v3899, %v3987
    %vm4004 = vmand %vm3940, %vm3988
    %vm4005 = vmand %vm3941, %vm3989
    %vm4006 = vmand %vm3942, %vm3990
    %vm4007 = vmand %vm3943, %vm3991
    %vm4008 = vmand %vm3944, %vm3992
    %vm4009 = vmand %vm3945, %vm3993
    %vm4010 = vmand %vm3946, %vm3994
    %vm4011 = vmand %vm3947, %vm3995
    %vm4012 = vmand %vm3948, %vm3996
    %vm4013 = vmand %vm3949, %vm3997
    %vm4014 = vmand %vm3950, %vm3998
    %vm4015 = vmand %vm3951, %vm3999
    %vm4016 = vmand %vm3952, %vm4000
    %vm4017 = vmand %vm3953, %vm4001
    %vm4018 = vmand %vm3954, %vm4002
    %vm4019 = vmand %vm3955, %vm4003
    %4021 = vset.pattern.permute.xlu0 0
    %4022 = vperm.xlu0 %4021, %v3932
    %v4023 = vpop.permute.xlu0 %4022
    %4026 = vset.pattern.permute.xlu0 0
    %4027 = vperm.xlu0 %4026, %v3933
    %v4028 = vpop.permute.xlu0 %4027
    %4031 = vset.pattern.permute.xlu0 0
    %4032 = vperm.xlu0 %4031, %v3934
    %v4033 = vpop.permute.xlu0 %4032
    %4036 = vset.pattern.permute.xlu0 0
    %4037 = vperm.xlu0 %4036, %v3935
    %v4038 = vpop.permute.xlu0 %4037
    %4041 = vset.pattern.permute.xlu0 0
    %4042 = vperm.xlu0 %4041, %v3936
    %v4043 = vpop.permute.xlu0 %4042
    %4046 = vset.pattern.permute.xlu0 0
    %4047 = vperm.xlu0 %4046, %v3937
    %v4048 = vpop.permute.xlu0 %4047
    %4051 = vset.pattern.permute.xlu0 0
    %4052 = vperm.xlu0 %4051, %v3938
    %v4053 = vpop.permute.xlu0 %4052
    %4056 = vset.pattern.permute.xlu0 0
    %4057 = vperm.xlu0 %4056, %v3939
    %v4058 = vpop.permute.xlu0 %4057
    %v4060 = vsel %vm4004, %v4023, 0.0
    %v4061 = vsel %vm4005, %v4023, 0.0
    %v4062 = vsel %vm4006, %v4028, 0.0
    %v4063 = vsel %vm4007, %v4028, 0.0
    %v4064 = vsel %vm4008, %v4033, 0.0
    %v4065 = vsel %vm4009, %v4033, 0.0
    %v4066 = vsel %vm4010, %v4038, 0.0
    %v4067 = vsel %vm4011, %v4038, 0.0
    %v4068 = vsel %vm4012, %v4043, 0.0
    %v4069 = vsel %vm4013, %v4043, 0.0
    %v4070 = vsel %vm4014, %v4048, 0.0
    %v4071 = vsel %vm4015, %v4048, 0.0
    %v4072 = vsel %vm4016, %v4053, 0.0
    %v4073 = vsel %vm4017, %v4053, 0.0
    %v4074 = vsel %vm4018, %v4058, 0.0
    %v4075 = vsel %vm4019, %v4058, 0.0
    %v4076 = vpack.c.bf16 %v4062, %v4060
    %v4077 = vpack.c.bf16 %v4063, %v4061
    %v4078 = vpack.c.bf16 %v4066, %v4064
    %v4079 = vpack.c.bf16 %v4067, %v4065
    %v4080 = vpack.c.bf16 %v4070, %v4068
    %v4081 = vpack.c.bf16 %v4071, %v4069
    %v4082 = vpack.c.bf16 %v4074, %v4072
    %v4083 = vpack.c.bf16 %v4075, %v4073
    %v4084 = vpack.c.bf16 %v3859, %v3858
    %v4085 = vpack.c.bf16 %v3861, %v3860
    %v4086 = vpack.c.bf16 %v3863, %v3862
    %v4087 = vpack.c.bf16 %v3865, %v3864
    %v4088 = vpack.c.bf16 %v3867, %v3866
    %v4089 = vpack.c.bf16 %v3869, %v3868
    %v4090 = vpack.c.bf16 %v3871, %v3870
    %v4091 = vpack.c.bf16 %v3873, %v3872
    %v4092 = vpack.c.bf16 %v3875, %v3874
    %v4093 = vpack.c.bf16 %v3877, %v3876
    %v4094 = vpack.c.bf16 %v3879, %v3878
    %v4095 = vpack.c.bf16 %v3881, %v3880
    %v4096 = vpack.c.bf16 %v3883, %v3882
    %v4097 = vpack.c.bf16 %v3885, %v3884
    %v4098 = vpack.c.bf16 %v3887, %v3886
    %v4099 = vpack.c.bf16 %v3889, %v3888
    %4100 = vmatprep.subr.bf16.mxu0 0
    %4101 = vmatpush1.bf16.msra.mxu0 %v4091
    %4102 = vmatprep.subr.bf16.mxu0 0
    %4103 = vmatpush1.bf16.msra.mxu0 %v4090
    %4104 = vmatprep.subr.bf16.mxu0 0
    %4105 = vmatpush1.bf16.msra.mxu0 %v4089
    %4106 = vmatprep.subr.bf16.mxu0 0
    %4107 = vmatpush1.bf16.msra.mxu0 %v4088
    %4108 = vmatprep.subr.bf16.mxu0 0
    %4109 = vmatpush1.bf16.msra.mxu0 %v4087
    %4110 = vmatprep.subr.bf16.mxu0 0
    %4111 = vmatpush1.bf16.msra.mxu0 %v4086
    %4112 = vmatprep.subr.bf16.mxu0 0
    %4113 = vmatpush1.bf16.msra.mxu0 %v4085
    %4114 = vmatprep.subr.bf16.mxu0 0
    %4115 = vmatpush1.bf16.msra.mxu0 %v4084
    %4116 = vmatprep.subr.bf16.mxu0 0
    %4117 = vmatpush2.bf16.msra.mxu0 %v4099
    %4118 = vmatprep.subr.bf16.mxu0 0
    %4119 = vmatpush2.bf16.msra.mxu0 %v4098
    %4120 = vmatprep.subr.bf16.mxu0 0
    %4121 = vmatpush2.bf16.msra.mxu0 %v4097
    %4122 = vmatprep.subr.bf16.mxu0 0
    %4123 = vmatpush2.bf16.msra.mxu0 %v4096
    %4124 = vmatprep.subr.bf16.mxu0 0
    %4125 = vmatpush2.bf16.msra.mxu0 %v4095
    %4126 = vmatprep.subr.bf16.mxu0 0
    %4127 = vmatpush2.bf16.msra.mxu0 %v4094
    %4128 = vmatprep.subr.bf16.mxu0 0
    %4129 = vmatpush2.bf16.msra.mxu0 %v4093
    %4130 = vmatprep.subr.bf16.mxu0 0
    %4131 = vmatpush2.bf16.msra.mxu0 %v4092
    %4132 = vmatprep.mubr.bf16.mxu0 %v4077
    %4133 = vmatmul.mubr.bf16.gmra.mxu0 %v4076
    %v4134 = vpop.f32.mrf.mxu0
    %v4135 = vadd.f32 0.0, %v4134
    %v4136 = vpop.f32.mrf.mxu0
    %v4137 = vpop.f32.mrf.mxu0
    %v4138 = vadd.f32 0.0, %v4137
    %v4139 = vpop.f32.mrf.mxu0
    %4140 = vmatprep.mubr.bf16.mxu0 %v4079
    %4141 = vmatmul.mubr.bf16.gmra.mxu0 %v4078
    %v4142 = vpop.f32.mrf.mxu0
    %v4143 = vadd.f32 0.0, %v4142
    %v4144 = vpop.f32.mrf.mxu0
    %v4145 = vpop.f32.mrf.mxu0
    %v4146 = vadd.f32 0.0, %v4145
    %v4147 = vpop.f32.mrf.mxu0
    %4148 = vmatprep.mubr.bf16.mxu0 %v4081
    %4149 = vmatmul.mubr.bf16.gmra.mxu0 %v4080
    %v4150 = vpop.f32.mrf.mxu0
    %v4151 = vadd.f32 0.0, %v4150
    %v4152 = vpop.f32.mrf.mxu0
    %v4153 = vpop.f32.mrf.mxu0
    %v4154 = vadd.f32 0.0, %v4153
    %v4155 = vpop.f32.mrf.mxu0
    %4156 = vmatprep.mubr.bf16.mxu0 %v4083
    %4157 = vmatmul.mubr.bf16.gmra.mxu0 %v4082
    %v4158 = vpop.f32.mrf.mxu0
    %v4159 = vadd.f32 0.0, %v4158
    %v4160 = vpop.f32.mrf.mxu0
    %v4161 = vpop.f32.mrf.mxu0
    %v4162 = vadd.f32 0.0, %v4161
    %v4163 = vpop.f32.mrf.mxu0
    %4164 = vdwg.mxu0
    %v4165 = vpack.c.bf16 %v4138, %v4135
    %v4166 = vpack.c.bf16 %v4146, %v4143
    %v4167 = vpack.c.bf16 %v4154, %v4151
    %v4168 = vpack.c.bf16 %v4162, %v4159
    %v4169 = vld [vmem:[%s6] sm:$0xf]
    %v4170 = vld [vmem:[%s6 + $0x4] sm:$0xf]
    %v4171 = vld [vmem:[%s6 + $0x8] sm:$0xf]
    %v4172 = vld [vmem:[%s6 + $0xc] sm:$0xf]
    %v4173 = vld [vmem:[%s6 + $0x10] sm:$0xf]
    %v4174 = vld [vmem:[%s6 + $0x14] sm:$0xf]
    %v4175 = vld [vmem:[%s6 + $0x18] sm:$0xf]
    %v4176 = vld [vmem:[%s6 + $0x1c] sm:$0xf]
    %v4177 = vld [vmem:[%s6 + $0x20] sm:$0xf]
    %v4178 = vld [vmem:[%s6 + $0x24] sm:$0xf]
    %v4179 = vld [vmem:[%s6 + $0x28] sm:$0xf]
    %v4180 = vld [vmem:[%s6 + $0x2c] sm:$0xf]
    %v4181 = vld [vmem:[%s6 + $0x30] sm:$0xf]
    %v4182 = vld [vmem:[%s6 + $0x34] sm:$0xf]
    %v4183 = vld [vmem:[%s6 + $0x38] sm:$0xf]
    %v4184 = vld [vmem:[%s6 + $0x3c] sm:$0xf]
    %v4185 = vld [vmem:[%s7] sm:$0x1]
    %v4187 = vlaneseq
    %v4188 = vshrl.u32 %v4187, 7
    %v4189 = vsub.s32 0, %v4188
    %v4190 = vrot.slane %v4185, %v4189
    %v4208 = vunpack.c.l.b16 %v4169
    %v4209 = vunpack.c.l.b16 %v4170
    %v4210 = vunpack.c.l.b16 %v4171
    %v4211 = vunpack.c.l.b16 %v4172
    %v4212 = vunpack.c.l.b16 %v4173
    %v4213 = vunpack.c.l.b16 %v4174
    %v4214 = vunpack.c.l.b16 %v4175
    %v4215 = vunpack.c.l.b16 %v4176
    %v4216 = vunpack.c.l.b16 %v4177
    %v4217 = vunpack.c.l.b16 %v4178
    %v4218 = vunpack.c.l.b16 %v4179
    %v4219 = vunpack.c.l.b16 %v4180
    %v4220 = vunpack.c.l.b16 %v4181
    %v4221 = vunpack.c.l.b16 %v4182
    %v4222 = vunpack.c.l.b16 %v4183
    %v4223 = vunpack.c.l.b16 %v4184
    %v4224 = vpack.c.b16 %v4209, %v4208
    %v4225 = vpack.c.b16 %v4211, %v4210
    %v4226 = vpack.c.b16 %v4213, %v4212
    %v4227 = vpack.c.b16 %v4215, %v4214
    %v4228 = vpack.c.b16 %v4217, %v4216
    %v4229 = vpack.c.b16 %v4219, %v4218
    %v4230 = vpack.c.b16 %v4221, %v4220
    %v4231 = vpack.c.b16 %v4223, %v4222
    %4240 = vmatprep.subr.bf16.mxu0 0
    %4241 = vmatpush1.bf16.msra.mxu0 %v4231
    %4242 = vmatprep.subr.bf16.mxu0 0
    %4243 = vmatpush1.bf16.msra.mxu0 %v4230
    %4244 = vmatprep.subr.bf16.mxu0 0
    %4245 = vmatpush1.bf16.msra.mxu0 %v4229
    %4246 = vmatprep.subr.bf16.mxu0 0
    %4247 = vmatpush1.bf16.msra.mxu0 %v4228
    %4248 = vmatprep.subr.bf16.mxu0 0
    %4249 = vmatpush1.bf16.msra.mxu0 %v4227
    %4250 = vmatprep.subr.bf16.mxu0 0
    %4251 = vmatpush1.bf16.msra.mxu0 %v4226
    %4252 = vmatprep.subr.bf16.mxu0 0
    %4253 = vmatpush1.bf16.msra.mxu0 %v4225
    %4254 = vmatprep.subr.bf16.mxu0 0
    %4255 = vmatpush1.bf16.msra.mxu0 %v4224
    %4256 = vmatprep.subr.bf16.mxu0 0
    %4257 = vmatpush2.bf16.msra.mxu0 0
    %4258 = vmatprep.subr.bf16.mxu0 0
    %4259 = vmatpush2.bf16.msra.mxu0 0
    %4260 = vmatprep.subr.bf16.mxu0 0
    %4261 = vmatpush2.bf16.msra.mxu0 0
    %4262 = vmatprep.subr.bf16.mxu0 0
    %4263 = vmatpush2.bf16.msra.mxu0 0
    %4264 = vmatprep.subr.bf16.mxu0 0
    %4265 = vmatpush2.bf16.msra.mxu0 0
    %4266 = vmatprep.subr.bf16.mxu0 0
    %4267 = vmatpush2.bf16.msra.mxu0 0
    %4268 = vmatprep.subr.bf16.mxu0 0
    %4269 = vmatpush2.bf16.msra.mxu0 0
    %4270 = vmatprep.subr.bf16.mxu0 0
    %4271 = vmatpush2.bf16.msra.mxu0 0
    %4272 = vmatprep.mubr.bf16.mxu0 0
    %4273 = vmatmul.mubr.bf16.gmra.mxu0 %v4165
    %v4274 = vpop.f32.mrf.mxu0
    %v4275 = vadd.f32 %v4190, %v4274
    %v4276 = vpop.f32.mrf.mxu0
    %v4277 = vpop.f32.mrf.mxu0
    %v4278 = vadd.f32 %v4190, %v4277
    %v4279 = vpop.f32.mrf.mxu0
    %4280 = vmatprep.mubr.bf16.mxu0 0
    %4281 = vmatmul.mubr.bf16.gmra.mxu0 %v4166
    %v4282 = vpop.f32.mrf.mxu0
    %v4283 = vadd.f32 %v4190, %v4282
    %v4284 = vpop.f32.mrf.mxu0
    %v4285 = vpop.f32.mrf.mxu0
    %v4286 = vadd.f32 %v4190, %v4285
    %v4287 = vpop.f32.mrf.mxu0
    %4288 = vmatprep.mubr.bf16.mxu0 0
    %4289 = vmatmul.mubr.bf16.gmra.mxu0 %v4167
    %v4290 = vpop.f32.mrf.mxu0
    %v4291 = vadd.f32 %v4190, %v4290
    %v4292 = vpop.f32.mrf.mxu0
    %v4293 = vpop.f32.mrf.mxu0
    %v4294 = vadd.f32 %v4190, %v4293
    %v4295 = vpop.f32.mrf.mxu0
    %4296 = vmatprep.mubr.bf16.mxu0 0
    %4297 = vmatmul.mubr.bf16.gmra.mxu0 %v4168
    %v4298 = vpop.f32.mrf.mxu0
    %v4299 = vadd.f32 %v4190, %v4298
    %v4300 = vpop.f32.mrf.mxu0
    %v4301 = vpop.f32.mrf.mxu0
    %v4302 = vadd.f32 %v4190, %v4301
    %v4303 = vpop.f32.mrf.mxu0
    %4304 = vdwg.mxu0
    %v4305 = vtanh.pop %v4275
    %v4306 = vtanh.pop %v4278
    %v4307 = vtanh.pop %v4283
    %v4308 = vtanh.pop %v4286
    %v4309 = vtanh.pop %v4291
    %v4310 = vtanh.pop %v4294
    %v4311 = vtanh.pop %v4299
    %v4312 = vtanh.pop %v4302
    %vm4313 = vcmp.gt.s32.totalorder %v95, 0
    %vm4314 = vcmp.gt.s32.totalorder %v96, 0
    %vm4315 = vcmp.gt.s32.totalorder %v97, 0
    %vm4316 = vcmp.gt.s32.totalorder %v98, 0
    %vm4317 = vcmp.gt.s32.totalorder %v99, 0
    %vm4318 = vcmp.gt.s32.totalorder %v100, 0
    %vm4319 = vcmp.gt.s32.totalorder %v101, 0
    %vm4320 = vcmp.gt.s32.totalorder %v102, 0
    %v4321 = vsel %vm4313, 1, 0
    %v4322 = vsel %vm4314, 1, 0
    %v4323 = vsel %vm4315, 1, 0
    %v4324 = vsel %vm4316, 1, 0
    %v4325 = vsel %vm4317, 1, 0
    %v4326 = vsel %vm4318, 1, 0
    %v4327 = vsel %vm4319, 1, 0
    %v4328 = vsel %vm4320, 1, 0
    %4329 = vset.pattern.permute.xlu0 0
    %4330 = vperm.xlu0 %4329, %v4321
    %v4331 = vpop.permute.xlu0 %4330
    %4332 = vset.pattern.permute.xlu0 0
    %4333 = vperm.xlu0 %4332, %v4322
    %v4334 = vpop.permute.xlu0 %4333
    %4335 = vset.pattern.permute.xlu0 0
    %4336 = vperm.xlu0 %4335, %v4323
    %v4337 = vpop.permute.xlu0 %4336
    %4338 = vset.pattern.permute.xlu0 0
    %4339 = vperm.xlu0 %4338, %v4324
    %v4340 = vpop.permute.xlu0 %4339
    %4341 = vset.pattern.permute.xlu0 0
    %4342 = vperm.xlu0 %4341, %v4325
    %v4343 = vpop.permute.xlu0 %4342
    %4344 = vset.pattern.permute.xlu0 0
    %4345 = vperm.xlu0 %4344, %v4326
    %v4346 = vpop.permute.xlu0 %4345
    %4347 = vset.pattern.permute.xlu0 0
    %4348 = vperm.xlu0 %4347, %v4327
    %v4349 = vpop.permute.xlu0 %4348
    %4350 = vset.pattern.permute.xlu0 0
    %4351 = vperm.xlu0 %4350, %v4328
    %v4352 = vpop.permute.xlu0 %4351
    %vm4353 = vcmp.eq.s32.totalorder %v4331, 1
    %vm4354 = vcmp.eq.s32.totalorder %v4334, 1
    %vm4355 = vcmp.eq.s32.totalorder %v4337, 1
    %vm4356 = vcmp.eq.s32.totalorder %v4340, 1
    %vm4357 = vcmp.eq.s32.totalorder %v4343, 1
    %vm4358 = vcmp.eq.s32.totalorder %v4346, 1
    %vm4359 = vcmp.eq.s32.totalorder %v4349, 1
    %vm4360 = vcmp.eq.s32.totalorder %v4352, 1
    %v4361 = vsel %vm4353, %v4305, 0.0
    %v4362 = vsel %vm4354, %v4306, 0.0
    %v4363 = vsel %vm4355, %v4307, 0.0
    %v4364 = vsel %vm4356, %v4308, 0.0
    %v4365 = vsel %vm4357, %v4309, 0.0
    %v4366 = vsel %vm4358, %v4310, 0.0
    %v4367 = vsel %vm4359, %v4311, 0.0
    %v4368 = vsel %vm4360, %v4312, 0.0
    %4369 = vst [vmem:[#allocation2] sm:$0xff] %v4361
    %4370 = vst [vmem:[#allocation2 + $0x8] sm:$0xff] %v4362
    %4371 = vst [vmem:[#allocation2 + $0x10] sm:$0xff] %v4363
    %4372 = vst [vmem:[#allocation2 + $0x18] sm:$0xff] %v4364
    %4373 = vst [vmem:[#allocation2 + $0x20] sm:$0xff] %v4365
    %4374 = vst [vmem:[#allocation2 + $0x28] sm:$0xff] %v4366
    %4375 = vst [vmem:[#allocation2 + $0x30] sm:$0xff] %v4367
    %4376 = vst [vmem:[#allocation2 + $0x38] sm:$0xff] %v4368
    // Predicated region
    $region34: #{tpu_custom_call.1} parent=1 // pred_check
      _
    $region35: #{tpu_custom_call.1} parent=1 // pred_check_branch
      %4378 = sbr.rel (0) target = $region37
    $region36: #{tpu_custom_call.1} parent=1 // pred_region
      %s4380 = ssub.s32 1024, 1024
      %4381 = vsyncadd [#allocation3], %s4380
      %s4382 = sshll.u32 [#allocation2], 4
      %s4383 = int_to_ptr.vmem [resolvable:$true] %s4382
      %4388 = dma.vmem_to_hbm [thread:$0]  %s4383, 1024, %s8, [#allocation3], 128, 128, 8
    $region37: #{tpu_custom_call.1} parent=1 // pred_fallthru
      _
    // Predicated region
    $region38: #{tpu_custom_call.1} parent=1 // pred_check
      _
    $region39: #{tpu_custom_call.1} parent=1 // pred_check_branch
      %4390 = sbr.rel (0) target = $region41
    $region40: #{tpu_custom_call.1} parent=1 // pred_region
      %4391 = dma.done [#allocation3], 1024
    $region41: #{tpu_custom_call.1} parent=1 // pred_fallthru
      _
    %4392 = vsyncpa [#allocation3], 1

</llo_original>
